<compile_context>
chip_gen: v7x
topology: tpu7x:2x2x1
jax: 0.10.0
libtpu: 0.0.40
codegen_flags: <defaults>
</compile_context>

<pallas_src>
import jax
import jax.numpy as jnp
from jax.experimental import pallas as pl
from jax.experimental.pallas import tpu as pltpu

EPS = 1e-5
HIDDEN = 512
OUT_SIDE = 400
OUT_N = OUT_SIDE * OUT_SIDE  # 160000
TN = 3200                    # output-column tile: 160000 / 3200 = 50 grid steps (even)


def _elu(x):
    # ELU(alpha=1): x if x > 0 else exp(x) - 1  (exp clamped on the dead lane)
    return jnp.where(x > 0, x, jnp.exp(jnp.minimum(x, 0.0)) - 1.0)


def _batchnorm_train(h, gamma, beta):
    mu = jnp.mean(h, axis=0, keepdims=True)
    var = jnp.mean((h - mu) ** 2, axis=0, keepdims=True)  # biased variance (PyTorch norm)
    return gamma * ((h - mu) * jax.lax.rsqrt(var + EPS)) + beta


def generator_w2_kernel(x_ref, w1_ref, bnp1_ref, w2_ref, bnp2_ref,
                        w3_ref, b3_ref, out_ref):
    # ---- stage 1 (all operands VMEM-resident; block indices constant across the grid,
    #       so no re-DMA; recompute is hidden under the w3 block DMA) ----
    h = jnp.dot(x_ref[...], w1_ref[...],
                preferred_element_type=jnp.float32) + bnp1_ref[0:1, :]
    h = _elu(_batchnorm_train(h, bnp1_ref[1:2, :], bnp1_ref[2:3, :]))
    h = jnp.dot(h, w2_ref[...],
                preferred_element_type=jnp.float32) + bnp2_ref[0:1, :]
    h = _elu(_batchnorm_train(h, bnp2_ref[1:2, :], bnp2_ref[2:3, :]))
    # ---- stage 2: this grid step's TN-column slice of linear3 ----
    out_ref[...] = jnp.dot(h, w3_ref[...],
                           preferred_element_type=jnp.float32) + b3_ref[...]


def generator_w2_forward(x, params):
    B, Z = x.shape
    (w1, bnp1, w2, bnp2, w3, b3) = params

    resident = lambda shape: pl.BlockSpec(shape, lambda j: (0,) * len(shape))
    out = pl.pallas_call(
        generator_w2_kernel,
        out_shape=jax.ShapeDtypeStruct((B, OUT_N), jnp.float32),
        grid_spec=pltpu.PrefetchScalarGridSpec(
            num_scalar_prefetch=0,
            grid=(OUT_N // TN,),
            in_specs=[resident((B, Z)),
                      resident((Z, HIDDEN)), resident((3, HIDDEN)),
                      resident((HIDDEN, HIDDEN)), resident((3, HIDDEN)),
                      pl.BlockSpec((HIDDEN, TN), lambda j: (0, j)),
                      pl.BlockSpec((1, TN), lambda j: (0, j))],
            out_specs=pl.BlockSpec((B, TN), lambda j: (0, j)),
        ),
        compiler_params=pltpu.CompilerParams(
            dimension_semantics=("parallel",),
            vmem_limit_bytes=32 * 1024 * 1024),
    )(x, w1, bnp1, w2, bnp2, w3, b3)

    return out.reshape(-1, OUT_SIDE, OUT_SIDE)


def init_params(key, z):
    """PyTorch-default-style init. Linear weights stored transposed as (in, out) so
    y = x @ W + b.  Per-BN-layer (bias, gamma, beta) packed into one (3, HIDDEN) array."""
    ks = jax.random.split(key, 6)

    def linear(kw, kb, fan_in, fan_out):
        bound = 1.0 / jnp.sqrt(fan_in)
        w = jax.random.uniform(kw, (fan_in, fan_out), jnp.float32, -bound, bound)
        b = jax.random.uniform(kb, (1, fan_out), jnp.float32, -bound, bound)
        return w, b

    w1, b1 = linear(ks[0], ks[1], z, HIDDEN)
    w2, b2 = linear(ks[2], ks[3], HIDDEN, HIDDEN)
    w3, b3 = linear(ks[4], ks[5], HIDDEN, OUT_N)

    def pack(b):  # rows: [linear bias, bn gamma, bn beta]
        return jnp.concatenate(
            [b, jnp.ones((1, HIDDEN), jnp.float32), jnp.zeros((1, HIDDEN), jnp.float32)],
            axis=0)

    return (w1, pack(b1), w2, pack(b2), w3, b3)


if __name__ == "__main__":
    B, Z = 8, 128  # small batch; latent dim lane-aligned
    key = jax.random.PRNGKey(0)
    kx, kp = jax.random.split(key)
    x = jax.random.normal(kx, (B, Z), jnp.float32)
    params = init_params(kp, Z)

    out = jax.jit(generator_w2_forward)(x, params)
    out = jax.block_until_ready(out)
    assert out.shape == (B, OUT_SIDE, OUT_SIDE), out.shape
    assert jnp.isfinite(out).all()
    print("KERNEL_OK")
</pallas_src>

<mosaic_0001>
module attributes {stable_mosaic.version = 11 : i64} {
  func.func @generator_w2_kernel(%arg0: i32, %arg1: memref<8x128xf32, #tpu.memory_space<vmem>>, %arg2: memref<128x512xf32, #tpu.memory_space<vmem>>, %arg3: memref<3x512xf32, #tpu.memory_space<vmem>>, %arg4: memref<512x512xf32, #tpu.memory_space<vmem>>, %arg5: memref<3x512xf32, #tpu.memory_space<vmem>>, %arg6: memref<512x3200xf32, #tpu.memory_space<vmem>>, %arg7: memref<1x3200xf32, #tpu.memory_space<vmem>>, %arg8: memref<8x3200xf32, #tpu.memory_space<vmem>>) attributes {dimension_semantics = [#tpu.dimension_semantics<parallel>], iteration_bounds = array<i64: 50>, scalar_prefetch = 0 : i64, scratch_operands = 0 : i64, tpu.core_type = #tpu.core_type<tc>, window_params = [{pipeline_mode = #tpu.pipeline_mode<synchronous>, transform_indices = @transform_0, window_bounds = array<i64: 8, 128>}, {pipeline_mode = #tpu.pipeline_mode<synchronous>, transform_indices = @transform_1, window_bounds = array<i64: 128, 512>}, {pipeline_mode = #tpu.pipeline_mode<synchronous>, transform_indices = @transform_2, window_bounds = array<i64: 3, 512>}, {pipeline_mode = #tpu.pipeline_mode<synchronous>, transform_indices = @transform_3, window_bounds = array<i64: 512, 512>}, {pipeline_mode = #tpu.pipeline_mode<synchronous>, transform_indices = @transform_4, window_bounds = array<i64: 3, 512>}, {transform_indices = @transform_5, window_bounds = array<i64: 512, 3200>}, {transform_indices = @transform_6, window_bounds = array<i64: 1, 3200>}, {transform_indices = @transform_7, window_bounds = array<i64: 8, 3200>}]} {
    %c0 = arith.constant 0 : index
    %c0_0 = arith.constant 0 : index
    %0 = vector.load %arg1[%c0, %c0_0] : memref<8x128xf32, #tpu.memory_space<vmem>>, vector<8x128xf32>
    %c0_1 = arith.constant 0 : index
    %c0_2 = arith.constant 0 : index
    %1 = vector.load %arg2[%c0_1, %c0_2] : memref<128x512xf32, #tpu.memory_space<vmem>>, vector<128x512xf32>
    %cst = arith.constant dense<0.000000e+00> : vector<8x512xf32>
    %2 = tpu.matmul %0, %1, %cst {dimension_numbers = #tpu.dot_dimension_numbers<[1], [0], [0], [1], [0, 0, 1, 1], [], []>} : vector<8x128xf32>, vector<128x512xf32>, vector<8x512xf32> -> vector<8x512xf32>
    %c0_3 = arith.constant 0 : index
    %c0_4 = arith.constant 0 : index
    %3 = vector.load %arg3[%c0_3, %c0_4] : memref<3x512xf32, #tpu.memory_space<vmem>>, vector<1x512xf32>
    %4 = vector.broadcast %3 : vector<1x512xf32> to vector<8x512xf32>
    %5 = arith.addf %2, %4 : vector<8x512xf32>
    %c1 = arith.constant 1 : index
    %c0_5 = arith.constant 0 : index
    %6 = vector.load %arg3[%c1, %c0_5] : memref<3x512xf32, #tpu.memory_space<vmem>>, vector<1x512xf32>
    %c2 = arith.constant 2 : index
    %c0_6 = arith.constant 0 : index
    %7 = vector.load %arg3[%c2, %c0_6] : memref<3x512xf32, #tpu.memory_space<vmem>>, vector<1x512xf32>
    %cst_7 = arith.constant dense<0.000000e+00> : vector<512xf32>
    %8 = vector.multi_reduction <add>, %5, %cst_7 [0] : vector<8x512xf32> to vector<512xf32>
    %9 = vector.shape_cast %8 : vector<512xf32> to vector<1x512xf32>
    %cst_8 = arith.constant 8.000000e+00 : f32
    %10 = vector.broadcast %cst_8 : f32 to vector<1x512xf32>
    %11 = arith.divf %9, %10 : vector<1x512xf32>
    %12 = vector.broadcast %11 : vector<1x512xf32> to vector<8x512xf32>
    %13 = arith.subf %5, %12 : vector<8x512xf32>
    %14 = arith.mulf %13, %13 : vector<8x512xf32>
    %cst_9 = arith.constant dense<0.000000e+00> : vector<512xf32>
    %15 = vector.multi_reduction <add>, %14, %cst_9 [0] : vector<8x512xf32> to vector<512xf32>
    %16 = vector.shape_cast %15 : vector<512xf32> to vector<1x512xf32>
    %cst_10 = arith.constant 8.000000e+00 : f32
    %17 = vector.broadcast %cst_10 : f32 to vector<1x512xf32>
    %18 = arith.divf %16, %17 : vector<1x512xf32>
    %19 = vector.broadcast %11 : vector<1x512xf32> to vector<8x512xf32>
    %20 = arith.subf %5, %19 : vector<8x512xf32>
    %cst_11 = arith.constant 9.99999974E-6 : f32
    %21 = vector.broadcast %cst_11 : f32 to vector<1x512xf32>
    %22 = arith.addf %18, %21 : vector<1x512xf32>
    %23 = math.rsqrt %22 : vector<1x512xf32>
    %24 = vector.broadcast %23 : vector<1x512xf32> to vector<8x512xf32>
    %25 = arith.mulf %20, %24 : vector<8x512xf32>
    %26 = vector.broadcast %6 : vector<1x512xf32> to vector<8x512xf32>
    %27 = arith.mulf %26, %25 : vector<8x512xf32>
    %28 = vector.broadcast %7 : vector<1x512xf32> to vector<8x512xf32>
    %29 = arith.addf %27, %28 : vector<8x512xf32>
    %cst_12 = arith.constant 0.000000e+00 : f32
    %30 = vector.broadcast %cst_12 : f32 to vector<8x512xf32>
    %31 = arith.cmpf ogt, %29, %30 : vector<8x512xf32>
    %cst_13 = arith.constant 0.000000e+00 : f32
    %32 = vector.broadcast %cst_13 : f32 to vector<8x512xf32>
    %33 = arith.minimumf %29, %32 : vector<8x512xf32>
    %34 = math.exp %33 : vector<8x512xf32>
    %cst_14 = arith.constant 1.000000e+00 : f32
    %35 = vector.broadcast %cst_14 : f32 to vector<8x512xf32>
    %36 = arith.subf %34, %35 : vector<8x512xf32>
    %37 = arith.select %31, %29, %36 : vector<8x512xi1>, vector<8x512xf32>
    %c0_15 = arith.constant 0 : index
    %c0_16 = arith.constant 0 : index
    %38 = vector.load %arg4[%c0_15, %c0_16] : memref<512x512xf32, #tpu.memory_space<vmem>>, vector<512x512xf32>
    %cst_17 = arith.constant dense<0.000000e+00> : vector<8x512xf32>
    %39 = tpu.matmul %37, %38, %cst_17 {dimension_numbers = #tpu.dot_dimension_numbers<[1], [0], [0], [1], [0, 0, 1, 1], [], []>} : vector<8x512xf32>, vector<512x512xf32>, vector<8x512xf32> -> vector<8x512xf32>
    %c0_18 = arith.constant 0 : index
    %c0_19 = arith.constant 0 : index
    %40 = vector.load %arg5[%c0_18, %c0_19] : memref<3x512xf32, #tpu.memory_space<vmem>>, vector<1x512xf32>
    %41 = vector.broadcast %40 : vector<1x512xf32> to vector<8x512xf32>
    %42 = arith.addf %39, %41 : vector<8x512xf32>
    %c1_20 = arith.constant 1 : index
    %c0_21 = arith.constant 0 : index
    %43 = vector.load %arg5[%c1_20, %c0_21] : memref<3x512xf32, #tpu.memory_space<vmem>>, vector<1x512xf32>
    %c2_22 = arith.constant 2 : index
    %c0_23 = arith.constant 0 : index
    %44 = vector.load %arg5[%c2_22, %c0_23] : memref<3x512xf32, #tpu.memory_space<vmem>>, vector<1x512xf32>
    %cst_24 = arith.constant dense<0.000000e+00> : vector<512xf32>
    %45 = vector.multi_reduction <add>, %42, %cst_24 [0] : vector<8x512xf32> to vector<512xf32>
    %46 = vector.shape_cast %45 : vector<512xf32> to vector<1x512xf32>
    %cst_25 = arith.constant 8.000000e+00 : f32
    %47 = vector.broadcast %cst_25 : f32 to vector<1x512xf32>
    %48 = arith.divf %46, %47 : vector<1x512xf32>
    %49 = vector.broadcast %48 : vector<1x512xf32> to vector<8x512xf32>
    %50 = arith.subf %42, %49 : vector<8x512xf32>
    %51 = arith.mulf %50, %50 : vector<8x512xf32>
    %cst_26 = arith.constant dense<0.000000e+00> : vector<512xf32>
    %52 = vector.multi_reduction <add>, %51, %cst_26 [0] : vector<8x512xf32> to vector<512xf32>
    %53 = vector.shape_cast %52 : vector<512xf32> to vector<1x512xf32>
    %cst_27 = arith.constant 8.000000e+00 : f32
    %54 = vector.broadcast %cst_27 : f32 to vector<1x512xf32>
    %55 = arith.divf %53, %54 : vector<1x512xf32>
    %56 = vector.broadcast %48 : vector<1x512xf32> to vector<8x512xf32>
    %57 = arith.subf %42, %56 : vector<8x512xf32>
    %cst_28 = arith.constant 9.99999974E-6 : f32
    %58 = vector.broadcast %cst_28 : f32 to vector<1x512xf32>
    %59 = arith.addf %55, %58 : vector<1x512xf32>
    %60 = math.rsqrt %59 : vector<1x512xf32>
    %61 = vector.broadcast %60 : vector<1x512xf32> to vector<8x512xf32>
    %62 = arith.mulf %57, %61 : vector<8x512xf32>
    %63 = vector.broadcast %43 : vector<1x512xf32> to vector<8x512xf32>
    %64 = arith.mulf %63, %62 : vector<8x512xf32>
    %65 = vector.broadcast %44 : vector<1x512xf32> to vector<8x512xf32>
    %66 = arith.addf %64, %65 : vector<8x512xf32>
    %cst_29 = arith.constant 0.000000e+00 : f32
    %67 = vector.broadcast %cst_29 : f32 to vector<8x512xf32>
    %68 = arith.cmpf ogt, %66, %67 : vector<8x512xf32>
    %cst_30 = arith.constant 0.000000e+00 : f32
    %69 = vector.broadcast %cst_30 : f32 to vector<8x512xf32>
    %70 = arith.minimumf %66, %69 : vector<8x512xf32>
    %71 = math.exp %70 : vector<8x512xf32>
    %cst_31 = arith.constant 1.000000e+00 : f32
    %72 = vector.broadcast %cst_31 : f32 to vector<8x512xf32>
    %73 = arith.subf %71, %72 : vector<8x512xf32>
    %74 = arith.select %68, %66, %73 : vector<8x512xi1>, vector<8x512xf32>
    %c0_32 = arith.constant 0 : index
    %c0_33 = arith.constant 0 : index
    %75 = vector.load %arg6[%c0_32, %c0_33] : memref<512x3200xf32, #tpu.memory_space<vmem>>, vector<512x3200xf32>
    %cst_34 = arith.constant dense<0.000000e+00> : vector<8x3200xf32>
    %76 = tpu.matmul %74, %75, %cst_34 {dimension_numbers = #tpu.dot_dimension_numbers<[1], [0], [0], [1], [0, 0, 1, 1], [], []>} : vector<8x512xf32>, vector<512x3200xf32>, vector<8x3200xf32> -> vector<8x3200xf32>
    %c0_35 = arith.constant 0 : index
    %c0_36 = arith.constant 0 : index
    %77 = vector.load %arg7[%c0_35, %c0_36] : memref<1x3200xf32, #tpu.memory_space<vmem>>, vector<1x3200xf32>
    %78 = vector.broadcast %77 : vector<1x3200xf32> to vector<8x3200xf32>
    %79 = arith.addf %76, %78 : vector<8x3200xf32>
    %c0_37 = arith.constant 0 : index
    %c0_38 = arith.constant 0 : index
    %80 = vector.load %arg8[%c0_37, %c0_38] : memref<8x3200xf32, #tpu.memory_space<vmem>>, vector<8x3200xf32>
    tpu.vector_store %arg8[%c0_37, %c0_38], %79 {strides = array<i32>} : memref<8x3200xf32, #tpu.memory_space<vmem>>, vector<8x3200xf32>,
    return
  }
  func.func @transform_0(%arg0: i32) -> (i32, i32) {
    %c0_i32 = arith.constant 0 : i32
    %c0_i32_0 = arith.constant 0 : i32
    %c0_i32_1 = arith.constant 0 : i32
    return %c0_i32, %c0_i32_0 : i32, i32
  }
  func.func @transform_1(%arg0: i32) -> (i32, i32) {
    %c0_i32 = arith.constant 0 : i32
    %c0_i32_0 = arith.constant 0 : i32
    %c0_i32_1 = arith.constant 0 : i32
    return %c0_i32, %c0_i32_0 : i32, i32
  }
  func.func @transform_2(%arg0: i32) -> (i32, i32) {
    %c0_i32 = arith.constant 0 : i32
    %c0_i32_0 = arith.constant 0 : i32
    %c0_i32_1 = arith.constant 0 : i32
    return %c0_i32, %c0_i32_0 : i32, i32
  }
  func.func @transform_3(%arg0: i32) -> (i32, i32) {
    %c0_i32 = arith.constant 0 : i32
    %c0_i32_0 = arith.constant 0 : i32
    %c0_i32_1 = arith.constant 0 : i32
    return %c0_i32, %c0_i32_0 : i32, i32
  }
  func.func @transform_4(%arg0: i32) -> (i32, i32) {
    %c0_i32 = arith.constant 0 : i32
    %c0_i32_0 = arith.constant 0 : i32
    %c0_i32_1 = arith.constant 0 : i32
    return %c0_i32, %c0_i32_0 : i32, i32
  }
  func.func @transform_5(%arg0: i32) -> (i32, i32) {
    %c0_i32 = arith.constant 0 : i32
    %c0_i32_0 = arith.constant 0 : i32
    return %c0_i32, %arg0 : i32, i32
  }
  func.func @transform_6(%arg0: i32) -> (i32, i32) {
    %c0_i32 = arith.constant 0 : i32
    %c0_i32_0 = arith.constant 0 : i32
    return %c0_i32, %arg0 : i32, i32
  }
  func.func @transform_7(%arg0: i32) -> (i32, i32) {
    %c0_i32 = arith.constant 0 : i32
    %c0_i32_0 = arith.constant 0 : i32
    return %c0_i32, %arg0 : i32, i32
  }
}

</mosaic_0001>

<llo_original>
// kernel: generator_w2_forward.1
$region0: #{generator_w2_forward.1}
  #allocation0 [shape = 'u32[]', space=smem, size = 0x4, offset = 0x4, fixed_abs, tag = 'smem constant byte address 0x4 - core index']
  #allocation1 [shape = 'u32[144,128]{1,0:T(1,128)}', space=vmem, size = 0x12000, scoped, tag = 'internal scratch']
  %s0 = inlined_call_operand.hbm [shape: f32[8,128], index: 0, kind: input, shape index: {}]
  %s1 = inlined_call_operand.hbm [shape: f32[128,512], index: 1, kind: input, shape index: {}]
  %s2 = inlined_call_operand.hbm [shape: f32[3,512], index: 2, kind: input, shape index: {}]
  %s3 = inlined_call_operand.hbm [shape: f32[512,512], index: 3, kind: input, shape index: {}]
  %s4 = inlined_call_operand.hbm [shape: f32[3,512], index: 4, kind: input, shape index: {}]
  %s5 = inlined_call_operand.hbm [shape: f32[512,160000], index: 5, kind: input, shape index: {}]
  %s6 = inlined_call_operand.hbm [shape: f32[1,160000], index: 6, kind: input, shape index: {}]
  %s7 = inlined_call_operand.vmem [shape: f32[8,160000], index: 7, kind: output, shape index: {}]
  %s8 = sld [smem:[#allocation0]]
  $region89: #{generator_w2_forward.1} parent=0
    _
  %s10 = ssub.s32 1, %s8
  %s11 = scalar_select 0, %s10, %s8
  $region1: #{generator_w2_forward.1} parent=0
    #allocation2 [shape = 'u8[4096]{0}', space=vmem, size = 0x1000, scoped, tag = 'input window, operand 0, single buffered']
    #allocation3 [shape = 's32[2]{0}', space=sflag, size = 0x8, scoped, tag = 'scoped memory for generator_w2_forward.1']
    #allocation4 [shape = 'u8[262144]{0}', space=vmem, size = 0x40000, scoped, tag = 'input window, operand 1, single buffered']
    #allocation5 [shape = 's32[1]{0}', space=sflag, size = 0x4, scoped, tag = 'scoped memory for generator_w2_forward.1']
    #allocation6 [shape = 'u8[8192]{0}', space=vmem, size = 0x2000, scoped, tag = 'input window, operand 2, single buffered']
    #allocation7 [shape = 'u8[1048576]{0}', space=vmem, size = 0x100000, scoped, tag = 'input window, operand 3, single buffered']
    #allocation8 [shape = 's32[1]{0}', space=sflag, size = 0x4, scoped, tag = 'scoped memory for generator_w2_forward.1']
    #allocation9 [shape = 'u8[8192]{0}', space=vmem, size = 0x2000, scoped, tag = 'input window, operand 4, single buffered']
    #allocation10 [shape = 'u8[13107200]{0}', space=vmem, size = 0xc80000, scoped, tag = 'input window, operand 5']
    #allocation11 [shape = 's32[2]{0}', space=sflag, size = 0x8, scoped, tag = 'scoped memory for generator_w2_forward.1']
    #allocation12 [shape = 'u8[25600]{0}', space=vmem, size = 0x6400, scoped, tag = 'input window, operand 6']
    %12 = vsyncpa [#allocation3], 0
    %13 = vsyncpa [#allocation5], 0
    %14 = vsyncpa [#allocation8], 0
    %15 = vsyncpa [#allocation11], 0
    %s16 = scalar_lea.sflag [#allocation11], 1
    %17 = vsyncpa %s16, 0
    loop: start=0, step=1, limit=52
    $region2: #{generator_w2_forward.1} parent=1 // loop_pre_header
      _
    $region3: #{generator_w2_forward.1} parent=1 // loop_header
      %s19 = sphi 0, %s23
      %p20 = scmp.ge.s32.totalorder %s19, 52
      %s27 = sphi 0, %s27
      %s29 = sphi 0, %s27
      %s30 = sphi 0, %s29
      %s44 = sphi 0, %s30
      %s48 = sphi 0, %s48
      %s50 = sphi 0, %s48
      %s51 = sphi 0, %s50
      %s65 = sphi 0, %s51
      %s69 = sphi 0, %s69
      %s71 = sphi 0, %s69
      %s72 = sphi 0, %s71
      %s86 = sphi 0, %s72
      %s90 = sphi 0, %s90
      %s92 = sphi 0, %s90
      %s93 = sphi 0, %s92
      %s107 = sphi 0, %s93
      %s111 = sphi 0, %s111
      %s113 = sphi 0, %s111
      %s114 = sphi 0, %s113
      %s128 = sphi 0, %s114
      %s134 = sphi 0, %s136
      %s137 = sphi 0, %s134
      %s138 = sphi 0, %s137
      %s154 = sphi 0, %s138
      %s160 = sphi 0, %s162
      %s163 = sphi 0, %s160
      %s164 = sphi 0, %s163
      %s180 = sphi 0, %s164
      %s186 = sphi 0, %s188
      %s189 = sphi 0, %s186
      %s190 = sphi 0, %s189
      %s206 = sphi 0, %s190
    $region4: #{generator_w2_forward.1} parent=1 // loop_header_branch
      %22 = sbr.rel (%p20) target = $region8
    $region5: #{generator_w2_forward.1} parent=1 // loop_body
      %s24 = ssub.s32 %s19, 1
      %s25 = ssub.s32 %s19, 2
      %s26 = sadd.s32 %s19, 1
      %s28 = sadd.s32 %s27, 1
      %p31 = scmp.eq.s32.totalorder %s19, 49
      %p32 = scmp.ne.s32.totalorder %s27, %s29
      %p33 = scmp.eq.s32.totalorder %s19, 0
      %p34 = por %p32, %p33
      %p35 = scmp.ne.s32.totalorder %s27, %s29
      %p36 = scmp.eq.s32.totalorder %s24, 49
      %p37 = por %p35, %p36
      %p38 = scmp.ne.s32.totalorder %s29, %s30
      %p39 = scmp.eq.s32.totalorder %s24, 0
      %p40 = por %p38, %p39
      %p41 = scmp.ne.s32.totalorder %s29, %s30
      %p42 = scmp.eq.s32.totalorder %s25, 49
      %p43 = por %p41, %p42
      %p45 = scmp.ne.s32.totalorder %s30, %s44
      %p46 = scmp.eq.s32.totalorder %s25, 0
      %p47 = por %p45, %p46
      %s49 = sadd.s32 %s48, 1
      %p52 = scmp.eq.s32.totalorder %s19, 49
      %p53 = scmp.ne.s32.totalorder %s48, %s50
      %p54 = scmp.eq.s32.totalorder %s19, 0
      %p55 = por %p53, %p54
      %p56 = scmp.ne.s32.totalorder %s48, %s50
      %p57 = scmp.eq.s32.totalorder %s24, 49
      %p58 = por %p56, %p57
      %p59 = scmp.ne.s32.totalorder %s50, %s51
      %p60 = scmp.eq.s32.totalorder %s24, 0
      %p61 = por %p59, %p60
      %p62 = scmp.ne.s32.totalorder %s50, %s51
      %p63 = scmp.eq.s32.totalorder %s25, 49
      %p64 = por %p62, %p63
      %p66 = scmp.ne.s32.totalorder %s51, %s65
      %p67 = scmp.eq.s32.totalorder %s25, 0
      %p68 = por %p66, %p67
      %s70 = sadd.s32 %s69, 1
      %p73 = scmp.eq.s32.totalorder %s19, 49
      %p74 = scmp.ne.s32.totalorder %s69, %s71
      %p75 = scmp.eq.s32.totalorder %s19, 0
      %p76 = por %p74, %p75
      %p77 = scmp.ne.s32.totalorder %s69, %s71
      %p78 = scmp.eq.s32.totalorder %s24, 49
      %p79 = por %p77, %p78
      %p80 = scmp.ne.s32.totalorder %s71, %s72
      %p81 = scmp.eq.s32.totalorder %s24, 0
      %p82 = por %p80, %p81
      %p83 = scmp.ne.s32.totalorder %s71, %s72
      %p84 = scmp.eq.s32.totalorder %s25, 49
      %p85 = por %p83, %p84
      %p87 = scmp.ne.s32.totalorder %s72, %s86
      %p88 = scmp.eq.s32.totalorder %s25, 0
      %p89 = por %p87, %p88
      %s91 = sadd.s32 %s90, 1
      %p94 = scmp.eq.s32.totalorder %s19, 49
      %p95 = scmp.ne.s32.totalorder %s90, %s92
      %p96 = scmp.eq.s32.totalorder %s19, 0
      %p97 = por %p95, %p96
      %p98 = scmp.ne.s32.totalorder %s90, %s92
      %p99 = scmp.eq.s32.totalorder %s24, 49
      %p100 = por %p98, %p99
      %p101 = scmp.ne.s32.totalorder %s92, %s93
      %p102 = scmp.eq.s32.totalorder %s24, 0
      %p103 = por %p101, %p102
      %p104 = scmp.ne.s32.totalorder %s92, %s93
      %p105 = scmp.eq.s32.totalorder %s25, 49
      %p106 = por %p104, %p105
      %p108 = scmp.ne.s32.totalorder %s93, %s107
      %p109 = scmp.eq.s32.totalorder %s25, 0
      %p110 = por %p108, %p109
      %s112 = sadd.s32 %s111, 1
      %p115 = scmp.eq.s32.totalorder %s19, 49
      %p116 = scmp.ne.s32.totalorder %s111, %s113
      %p117 = scmp.eq.s32.totalorder %s19, 0
      %p118 = por %p116, %p117
      %p119 = scmp.ne.s32.totalorder %s111, %s113
      %p120 = scmp.eq.s32.totalorder %s24, 49
      %p121 = por %p119, %p120
      %p122 = scmp.ne.s32.totalorder %s113, %s114
      %p123 = scmp.eq.s32.totalorder %s24, 0
      %p124 = por %p122, %p123
      %p125 = scmp.ne.s32.totalorder %s113, %s114
      %p126 = scmp.eq.s32.totalorder %s25, 49
      %p127 = por %p125, %p126
      %p129 = scmp.ne.s32.totalorder %s114, %s128
      %p130 = scmp.eq.s32.totalorder %s25, 0
      %p131 = por %p129, %p130
      %s132 = ssub.s32 %s19, %s26
      %p133 = scmp.eq.s32.totalorder %s132, 0
      %s135 = sadd.s32 %s134, 1
      %s136 = scalar_select %p133, %s134, %s135
      %p139 = pneg %p133
      %p140 = scmp.eq.s32.totalorder %s19, 49
      %p141 = por %p139, %p140
      %p142 = scmp.ne.s32.totalorder %s134, %s137
      %p143 = scmp.eq.s32.totalorder %s19, 0
      %p144 = por %p142, %p143
      %p145 = scmp.ne.s32.totalorder %s134, %s137
      %p146 = scmp.eq.s32.totalorder %s24, 49
      %p147 = por %p145, %p146
      %p148 = scmp.ne.s32.totalorder %s137, %s138
      %p149 = scmp.eq.s32.totalorder %s24, 0
      %p150 = por %p148, %p149
      %p151 = scmp.ne.s32.totalorder %s137, %s138
      %p152 = scmp.eq.s32.totalorder %s25, 49
      %p153 = por %p151, %p152
      %p155 = scmp.ne.s32.totalorder %s138, %s154
      %p156 = scmp.eq.s32.totalorder %s25, 0
      %p157 = por %p155, %p156
      %s158 = ssub.s32 %s19, %s26
      %p159 = scmp.eq.s32.totalorder %s158, 0
      %s161 = sadd.s32 %s160, 1
      %s162 = scalar_select %p159, %s160, %s161
      %p165 = pneg %p159
      %p166 = scmp.eq.s32.totalorder %s19, 49
      %p167 = por %p165, %p166
      %p168 = scmp.ne.s32.totalorder %s160, %s163
      %p169 = scmp.eq.s32.totalorder %s19, 0
      %p170 = por %p168, %p169
      %p171 = scmp.ne.s32.totalorder %s160, %s163
      %p172 = scmp.eq.s32.totalorder %s24, 49
      %p173 = por %p171, %p172
      %p174 = scmp.ne.s32.totalorder %s163, %s164
      %p175 = scmp.eq.s32.totalorder %s24, 0
      %p176 = por %p174, %p175
      %p177 = scmp.ne.s32.totalorder %s163, %s164
      %p178 = scmp.eq.s32.totalorder %s25, 49
      %p179 = por %p177, %p178
      %p181 = scmp.ne.s32.totalorder %s164, %s180
      %p182 = scmp.eq.s32.totalorder %s25, 0
      %p183 = por %p181, %p182
      %s184 = ssub.s32 %s19, %s26
      %p185 = scmp.eq.s32.totalorder %s184, 0
      %s187 = sadd.s32 %s186, 1
      %s188 = scalar_select %p185, %s186, %s187
      %p191 = pneg %p185
      %p192 = scmp.eq.s32.totalorder %s19, 49
      %p193 = por %p191, %p192
      %p194 = scmp.ne.s32.totalorder %s186, %s189
      %p195 = scmp.eq.s32.totalorder %s19, 0
      %p196 = por %p194, %p195
      %p197 = scmp.ne.s32.totalorder %s186, %s189
      %p198 = scmp.eq.s32.totalorder %s24, 49
      %p199 = por %p197, %p198
      %p200 = scmp.ne.s32.totalorder %s189, %s190
      %p201 = scmp.eq.s32.totalorder %s24, 0
      %p202 = por %p200, %p201
      %p203 = scmp.ne.s32.totalorder %s189, %s190
      %p204 = scmp.eq.s32.totalorder %s25, 49
      %p205 = por %p203, %p204
      %p207 = scmp.ne.s32.totalorder %s190, %s206
      %p208 = scmp.eq.s32.totalorder %s25, 0
      %p209 = por %p207, %p208
      %p210 = scmp.le.s32.totalorder 1, %s19
      %p211 = scmp.lt.s32.totalorder %s19, 51
      %p212 = pnand %p210, %p211
      %p213 = pneg %p212
      // Predicated region
      $region9: #{generator_w2_forward.1} parent=5 // pred_check
        _
      $region10: #{generator_w2_forward.1} parent=5 // pred_check_branch
        %215 = sbr.rel (%p212) target = $region12
      $region11: #{generator_w2_forward.1} parent=5 // pred_region
        %s216 = ssub.s32 %s19, 1
        // Predicated region
        $region13: #{generator_w2_forward.1} parent=11 // pred_check
          %p217 = pneg %p40
        $region14: #{generator_w2_forward.1} parent=11 // pred_check_branch
          %219 = sbr.rel (%p217) target = $region16
        $region15: #{generator_w2_forward.1} parent=11 // pred_region
          %s221 = ssub.s32 128, 128
          %222 = vsyncadd [#allocation3], %s221
          %s224 = sshll.u32 [#allocation2], 4
          %s225 = int_to_ptr.vmem [resolvable:$true] %s224
          %227 = dma.hbm_to_vmem [thread:$0]  %s0, 128, %s225, [#allocation3]
        $region16: #{generator_w2_forward.1} parent=11 // pred_fallthru
          _
        // Predicated region
        $region17: #{generator_w2_forward.1} parent=11 // pred_check
          %p228 = pneg %p61
        $region18: #{generator_w2_forward.1} parent=11 // pred_check_branch
          %230 = sbr.rel (%p228) target = $region20
        $region19: #{generator_w2_forward.1} parent=11 // pred_region
          %s232 = ssub.s32 8192, 8192
          %233 = vsyncadd [#allocation5], %s232
          %s234 = sshll.u32 [#allocation4], 4
          %s235 = int_to_ptr.vmem [resolvable:$true] %s234
          %240 = dma.hbm_to_vmem [thread:$0]  %s1, 8192, %s235, [#allocation5], 512, 512, 32
        $region20: #{generator_w2_forward.1} parent=11 // pred_fallthru
          _
        // Predicated region
        $region21: #{generator_w2_forward.1} parent=11 // pred_check
          %p241 = pneg %p82
        $region22: #{generator_w2_forward.1} parent=11 // pred_check_branch
          %243 = sbr.rel (%p241) target = $region24
        $region23: #{generator_w2_forward.1} parent=11 // pred_region
          %s245 = ssub.s32 256, 256
          %246 = vsyncadd [#allocation5], %s245
          %s248 = sshll.u32 [#allocation6], 4
          %s249 = int_to_ptr.vmem [resolvable:$true] %s248
          %251 = dma.hbm_to_vmem [thread:$0]  %s2, 256, %s249, [#allocation5]
        $region24: #{generator_w2_forward.1} parent=11 // pred_fallthru
          _
        // Predicated region
        $region25: #{generator_w2_forward.1} parent=11 // pred_check
          %p252 = pneg %p103
        $region26: #{generator_w2_forward.1} parent=11 // pred_check_branch
          %254 = sbr.rel (%p252) target = $region28
        $region27: #{generator_w2_forward.1} parent=11 // pred_region
          %s256 = ssub.s32 32768, 32768
          %257 = vsyncadd [#allocation8], %s256
          %s258 = sshll.u32 [#allocation7], 4
          %s259 = int_to_ptr.vmem [resolvable:$true] %s258
          %264 = dma.hbm_to_vmem [thread:$0]  %s3, 32768, %s259, [#allocation8], 512, 512, 32
        $region28: #{generator_w2_forward.1} parent=11 // pred_fallthru
          _
        // Predicated region
        $region29: #{generator_w2_forward.1} parent=11 // pred_check
          %p265 = pneg %p124
        $region30: #{generator_w2_forward.1} parent=11 // pred_check_branch
          %267 = sbr.rel (%p265) target = $region32
        $region31: #{generator_w2_forward.1} parent=11 // pred_region
          %s269 = ssub.s32 256, 256
          %270 = vsyncadd [#allocation8], %s269
          %s272 = sshll.u32 [#allocation9], 4
          %s273 = int_to_ptr.vmem [resolvable:$true] %s272
          %275 = dma.hbm_to_vmem [thread:$0]  %s4, 256, %s273, [#allocation8]
        $region32: #{generator_w2_forward.1} parent=11 // pred_fallthru
          _
      $region12: #{generator_w2_forward.1} parent=5 // pred_fallthru
        _
      %p276 = scmp.lt.s32.totalorder %s19, 50
      // Predicated region
      $region33: #{generator_w2_forward.1} parent=5 // pred_check
        %p277 = pneg %p276
      $region34: #{generator_w2_forward.1} parent=5 // pred_check_branch
        %279 = sbr.rel (%p277) target = $region36
      $region35: #{generator_w2_forward.1} parent=5 // pred_region
        // Predicated region
        $region37: #{generator_w2_forward.1} parent=35 // pred_check
          %p280 = pneg %p144
        $region38: #{generator_w2_forward.1} parent=35 // pred_check_branch
          %282 = sbr.rel (%p280) target = $region40
        $region39: #{generator_w2_forward.1} parent=35 // pred_region
          %s283 = sand.u32 %s19, 1
          %s284 = scalar_lea.sflag [#allocation11], %s283
          %s285 = sand.u32 %s134, 1
          %s286 = smul.addr %s285, 12800
          %s287 = scalar_lea.vmem [#allocation10], %s286
          %s288 = smul.u32 25, %s19
          %s290 = ssub.s32 204800, 204800
          %291 = vsyncadd %s284, %s290
          %s292 = smul.addr %s288, 128
          %s293 = scalar_lea.hbm %s5, %s292
          %s294 = sshll.u32 %s287, 4
          %s295 = int_to_ptr.vmem [resolvable:$true] %s294
          %300 = dma.hbm_to_vmem [thread:$0]  %s293, 204800, %s295, %s284, 160000, 3200, 200
        $region40: #{generator_w2_forward.1} parent=35 // pred_fallthru
          _
        // Predicated region
        $region41: #{generator_w2_forward.1} parent=35 // pred_check
          %p301 = pneg %p170
        $region42: #{generator_w2_forward.1} parent=35 // pred_check_branch
          %303 = sbr.rel (%p301) target = $region44
        $region43: #{generator_w2_forward.1} parent=35 // pred_region
          %s304 = sand.u32 %s19, 1
          %s305 = scalar_lea.sflag [#allocation11], %s304
          %s306 = sand.u32 %s160, 1
          %s307 = smul.addr %s306, 25
          %s308 = scalar_lea.vmem [#allocation12], %s307
          %s309 = smul.u32 25, %s19
          %s311 = ssub.s32 400, 400
          %312 = vsyncadd %s305, %s311
          %s313 = smul.addr %s309, 16
          %s314 = scalar_lea.hbm %s6, %s313
          %s316 = sshll.u32 %s308, 4
          %s317 = int_to_ptr.vmem [resolvable:$true] %s316
          %319 = dma.hbm_to_vmem [thread:$0]  %s314, 400, %s317, %s305
        $region44: #{generator_w2_forward.1} parent=35 // pred_fallthru
          _
      $region36: #{generator_w2_forward.1} parent=5 // pred_fallthru
        _
      %p320 = scmp.le.s32.totalorder 1, %s19
      %p321 = scmp.lt.s32.totalorder %s19, 51
      %p322 = pnand %p320, %p321
      %p323 = pneg %p322
      // Predicated region
      $region45: #{generator_w2_forward.1} parent=5 // pred_check
        _
      $region46: #{generator_w2_forward.1} parent=5 // pred_check_branch
        %325 = sbr.rel (%p322) target = $region48
      $region47: #{generator_w2_forward.1} parent=5 // pred_region
        %s326 = ssub.s32 %s19, 1
        // Predicated region
        $region49: #{generator_w2_forward.1} parent=47 // pred_check
          %p327 = pneg %p40
        $region50: #{generator_w2_forward.1} parent=47 // pred_check_branch
          %329 = sbr.rel (%p327) target = $region52
        $region51: #{generator_w2_forward.1} parent=47 // pred_region
          %330 = dma.done [#allocation3], 128
        $region52: #{generator_w2_forward.1} parent=47 // pred_fallthru
          _
        // Predicated region
        $region53: #{generator_w2_forward.1} parent=47 // pred_check
          %p331 = pneg %p61
        $region54: #{generator_w2_forward.1} parent=47 // pred_check_branch
          %333 = sbr.rel (%p331) target = $region56
        $region55: #{generator_w2_forward.1} parent=47 // pred_region
          %334 = dma.done [#allocation5], 8192
        $region56: #{generator_w2_forward.1} parent=47 // pred_fallthru
          _
        // Predicated region
        $region57: #{generator_w2_forward.1} parent=47 // pred_check
          %p335 = pneg %p82
        $region58: #{generator_w2_forward.1} parent=47 // pred_check_branch
          %337 = sbr.rel (%p335) target = $region60
        $region59: #{generator_w2_forward.1} parent=47 // pred_region
          %338 = dma.done [#allocation5], 256
        $region60: #{generator_w2_forward.1} parent=47 // pred_fallthru
          _
        // Predicated region
        $region61: #{generator_w2_forward.1} parent=47 // pred_check
          %p339 = pneg %p103
        $region62: #{generator_w2_forward.1} parent=47 // pred_check_branch
          %341 = sbr.rel (%p339) target = $region64
        $region63: #{generator_w2_forward.1} parent=47 // pred_region
          %342 = dma.done [#allocation8], 32768
        $region64: #{generator_w2_forward.1} parent=47 // pred_fallthru
          _
        // Predicated region
        $region65: #{generator_w2_forward.1} parent=47 // pred_check
          %p343 = pneg %p124
        $region66: #{generator_w2_forward.1} parent=47 // pred_check_branch
          %345 = sbr.rel (%p343) target = $region68
        $region67: #{generator_w2_forward.1} parent=47 // pred_region
          %346 = dma.done [#allocation8], 256
        $region68: #{generator_w2_forward.1} parent=47 // pred_fallthru
          _
        %s347 = sand.u32 %s24, 1
        %s348 = scalar_lea.sflag [#allocation11], %s347
        %s349 = sand.u32 %s137, 1
        %s350 = smul.addr %s349, 12800
        %s351 = scalar_lea.vmem [#allocation10], %s350
        // Predicated region
        $region69: #{generator_w2_forward.1} parent=47 // pred_check
          %p352 = pneg %p150
        $region70: #{generator_w2_forward.1} parent=47 // pred_check_branch
          %354 = sbr.rel (%p352) target = $region72
        $region71: #{generator_w2_forward.1} parent=47 // pred_region
          %355 = dma.done %s348, 204800
        $region72: #{generator_w2_forward.1} parent=47 // pred_fallthru
          _
        %s356 = sand.u32 %s24, 1
        %s357 = scalar_lea.sflag [#allocation11], %s356
        %s358 = sand.u32 %s163, 1
        %s359 = smul.addr %s358, 25
        %s360 = scalar_lea.vmem [#allocation12], %s359
        // Predicated region
        $region73: #{generator_w2_forward.1} parent=47 // pred_check
          %p361 = pneg %p176
        $region74: #{generator_w2_forward.1} parent=47 // pred_check_branch
          %363 = sbr.rel (%p361) target = $region76
        $region75: #{generator_w2_forward.1} parent=47 // pred_region
          %364 = dma.done %s357, 400
        $region76: #{generator_w2_forward.1} parent=47 // pred_fallthru
          _
        %p365 = pneg %p40
        %p366 = pneg %p37
        %p367 = pneg %p61
        %p368 = pneg %p58
        %p369 = pneg %p82
        %p370 = pneg %p79
        %p371 = pneg %p103
        %p372 = pneg %p100
        %p373 = pneg %p124
        %p374 = pneg %p121
        %s375 = sand.u32 %s24, 1
        %s376 = scalar_lea.sflag [#allocation11], %s375
        %s377 = sand.u32 %s137, 1
        %s378 = smul.addr %s377, 12800
        %s379 = scalar_lea.vmem [#allocation10], %s378
        %p380 = pneg %p150
        %p381 = pneg %p147
        %s382 = sand.u32 %s24, 1
        %s383 = scalar_lea.sflag [#allocation11], %s382
        %s384 = sand.u32 %s163, 1
        %s385 = smul.addr %s384, 25
        %s386 = scalar_lea.vmem [#allocation12], %s385
        %p387 = pneg %p176
        %p388 = pneg %p173
        %p389 = pneg %p202
        %p390 = pneg %p199
        %s391 = smul.u32 25, %s24
        %p392 = scmp.lt.s32.totalorder %s391, 1249
        %s393 = scalar_select %p392, %s391, 1249
        %s394 = smul.addr %s393, 8
        %s395 = scalar_lea.vmem %s7, %s394
        %s396 = smul.u32 25, %s24
        %s397 = smul.u32 25, %s24
        %s398 = smul.u32 25, %s24
        %p399 = scmp.lt.s32.totalorder %s398, 1249
        %s400 = scalar_select %p399, %s398, 1249
        %s401 = smul.addr %s400, 8
        %s402 = scalar_lea.vmem %s7, %s401
        %s403 = smul.u32 25, %s24
        %v404 = vld [vmem:[#allocation2] sm:$0xff]
        %v405 = vld [vmem:[#allocation4] sm:$0xff]
        %v406 = vld [vmem:[#allocation4 + $0x8] sm:$0xff]
        %v407 = vld [vmem:[#allocation4 + $0x10] sm:$0xff]
        %v408 = vld [vmem:[#allocation4 + $0x18] sm:$0xff]
        %v409 = vld [vmem:[#allocation4 + $0x20] sm:$0xff]
        %v410 = vld [vmem:[#allocation4 + $0x28] sm:$0xff]
        %v411 = vld [vmem:[#allocation4 + $0x30] sm:$0xff]
        %v412 = vld [vmem:[#allocation4 + $0x38] sm:$0xff]
        %v413 = vld [vmem:[#allocation4 + $0x40] sm:$0xff]
        %v414 = vld [vmem:[#allocation4 + $0x48] sm:$0xff]
        %v415 = vld [vmem:[#allocation4 + $0x50] sm:$0xff]
        %v416 = vld [vmem:[#allocation4 + $0x58] sm:$0xff]
        %v417 = vld [vmem:[#allocation4 + $0x60] sm:$0xff]
        %v418 = vld [vmem:[#allocation4 + $0x68] sm:$0xff]
        %v419 = vld [vmem:[#allocation4 + $0x70] sm:$0xff]
        %v420 = vld [vmem:[#allocation4 + $0x78] sm:$0xff]
        %v421 = vld [vmem:[#allocation4 + $0x80] sm:$0xff]
        %v422 = vld [vmem:[#allocation4 + $0x88] sm:$0xff]
        %v423 = vld [vmem:[#allocation4 + $0x90] sm:$0xff]
        %v424 = vld [vmem:[#allocation4 + $0x98] sm:$0xff]
        %v425 = vld [vmem:[#allocation4 + $0xa0] sm:$0xff]
        %v426 = vld [vmem:[#allocation4 + $0xa8] sm:$0xff]
        %v427 = vld [vmem:[#allocation4 + $0xb0] sm:$0xff]
        %v428 = vld [vmem:[#allocation4 + $0xb8] sm:$0xff]
        %v429 = vld [vmem:[#allocation4 + $0xc0] sm:$0xff]
        %v430 = vld [vmem:[#allocation4 + $0xc8] sm:$0xff]
        %v431 = vld [vmem:[#allocation4 + $0xd0] sm:$0xff]
        %v432 = vld [vmem:[#allocation4 + $0xd8] sm:$0xff]
        %v433 = vld [vmem:[#allocation4 + $0xe0] sm:$0xff]
        %v434 = vld [vmem:[#allocation4 + $0xe8] sm:$0xff]
        %v435 = vld [vmem:[#allocation4 + $0xf0] sm:$0xff]
        %v436 = vld [vmem:[#allocation4 + $0xf8] sm:$0xff]
        %v437 = vld [vmem:[#allocation4 + $0x100] sm:$0xff]
        %v438 = vld [vmem:[#allocation4 + $0x108] sm:$0xff]
        %v439 = vld [vmem:[#allocation4 + $0x110] sm:$0xff]
        %v440 = vld [vmem:[#allocation4 + $0x118] sm:$0xff]
        %v441 = vld [vmem:[#allocation4 + $0x120] sm:$0xff]
        %v442 = vld [vmem:[#allocation4 + $0x128] sm:$0xff]
        %v443 = vld [vmem:[#allocation4 + $0x130] sm:$0xff]
        %v444 = vld [vmem:[#allocation4 + $0x138] sm:$0xff]
        %v445 = vld [vmem:[#allocation4 + $0x140] sm:$0xff]
        %v446 = vld [vmem:[#allocation4 + $0x148] sm:$0xff]
        %v447 = vld [vmem:[#allocation4 + $0x150] sm:$0xff]
        %v448 = vld [vmem:[#allocation4 + $0x158] sm:$0xff]
        %v449 = vld [vmem:[#allocation4 + $0x160] sm:$0xff]
        %v450 = vld [vmem:[#allocation4 + $0x168] sm:$0xff]
        %v451 = vld [vmem:[#allocation4 + $0x170] sm:$0xff]
        %v452 = vld [vmem:[#allocation4 + $0x178] sm:$0xff]
        %v453 = vld [vmem:[#allocation4 + $0x180] sm:$0xff]
        %v454 = vld [vmem:[#allocation4 + $0x188] sm:$0xff]
        %v455 = vld [vmem:[#allocation4 + $0x190] sm:$0xff]
        %v456 = vld [vmem:[#allocation4 + $0x198] sm:$0xff]
        %v457 = vld [vmem:[#allocation4 + $0x1a0] sm:$0xff]
        %v458 = vld [vmem:[#allocation4 + $0x1a8] sm:$0xff]
        %v459 = vld [vmem:[#allocation4 + $0x1b0] sm:$0xff]
        %v460 = vld [vmem:[#allocation4 + $0x1b8] sm:$0xff]
        %v461 = vld [vmem:[#allocation4 + $0x1c0] sm:$0xff]
        %v462 = vld [vmem:[#allocation4 + $0x1c8] sm:$0xff]
        %v463 = vld [vmem:[#allocation4 + $0x1d0] sm:$0xff]
        %v464 = vld [vmem:[#allocation4 + $0x1d8] sm:$0xff]
        %v465 = vld [vmem:[#allocation4 + $0x1e0] sm:$0xff]
        %v466 = vld [vmem:[#allocation4 + $0x1e8] sm:$0xff]
        %v467 = vld [vmem:[#allocation4 + $0x1f0] sm:$0xff]
        %v468 = vld [vmem:[#allocation4 + $0x1f8] sm:$0xff]
        %v469 = vld [vmem:[#allocation6] ss:$4 sm:$0xf]
        %v471 = vlaneseq
        %v472 = vshrl.u32 %v471, 7
        %v473 = vsub.s32 0, %v472
        %v474 = vrot.slane %v469, %v473
        %v475 = vlaneseq
        %v476 = vshrl.u32 %v475, 7
        %v477 = vsub.s32 1, %v476
        %v478 = vrot.slane %v469, %v477
        %v479 = vlaneseq
        %v480 = vshrl.u32 %v479, 7
        %v481 = vsub.s32 2, %v480
        %v482 = vrot.slane %v469, %v481
        %v483 = vlaneseq
        %v484 = vshrl.u32 %v483, 7
        %v485 = vsub.s32 3, %v484
        %v486 = vrot.slane %v469, %v485
        %491 = vmatprep.subr.mxu0 %v406
        %492 = vmatpush1.msra.mxu0 %v405
        %493 = vmatprep.subr.mxu0 %v410
        %494 = vmatpush1.msra.mxu0 %v409
        %495 = vmatprep.subr.mxu0 %v414
        %496 = vmatpush1.msra.mxu0 %v413
        %497 = vmatprep.subr.mxu0 %v418
        %498 = vmatpush1.msra.mxu0 %v417
        %499 = vmatprep.subr.mxu0 %v422
        %500 = vmatpush1.msra.mxu0 %v421
        %501 = vmatprep.subr.mxu0 %v426
        %502 = vmatpush1.msra.mxu0 %v425
        %503 = vmatprep.subr.mxu0 %v430
        %504 = vmatpush1.msra.mxu0 %v429
        %505 = vmatprep.subr.mxu0 %v434
        %506 = vmatpush1.msra.mxu0 %v433
        %507 = vmatprep.subr.mxu0 %v438
        %508 = vmatpush1.msra.mxu0 %v437
        %509 = vmatprep.subr.mxu0 %v442
        %510 = vmatpush1.msra.mxu0 %v441
        %511 = vmatprep.subr.mxu0 %v446
        %512 = vmatpush1.msra.mxu0 %v445
        %513 = vmatprep.subr.mxu0 %v450
        %514 = vmatpush1.msra.mxu0 %v449
        %515 = vmatprep.subr.mxu0 %v454
        %516 = vmatpush1.msra.mxu0 %v453
        %517 = vmatprep.subr.mxu0 %v458
        %518 = vmatpush1.msra.mxu0 %v457
        %519 = vmatprep.subr.mxu0 %v462
        %520 = vmatpush1.msra.mxu0 %v461
        %521 = vmatprep.subr.mxu0 %v466
        %522 = vmatpush1.msra.mxu0 %v465
        %523 = vmatprep.subr.mxu0 0.0
        %524 = vmatpush1.msra.mxu0 0.0
        %525 = vmatprep.subr.mxu0 0.0
        %526 = vmatpush1.msra.mxu0 0.0
        %527 = vmatprep.subr.mxu0 0.0
        %528 = vmatpush1.msra.mxu0 0.0
        %529 = vmatprep.subr.mxu0 0.0
        %530 = vmatpush1.msra.mxu0 0.0
        %531 = vmatprep.subr.mxu0 0.0
        %532 = vmatpush1.msra.mxu0 0.0
        %533 = vmatprep.subr.mxu0 0.0
        %534 = vmatpush1.msra.mxu0 0.0
        %535 = vmatprep.subr.mxu0 0.0
        %536 = vmatpush1.msra.mxu0 0.0
        %537 = vmatprep.subr.mxu0 0.0
        %538 = vmatpush1.msra.mxu0 0.0
        %539 = vmatprep.subr.mxu0 0.0
        %540 = vmatpush1.msra.mxu0 0.0
        %541 = vmatprep.subr.mxu0 0.0
        %542 = vmatpush1.msra.mxu0 0.0
        %543 = vmatprep.subr.mxu0 0.0
        %544 = vmatpush1.msra.mxu0 0.0
        %545 = vmatprep.subr.mxu0 0.0
        %546 = vmatpush1.msra.mxu0 0.0
        %547 = vmatprep.subr.mxu0 0.0
        %548 = vmatpush1.msra.mxu0 0.0
        %549 = vmatprep.subr.mxu0 0.0
        %550 = vmatpush1.msra.mxu0 0.0
        %551 = vmatprep.subr.mxu0 0.0
        %552 = vmatpush1.msra.mxu0 0.0
        %553 = vmatprep.subr.mxu0 0.0
        %554 = vmatpush1.msra.mxu0 0.0
        %555 = vmatprep.mubr.f32.mxu0 0.0
        %556 = vmatmul.mubr.f32.gmra.mrb[0].mxu0 %v404
        %v557 = vpop.f32.mrb[0].mxu0
        %v558 = vadd.f32 %v474, %v557
        %v559 = vpop.f32.mrb[0].mxu0
        %v560 = vadd.f32 %v478, %v559
        %561 = vdwg.mxu0
        %562 = vmatprep.subr.mxu0 %v408
        %563 = vmatpush1.msra.mxu0 %v407
        %564 = vmatprep.subr.mxu0 %v412
        %565 = vmatpush1.msra.mxu0 %v411
        %566 = vmatprep.subr.mxu0 %v416
        %567 = vmatpush1.msra.mxu0 %v415
        %568 = vmatprep.subr.mxu0 %v420
        %569 = vmatpush1.msra.mxu0 %v419
        %570 = vmatprep.subr.mxu0 %v424
        %571 = vmatpush1.msra.mxu0 %v423
        %572 = vmatprep.subr.mxu0 %v428
        %573 = vmatpush1.msra.mxu0 %v427
        %574 = vmatprep.subr.mxu0 %v432
        %575 = vmatpush1.msra.mxu0 %v431
        %576 = vmatprep.subr.mxu0 %v436
        %577 = vmatpush1.msra.mxu0 %v435
        %578 = vmatprep.subr.mxu0 %v440
        %579 = vmatpush1.msra.mxu0 %v439
        %580 = vmatprep.subr.mxu0 %v444
        %581 = vmatpush1.msra.mxu0 %v443
        %582 = vmatprep.subr.mxu0 %v448
        %583 = vmatpush1.msra.mxu0 %v447
        %584 = vmatprep.subr.mxu0 %v452
        %585 = vmatpush1.msra.mxu0 %v451
        %586 = vmatprep.subr.mxu0 %v456
        %587 = vmatpush1.msra.mxu0 %v455
        %588 = vmatprep.subr.mxu0 %v460
        %589 = vmatpush1.msra.mxu0 %v459
        %590 = vmatprep.subr.mxu0 %v464
        %591 = vmatpush1.msra.mxu0 %v463
        %592 = vmatprep.subr.mxu0 %v468
        %593 = vmatpush1.msra.mxu0 %v467
        %594 = vmatprep.subr.mxu0 0.0
        %595 = vmatpush1.msra.mxu0 0.0
        %596 = vmatprep.subr.mxu0 0.0
        %597 = vmatpush1.msra.mxu0 0.0
        %598 = vmatprep.subr.mxu0 0.0
        %599 = vmatpush1.msra.mxu0 0.0
        %600 = vmatprep.subr.mxu0 0.0
        %601 = vmatpush1.msra.mxu0 0.0
        %602 = vmatprep.subr.mxu0 0.0
        %603 = vmatpush1.msra.mxu0 0.0
        %604 = vmatprep.subr.mxu0 0.0
        %605 = vmatpush1.msra.mxu0 0.0
        %606 = vmatprep.subr.mxu0 0.0
        %607 = vmatpush1.msra.mxu0 0.0
        %608 = vmatprep.subr.mxu0 0.0
        %609 = vmatpush1.msra.mxu0 0.0
        %610 = vmatprep.subr.mxu0 0.0
        %611 = vmatpush1.msra.mxu0 0.0
        %612 = vmatprep.subr.mxu0 0.0
        %613 = vmatpush1.msra.mxu0 0.0
        %614 = vmatprep.subr.mxu0 0.0
        %615 = vmatpush1.msra.mxu0 0.0
        %616 = vmatprep.subr.mxu0 0.0
        %617 = vmatpush1.msra.mxu0 0.0
        %618 = vmatprep.subr.mxu0 0.0
        %619 = vmatpush1.msra.mxu0 0.0
        %620 = vmatprep.subr.mxu0 0.0
        %621 = vmatpush1.msra.mxu0 0.0
        %622 = vmatprep.subr.mxu0 0.0
        %623 = vmatpush1.msra.mxu0 0.0
        %624 = vmatprep.subr.mxu0 0.0
        %625 = vmatpush1.msra.mxu0 0.0
        %626 = vmatprep.mubr.f32.mxu0 0.0
        %627 = vmatmul.mubr.f32.gmra.mrb[0].mxu0 %v404
        %v628 = vpop.f32.mrb[0].mxu0
        %v629 = vadd.f32 %v482, %v628
        %v630 = vpop.f32.mrb[0].mxu0
        %v631 = vadd.f32 %v486, %v630
        %632 = vdwg.mxu0
        %s633 = scalar_lea.vmem [#allocation6], 1
        %v634 = vld [vmem:[%s633] ss:$4 sm:$0xf]
        %s635 = scalar_lea.vmem [#allocation6], 2
        %v636 = vld [vmem:[%s635] ss:$4 sm:$0xf]
        %v637 = vrot.slane %v558, 4
        %v638 = vadd.f32 %v558, %v637
        %v639 = vrot.slane %v638, 2
        %v640 = vadd.f32 %v638, %v639
        %v641 = vrot.slane %v640, 1
        %v642 = vadd.f32 %v640, %v641
        %v643 = vrot.slane %v560, 4
        %v644 = vadd.f32 %v560, %v643
        %v645 = vrot.slane %v644, 2
        %v646 = vadd.f32 %v644, %v645
        %v647 = vrot.slane %v646, 1
        %v648 = vadd.f32 %v646, %v647
        %v649 = vrot.slane %v629, 4
        %v650 = vadd.f32 %v629, %v649
        %v651 = vrot.slane %v650, 2
        %v652 = vadd.f32 %v650, %v651
        %v653 = vrot.slane %v652, 1
        %v654 = vadd.f32 %v652, %v653
        %v655 = vrot.slane %v631, 4
        %v656 = vadd.f32 %v631, %v655
        %v657 = vrot.slane %v656, 2
        %v658 = vadd.f32 %v656, %v657
        %v659 = vrot.slane %v658, 1
        %v660 = vadd.f32 %v658, %v659
        %v661 = vrcp.pop 8.0
        %v662 = vmul.f32 %v642, %v661
        %v663 = vmul.f32 %v648, %v661
        %v664 = vmul.f32 %v654, %v661
        %v665 = vmul.f32 %v660, %v661
        %v666 = vsub.f32 %v558, %v662
        %v667 = vsub.f32 %v560, %v663
        %v668 = vsub.f32 %v629, %v664
        %v669 = vsub.f32 %v631, %v665
        %v670 = vmul.f32 %v666, %v666
        %v671 = vmul.f32 %v667, %v667
        %v672 = vmul.f32 %v668, %v668
        %v673 = vmul.f32 %v669, %v669
        %v674 = vrot.slane %v670, 4
        %v675 = vadd.f32 %v670, %v674
        %v676 = vrot.slane %v675, 2
        %v677 = vadd.f32 %v675, %v676
        %v678 = vrot.slane %v677, 1
        %v679 = vadd.f32 %v677, %v678
        %v680 = vrot.slane %v671, 4
        %v681 = vadd.f32 %v671, %v680
        %v682 = vrot.slane %v681, 2
        %v683 = vadd.f32 %v681, %v682
        %v684 = vrot.slane %v683, 1
        %v685 = vadd.f32 %v683, %v684
        %v686 = vrot.slane %v672, 4
        %v687 = vadd.f32 %v672, %v686
        %v688 = vrot.slane %v687, 2
        %v689 = vadd.f32 %v687, %v688
        %v690 = vrot.slane %v689, 1
        %v691 = vadd.f32 %v689, %v690
        %v692 = vrot.slane %v673, 4
        %v693 = vadd.f32 %v673, %v692
        %v694 = vrot.slane %v693, 2
        %v695 = vadd.f32 %v693, %v694
        %v696 = vrot.slane %v695, 1
        %v697 = vadd.f32 %v695, %v696
        %v698 = vmul.f32 %v679, %v661
        %v699 = vmul.f32 %v685, %v661
        %v700 = vmul.f32 %v691, %v661
        %v701 = vmul.f32 %v697, %v661
        %v702 = vadd.f32 %v698, 1e-05
        %v703 = vadd.f32 %v699, 1e-05
        %v704 = vadd.f32 %v700, 1e-05
        %v705 = vadd.f32 %v701, 1e-05
        %v706 = vrsqrt.pop %v702
        %v707 = vrsqrt.pop %v703
        %v708 = vrsqrt.pop %v704
        %v709 = vrsqrt.pop %v705
        %v710 = vmul.f32 %v666, %v706
        %v711 = vmul.f32 %v667, %v707
        %v712 = vmul.f32 %v668, %v708
        %v713 = vmul.f32 %v669, %v709
        %v715 = vlaneseq
        %v716 = vshrl.u32 %v715, 7
        %v717 = vsub.s32 0, %v716
        %v718 = vrot.slane %v634, %v717
        %v719 = vlaneseq
        %v720 = vshrl.u32 %v719, 7
        %v721 = vsub.s32 1, %v720
        %v722 = vrot.slane %v634, %v721
        %v723 = vlaneseq
        %v724 = vshrl.u32 %v723, 7
        %v725 = vsub.s32 2, %v724
        %v726 = vrot.slane %v634, %v725
        %v727 = vlaneseq
        %v728 = vshrl.u32 %v727, 7
        %v729 = vsub.s32 3, %v728
        %v730 = vrot.slane %v634, %v729
        %v735 = vmul.f32 %v718, %v710
        %v736 = vmul.f32 %v722, %v711
        %v737 = vmul.f32 %v726, %v712
        %v738 = vmul.f32 %v730, %v713
        %v740 = vlaneseq
        %v741 = vshrl.u32 %v740, 7
        %v742 = vsub.s32 0, %v741
        %v743 = vrot.slane %v636, %v742
        %v744 = vlaneseq
        %v745 = vshrl.u32 %v744, 7
        %v746 = vsub.s32 1, %v745
        %v747 = vrot.slane %v636, %v746
        %v748 = vlaneseq
        %v749 = vshrl.u32 %v748, 7
        %v750 = vsub.s32 2, %v749
        %v751 = vrot.slane %v636, %v750
        %v752 = vlaneseq
        %v753 = vshrl.u32 %v752, 7
        %v754 = vsub.s32 3, %v753
        %v755 = vrot.slane %v636, %v754
        %v760 = vadd.f32 %v735, %v743
        %v761 = vadd.f32 %v736, %v747
        %v762 = vadd.f32 %v737, %v751
        %v763 = vadd.f32 %v738, %v755
        %vm764 = vcmp.gt.f32.partialorder %v760, 0.0
        %vm765 = vcmp.gt.f32.partialorder %v761, 0.0
        %vm766 = vcmp.gt.f32.partialorder %v762, 0.0
        %vm767 = vcmp.gt.f32.partialorder %v763, 0.0
        %v768 = vmin.f32 %v760, 0.0
        %v769 = vmin.f32 %v761, 0.0
        %v770 = vmin.f32 %v762, 0.0
        %v771 = vmin.f32 %v763, 0.0
        %v772 = vmul.f32 %v768, 1.442695
        %v773 = vpow.pop %v772
        %v774 = vmul.f32 %v769, 1.442695
        %v775 = vpow.pop %v774
        %v776 = vmul.f32 %v770, 1.442695
        %v777 = vpow.pop %v776
        %v778 = vmul.f32 %v771, 1.442695
        %v779 = vpow.pop %v778
        %v780 = vsub.f32 %v773, 1.0
        %v781 = vsub.f32 %v775, 1.0
        %v782 = vsub.f32 %v777, 1.0
        %v783 = vsub.f32 %v779, 1.0
        %v784 = vsel %vm764, %v760, %v780
        %v785 = vsel %vm765, %v761, %v781
        %v786 = vsel %vm766, %v762, %v782
        %v787 = vsel %vm767, %v763, %v783
        %v788 = vld [vmem:[#allocation7] sm:$0xff]
        %v789 = vld [vmem:[#allocation7 + $0x8] sm:$0xff]
        %v790 = vld [vmem:[#allocation7 + $0x10] sm:$0xff]
        %v791 = vld [vmem:[#allocation7 + $0x18] sm:$0xff]
        %v792 = vld [vmem:[#allocation7 + $0x20] sm:$0xff]
        %v793 = vld [vmem:[#allocation7 + $0x28] sm:$0xff]
        %v794 = vld [vmem:[#allocation7 + $0x30] sm:$0xff]
        %v795 = vld [vmem:[#allocation7 + $0x38] sm:$0xff]
        %v796 = vld [vmem:[#allocation7 + $0x40] sm:$0xff]
        %v797 = vld [vmem:[#allocation7 + $0x48] sm:$0xff]
        %v798 = vld [vmem:[#allocation7 + $0x50] sm:$0xff]
        %v799 = vld [vmem:[#allocation7 + $0x58] sm:$0xff]
        %v800 = vld [vmem:[#allocation7 + $0x60] sm:$0xff]
        %v801 = vld [vmem:[#allocation7 + $0x68] sm:$0xff]
        %v802 = vld [vmem:[#allocation7 + $0x70] sm:$0xff]
        %v803 = vld [vmem:[#allocation7 + $0x78] sm:$0xff]
        %v804 = vld [vmem:[#allocation7 + $0x80] sm:$0xff]
        %v805 = vld [vmem:[#allocation7 + $0x88] sm:$0xff]
        %v806 = vld [vmem:[#allocation7 + $0x90] sm:$0xff]
        %v807 = vld [vmem:[#allocation7 + $0x98] sm:$0xff]
        %v808 = vld [vmem:[#allocation7 + $0xa0] sm:$0xff]
        %v809 = vld [vmem:[#allocation7 + $0xa8] sm:$0xff]
        %v810 = vld [vmem:[#allocation7 + $0xb0] sm:$0xff]
        %v811 = vld [vmem:[#allocation7 + $0xb8] sm:$0xff]
        %v812 = vld [vmem:[#allocation7 + $0xc0] sm:$0xff]
        %v813 = vld [vmem:[#allocation7 + $0xc8] sm:$0xff]
        %v814 = vld [vmem:[#allocation7 + $0xd0] sm:$0xff]
        %v815 = vld [vmem:[#allocation7 + $0xd8] sm:$0xff]
        %v816 = vld [vmem:[#allocation7 + $0xe0] sm:$0xff]
        %v817 = vld [vmem:[#allocation7 + $0xe8] sm:$0xff]
        %v818 = vld [vmem:[#allocation7 + $0xf0] sm:$0xff]
        %v819 = vld [vmem:[#allocation7 + $0xf8] sm:$0xff]
        %v820 = vld [vmem:[#allocation7 + $0x100] sm:$0xff]
        %v821 = vld [vmem:[#allocation7 + $0x108] sm:$0xff]
        %v822 = vld [vmem:[#allocation7 + $0x110] sm:$0xff]
        %v823 = vld [vmem:[#allocation7 + $0x118] sm:$0xff]
        %v824 = vld [vmem:[#allocation7 + $0x120] sm:$0xff]
        %v825 = vld [vmem:[#allocation7 + $0x128] sm:$0xff]
        %v826 = vld [vmem:[#allocation7 + $0x130] sm:$0xff]
        %v827 = vld [vmem:[#allocation7 + $0x138] sm:$0xff]
        %v828 = vld [vmem:[#allocation7 + $0x140] sm:$0xff]
        %v829 = vld [vmem:[#allocation7 + $0x148] sm:$0xff]
        %v830 = vld [vmem:[#allocation7 + $0x150] sm:$0xff]
        %v831 = vld [vmem:[#allocation7 + $0x158] sm:$0xff]
        %v832 = vld [vmem:[#allocation7 + $0x160] sm:$0xff]
        %v833 = vld [vmem:[#allocation7 + $0x168] sm:$0xff]
        %v834 = vld [vmem:[#allocation7 + $0x170] sm:$0xff]
        %v835 = vld [vmem:[#allocation7 + $0x178] sm:$0xff]
        %v836 = vld [vmem:[#allocation7 + $0x180] sm:$0xff]
        %v837 = vld [vmem:[#allocation7 + $0x188] sm:$0xff]
        %v838 = vld [vmem:[#allocation7 + $0x190] sm:$0xff]
        %v839 = vld [vmem:[#allocation7 + $0x198] sm:$0xff]
        %v840 = vld [vmem:[#allocation7 + $0x1a0] sm:$0xff]
        %v841 = vld [vmem:[#allocation7 + $0x1a8] sm:$0xff]
        %v842 = vld [vmem:[#allocation7 + $0x1b0] sm:$0xff]
        %v843 = vld [vmem:[#allocation7 + $0x1b8] sm:$0xff]
        %v844 = vld [vmem:[#allocation7 + $0x1c0] sm:$0xff]
        %v845 = vld [vmem:[#allocation7 + $0x1c8] sm:$0xff]
        %v846 = vld [vmem:[#allocation7 + $0x1d0] sm:$0xff]
        %v847 = vld [vmem:[#allocation7 + $0x1d8] sm:$0xff]
        %v848 = vld [vmem:[#allocation7 + $0x1e0] sm:$0xff]
        %v849 = vld [vmem:[#allocation7 + $0x1e8] sm:$0xff]
        %v850 = vld [vmem:[#allocation7 + $0x1f0] sm:$0xff]
        %v851 = vld [vmem:[#allocation7 + $0x1f8] sm:$0xff]
        %v852 = vld [vmem:[#allocation7 + $0x200] sm:$0xff]
        %v853 = vld [vmem:[#allocation7 + $0x208] sm:$0xff]
        %v854 = vld [vmem:[#allocation7 + $0x210] sm:$0xff]
        %v855 = vld [vmem:[#allocation7 + $0x218] sm:$0xff]
        %v856 = vld [vmem:[#allocation7 + $0x220] sm:$0xff]
        %v857 = vld [vmem:[#allocation7 + $0x228] sm:$0xff]
        %v858 = vld [vmem:[#allocation7 + $0x230] sm:$0xff]
        %v859 = vld [vmem:[#allocation7 + $0x238] sm:$0xff]
        %v860 = vld [vmem:[#allocation7 + $0x240] sm:$0xff]
        %v861 = vld [vmem:[#allocation7 + $0x248] sm:$0xff]
        %v862 = vld [vmem:[#allocation7 + $0x250] sm:$0xff]
        %v863 = vld [vmem:[#allocation7 + $0x258] sm:$0xff]
        %v864 = vld [vmem:[#allocation7 + $0x260] sm:$0xff]
        %v865 = vld [vmem:[#allocation7 + $0x268] sm:$0xff]
        %v866 = vld [vmem:[#allocation7 + $0x270] sm:$0xff]
        %v867 = vld [vmem:[#allocation7 + $0x278] sm:$0xff]
        %v868 = vld [vmem:[#allocation7 + $0x280] sm:$0xff]
        %v869 = vld [vmem:[#allocation7 + $0x288] sm:$0xff]
        %v870 = vld [vmem:[#allocation7 + $0x290] sm:$0xff]
        %v871 = vld [vmem:[#allocation7 + $0x298] sm:$0xff]
        %v872 = vld [vmem:[#allocation7 + $0x2a0] sm:$0xff]
        %v873 = vld [vmem:[#allocation7 + $0x2a8] sm:$0xff]
        %v874 = vld [vmem:[#allocation7 + $0x2b0] sm:$0xff]
        %v875 = vld [vmem:[#allocation7 + $0x2b8] sm:$0xff]
        %v876 = vld [vmem:[#allocation7 + $0x2c0] sm:$0xff]
        %v877 = vld [vmem:[#allocation7 + $0x2c8] sm:$0xff]
        %v878 = vld [vmem:[#allocation7 + $0x2d0] sm:$0xff]
        %v879 = vld [vmem:[#allocation7 + $0x2d8] sm:$0xff]
        %v880 = vld [vmem:[#allocation7 + $0x2e0] sm:$0xff]
        %v881 = vld [vmem:[#allocation7 + $0x2e8] sm:$0xff]
        %v882 = vld [vmem:[#allocation7 + $0x2f0] sm:$0xff]
        %v883 = vld [vmem:[#allocation7 + $0x2f8] sm:$0xff]
        %v884 = vld [vmem:[#allocation7 + $0x300] sm:$0xff]
        %v885 = vld [vmem:[#allocation7 + $0x308] sm:$0xff]
        %v886 = vld [vmem:[#allocation7 + $0x310] sm:$0xff]
        %v887 = vld [vmem:[#allocation7 + $0x318] sm:$0xff]
        %v888 = vld [vmem:[#allocation7 + $0x320] sm:$0xff]
        %v889 = vld [vmem:[#allocation7 + $0x328] sm:$0xff]
        %v890 = vld [vmem:[#allocation7 + $0x330] sm:$0xff]
        %v891 = vld [vmem:[#allocation7 + $0x338] sm:$0xff]
        %v892 = vld [vmem:[#allocation7 + $0x340] sm:$0xff]
        %v893 = vld [vmem:[#allocation7 + $0x348] sm:$0xff]
        %v894 = vld [vmem:[#allocation7 + $0x350] sm:$0xff]
        %v895 = vld [vmem:[#allocation7 + $0x358] sm:$0xff]
        %v896 = vld [vmem:[#allocation7 + $0x360] sm:$0xff]
        %v897 = vld [vmem:[#allocation7 + $0x368] sm:$0xff]
        %v898 = vld [vmem:[#allocation7 + $0x370] sm:$0xff]
        %v899 = vld [vmem:[#allocation7 + $0x378] sm:$0xff]
        %v900 = vld [vmem:[#allocation7 + $0x380] sm:$0xff]
        %v901 = vld [vmem:[#allocation7 + $0x388] sm:$0xff]
        %v902 = vld [vmem:[#allocation7 + $0x390] sm:$0xff]
        %v903 = vld [vmem:[#allocation7 + $0x398] sm:$0xff]
        %v904 = vld [vmem:[#allocation7 + $0x3a0] sm:$0xff]
        %v905 = vld [vmem:[#allocation7 + $0x3a8] sm:$0xff]
        %v906 = vld [vmem:[#allocation7 + $0x3b0] sm:$0xff]
        %v907 = vld [vmem:[#allocation7 + $0x3b8] sm:$0xff]
        %v908 = vld [vmem:[#allocation7 + $0x3c0] sm:$0xff]
        %v909 = vld [vmem:[#allocation7 + $0x3c8] sm:$0xff]
        %v910 = vld [vmem:[#allocation7 + $0x3d0] sm:$0xff]
        %v911 = vld [vmem:[#allocation7 + $0x3d8] sm:$0xff]
        %v912 = vld [vmem:[#allocation7 + $0x3e0] sm:$0xff]
        %v913 = vld [vmem:[#allocation7 + $0x3e8] sm:$0xff]
        %v914 = vld [vmem:[#allocation7 + $0x3f0] sm:$0xff]
        %v915 = vld [vmem:[#allocation7 + $0x3f8] sm:$0xff]
        %v916 = vld [vmem:[#allocation7 + $0x400] sm:$0xff]
        %v917 = vld [vmem:[#allocation7 + $0x408] sm:$0xff]
        %v918 = vld [vmem:[#allocation7 + $0x410] sm:$0xff]
        %v919 = vld [vmem:[#allocation7 + $0x418] sm:$0xff]
        %v920 = vld [vmem:[#allocation7 + $0x420] sm:$0xff]
        %v921 = vld [vmem:[#allocation7 + $0x428] sm:$0xff]
        %v922 = vld [vmem:[#allocation7 + $0x430] sm:$0xff]
        %v923 = vld [vmem:[#allocation7 + $0x438] sm:$0xff]
        %v924 = vld [vmem:[#allocation7 + $0x440] sm:$0xff]
        %v925 = vld [vmem:[#allocation7 + $0x448] sm:$0xff]
        %v926 = vld [vmem:[#allocation7 + $0x450] sm:$0xff]
        %v927 = vld [vmem:[#allocation7 + $0x458] sm:$0xff]
        %v928 = vld [vmem:[#allocation7 + $0x460] sm:$0xff]
        %v929 = vld [vmem:[#allocation7 + $0x468] sm:$0xff]
        %v930 = vld [vmem:[#allocation7 + $0x470] sm:$0xff]
        %v931 = vld [vmem:[#allocation7 + $0x478] sm:$0xff]
        %v932 = vld [vmem:[#allocation7 + $0x480] sm:$0xff]
        %v933 = vld [vmem:[#allocation7 + $0x488] sm:$0xff]
        %v934 = vld [vmem:[#allocation7 + $0x490] sm:$0xff]
        %v935 = vld [vmem:[#allocation7 + $0x498] sm:$0xff]
        %v936 = vld [vmem:[#allocation7 + $0x4a0] sm:$0xff]
        %v937 = vld [vmem:[#allocation7 + $0x4a8] sm:$0xff]
        %v938 = vld [vmem:[#allocation7 + $0x4b0] sm:$0xff]
        %v939 = vld [vmem:[#allocation7 + $0x4b8] sm:$0xff]
        %v940 = vld [vmem:[#allocation7 + $0x4c0] sm:$0xff]
        %v941 = vld [vmem:[#allocation7 + $0x4c8] sm:$0xff]
        %v942 = vld [vmem:[#allocation7 + $0x4d0] sm:$0xff]
        %v943 = vld [vmem:[#allocation7 + $0x4d8] sm:$0xff]
        %v944 = vld [vmem:[#allocation7 + $0x4e0] sm:$0xff]
        %v945 = vld [vmem:[#allocation7 + $0x4e8] sm:$0xff]
        %v946 = vld [vmem:[#allocation7 + $0x4f0] sm:$0xff]
        %v947 = vld [vmem:[#allocation7 + $0x4f8] sm:$0xff]
        %v948 = vld [vmem:[#allocation7 + $0x500] sm:$0xff]
        %v949 = vld [vmem:[#allocation7 + $0x508] sm:$0xff]
        %v950 = vld [vmem:[#allocation7 + $0x510] sm:$0xff]
        %v951 = vld [vmem:[#allocation7 + $0x518] sm:$0xff]
        %v952 = vld [vmem:[#allocation7 + $0x520] sm:$0xff]
        %v953 = vld [vmem:[#allocation7 + $0x528] sm:$0xff]
        %v954 = vld [vmem:[#allocation7 + $0x530] sm:$0xff]
        %v955 = vld [vmem:[#allocation7 + $0x538] sm:$0xff]
        %v956 = vld [vmem:[#allocation7 + $0x540] sm:$0xff]
        %v957 = vld [vmem:[#allocation7 + $0x548] sm:$0xff]
        %v958 = vld [vmem:[#allocation7 + $0x550] sm:$0xff]
        %v959 = vld [vmem:[#allocation7 + $0x558] sm:$0xff]
        %v960 = vld [vmem:[#allocation7 + $0x560] sm:$0xff]
        %v961 = vld [vmem:[#allocation7 + $0x568] sm:$0xff]
        %v962 = vld [vmem:[#allocation7 + $0x570] sm:$0xff]
        %v963 = vld [vmem:[#allocation7 + $0x578] sm:$0xff]
        %v964 = vld [vmem:[#allocation7 + $0x580] sm:$0xff]
        %v965 = vld [vmem:[#allocation7 + $0x588] sm:$0xff]
        %v966 = vld [vmem:[#allocation7 + $0x590] sm:$0xff]
        %v967 = vld [vmem:[#allocation7 + $0x598] sm:$0xff]
        %v968 = vld [vmem:[#allocation7 + $0x5a0] sm:$0xff]
        %v969 = vld [vmem:[#allocation7 + $0x5a8] sm:$0xff]
        %v970 = vld [vmem:[#allocation7 + $0x5b0] sm:$0xff]
        %v971 = vld [vmem:[#allocation7 + $0x5b8] sm:$0xff]
        %v972 = vld [vmem:[#allocation7 + $0x5c0] sm:$0xff]
        %v973 = vld [vmem:[#allocation7 + $0x5c8] sm:$0xff]
        %v974 = vld [vmem:[#allocation7 + $0x5d0] sm:$0xff]
        %v975 = vld [vmem:[#allocation7 + $0x5d8] sm:$0xff]
        %v976 = vld [vmem:[#allocation7 + $0x5e0] sm:$0xff]
        %v977 = vld [vmem:[#allocation7 + $0x5e8] sm:$0xff]
        %v978 = vld [vmem:[#allocation7 + $0x5f0] sm:$0xff]
        %v979 = vld [vmem:[#allocation7 + $0x5f8] sm:$0xff]
        %v980 = vld [vmem:[#allocation7 + $0x600] sm:$0xff]
        %v981 = vld [vmem:[#allocation7 + $0x608] sm:$0xff]
        %v982 = vld [vmem:[#allocation7 + $0x610] sm:$0xff]
        %v983 = vld [vmem:[#allocation7 + $0x618] sm:$0xff]
        %v984 = vld [vmem:[#allocation7 + $0x620] sm:$0xff]
        %v985 = vld [vmem:[#allocation7 + $0x628] sm:$0xff]
        %v986 = vld [vmem:[#allocation7 + $0x630] sm:$0xff]
        %v987 = vld [vmem:[#allocation7 + $0x638] sm:$0xff]
        %v988 = vld [vmem:[#allocation7 + $0x640] sm:$0xff]
        %v989 = vld [vmem:[#allocation7 + $0x648] sm:$0xff]
        %v990 = vld [vmem:[#allocation7 + $0x650] sm:$0xff]
        %v991 = vld [vmem:[#allocation7 + $0x658] sm:$0xff]
        %v992 = vld [vmem:[#allocation7 + $0x660] sm:$0xff]
        %v993 = vld [vmem:[#allocation7 + $0x668] sm:$0xff]
        %v994 = vld [vmem:[#allocation7 + $0x670] sm:$0xff]
        %v995 = vld [vmem:[#allocation7 + $0x678] sm:$0xff]
        %v996 = vld [vmem:[#allocation7 + $0x680] sm:$0xff]
        %v997 = vld [vmem:[#allocation7 + $0x688] sm:$0xff]
        %v998 = vld [vmem:[#allocation7 + $0x690] sm:$0xff]
        %v999 = vld [vmem:[#allocation7 + $0x698] sm:$0xff]
        %v1000 = vld [vmem:[#allocation7 + $0x6a0] sm:$0xff]
        %v1001 = vld [vmem:[#allocation7 + $0x6a8] sm:$0xff]
        %v1002 = vld [vmem:[#allocation7 + $0x6b0] sm:$0xff]
        %v1003 = vld [vmem:[#allocation7 + $0x6b8] sm:$0xff]
        %v1004 = vld [vmem:[#allocation7 + $0x6c0] sm:$0xff]
        %v1005 = vld [vmem:[#allocation7 + $0x6c8] sm:$0xff]
        %v1006 = vld [vmem:[#allocation7 + $0x6d0] sm:$0xff]
        %v1007 = vld [vmem:[#allocation7 + $0x6d8] sm:$0xff]
        %v1008 = vld [vmem:[#allocation7 + $0x6e0] sm:$0xff]
        %v1009 = vld [vmem:[#allocation7 + $0x6e8] sm:$0xff]
        %v1010 = vld [vmem:[#allocation7 + $0x6f0] sm:$0xff]
        %v1011 = vld [vmem:[#allocation7 + $0x6f8] sm:$0xff]
        %v1012 = vld [vmem:[#allocation7 + $0x700] sm:$0xff]
        %v1013 = vld [vmem:[#allocation7 + $0x708] sm:$0xff]
        %v1014 = vld [vmem:[#allocation7 + $0x710] sm:$0xff]
        %v1015 = vld [vmem:[#allocation7 + $0x718] sm:$0xff]
        %v1016 = vld [vmem:[#allocation7 + $0x720] sm:$0xff]
        %v1017 = vld [vmem:[#allocation7 + $0x728] sm:$0xff]
        %v1018 = vld [vmem:[#allocation7 + $0x730] sm:$0xff]
        %v1019 = vld [vmem:[#allocation7 + $0x738] sm:$0xff]
        %v1020 = vld [vmem:[#allocation7 + $0x740] sm:$0xff]
        %v1021 = vld [vmem:[#allocation7 + $0x748] sm:$0xff]
        %v1022 = vld [vmem:[#allocation7 + $0x750] sm:$0xff]
        %v1023 = vld [vmem:[#allocation7 + $0x758] sm:$0xff]
        %v1024 = vld [vmem:[#allocation7 + $0x760] sm:$0xff]
        %v1025 = vld [vmem:[#allocation7 + $0x768] sm:$0xff]
        %v1026 = vld [vmem:[#allocation7 + $0x770] sm:$0xff]
        %v1027 = vld [vmem:[#allocation7 + $0x778] sm:$0xff]
        %v1028 = vld [vmem:[#allocation7 + $0x780] sm:$0xff]
        %v1029 = vld [vmem:[#allocation7 + $0x788] sm:$0xff]
        %v1030 = vld [vmem:[#allocation7 + $0x790] sm:$0xff]
        %v1031 = vld [vmem:[#allocation7 + $0x798] sm:$0xff]
        %v1032 = vld [vmem:[#allocation7 + $0x7a0] sm:$0xff]
        %v1033 = vld [vmem:[#allocation7 + $0x7a8] sm:$0xff]
        %v1034 = vld [vmem:[#allocation7 + $0x7b0] sm:$0xff]
        %v1035 = vld [vmem:[#allocation7 + $0x7b8] sm:$0xff]
        %v1036 = vld [vmem:[#allocation7 + $0x7c0] sm:$0xff]
        %v1037 = vld [vmem:[#allocation7 + $0x7c8] sm:$0xff]
        %v1038 = vld [vmem:[#allocation7 + $0x7d0] sm:$0xff]
        %v1039 = vld [vmem:[#allocation7 + $0x7d8] sm:$0xff]
        %v1040 = vld [vmem:[#allocation7 + $0x7e0] sm:$0xff]
        %v1041 = vld [vmem:[#allocation7 + $0x7e8] sm:$0xff]
        %v1042 = vld [vmem:[#allocation7 + $0x7f0] sm:$0xff]
        %v1043 = vld [vmem:[#allocation7 + $0x7f8] sm:$0xff]
        %v1044 = vld [vmem:[#allocation9] ss:$4 sm:$0xf]
        %v1046 = vlaneseq
        %v1047 = vshrl.u32 %v1046, 7
        %v1048 = vsub.s32 0, %v1047
        %v1049 = vrot.slane %v1044, %v1048
        %v1050 = vlaneseq
        %v1051 = vshrl.u32 %v1050, 7
        %v1052 = vsub.s32 1, %v1051
        %v1053 = vrot.slane %v1044, %v1052
        %v1054 = vlaneseq
        %v1055 = vshrl.u32 %v1054, 7
        %v1056 = vsub.s32 2, %v1055
        %v1057 = vrot.slane %v1044, %v1056
        %v1058 = vlaneseq
        %v1059 = vshrl.u32 %v1058, 7
        %v1060 = vsub.s32 3, %v1059
        %v1061 = vrot.slane %v1044, %v1060
        %1066 = vmatprep.subr.mxu0 %v789
        %1067 = vmatpush1.msra.mxu0 %v788
        %1068 = vmatprep.subr.mxu0 %v793
        %1069 = vmatpush1.msra.mxu0 %v792
        %1070 = vmatprep.subr.mxu0 %v797
        %1071 = vmatpush1.msra.mxu0 %v796
        %1072 = vmatprep.subr.mxu0 %v801
        %1073 = vmatpush1.msra.mxu0 %v800
        %1074 = vmatprep.subr.mxu0 %v805
        %1075 = vmatpush1.msra.mxu0 %v804
        %1076 = vmatprep.subr.mxu0 %v809
        %1077 = vmatpush1.msra.mxu0 %v808
        %1078 = vmatprep.subr.mxu0 %v813
        %1079 = vmatpush1.msra.mxu0 %v812
        %1080 = vmatprep.subr.mxu0 %v817
        %1081 = vmatpush1.msra.mxu0 %v816
        %1082 = vmatprep.subr.mxu0 %v821
        %1083 = vmatpush1.msra.mxu0 %v820
        %1084 = vmatprep.subr.mxu0 %v825
        %1085 = vmatpush1.msra.mxu0 %v824
        %1086 = vmatprep.subr.mxu0 %v829
        %1087 = vmatpush1.msra.mxu0 %v828
        %1088 = vmatprep.subr.mxu0 %v833
        %1089 = vmatpush1.msra.mxu0 %v832
        %1090 = vmatprep.subr.mxu0 %v837
        %1091 = vmatpush1.msra.mxu0 %v836
        %1092 = vmatprep.subr.mxu0 %v841
        %1093 = vmatpush1.msra.mxu0 %v840
        %1094 = vmatprep.subr.mxu0 %v845
        %1095 = vmatpush1.msra.mxu0 %v844
        %1096 = vmatprep.subr.mxu0 %v849
        %1097 = vmatpush1.msra.mxu0 %v848
        %1098 = vmatprep.subr.mxu0 %v853
        %1099 = vmatpush1.msra.mxu0 %v852
        %1100 = vmatprep.subr.mxu0 %v857
        %1101 = vmatpush1.msra.mxu0 %v856
        %1102 = vmatprep.subr.mxu0 %v861
        %1103 = vmatpush1.msra.mxu0 %v860
        %1104 = vmatprep.subr.mxu0 %v865
        %1105 = vmatpush1.msra.mxu0 %v864
        %1106 = vmatprep.subr.mxu0 %v869
        %1107 = vmatpush1.msra.mxu0 %v868
        %1108 = vmatprep.subr.mxu0 %v873
        %1109 = vmatpush1.msra.mxu0 %v872
        %1110 = vmatprep.subr.mxu0 %v877
        %1111 = vmatpush1.msra.mxu0 %v876
        %1112 = vmatprep.subr.mxu0 %v881
        %1113 = vmatpush1.msra.mxu0 %v880
        %1114 = vmatprep.subr.mxu0 %v885
        %1115 = vmatpush1.msra.mxu0 %v884
        %1116 = vmatprep.subr.mxu0 %v889
        %1117 = vmatpush1.msra.mxu0 %v888
        %1118 = vmatprep.subr.mxu0 %v893
        %1119 = vmatpush1.msra.mxu0 %v892
        %1120 = vmatprep.subr.mxu0 %v897
        %1121 = vmatpush1.msra.mxu0 %v896
        %1122 = vmatprep.subr.mxu0 %v901
        %1123 = vmatpush1.msra.mxu0 %v900
        %1124 = vmatprep.subr.mxu0 %v905
        %1125 = vmatpush1.msra.mxu0 %v904
        %1126 = vmatprep.subr.mxu0 %v909
        %1127 = vmatpush1.msra.mxu0 %v908
        %1128 = vmatprep.subr.mxu0 %v913
        %1129 = vmatpush1.msra.mxu0 %v912
        %1130 = vmatprep.mubr.f32.mxu0 %v785
        %1131 = vmatmul.mubr.f32.gmra.mrb[0].mxu0 %v784
        %v1132 = vpop.f32.mrb[0].mxu0
        %v1133 = vadd.f32 %v1049, %v1132
        %v1134 = vpop.f32.mrb[0].mxu0
        %v1135 = vadd.f32 %v1053, %v1134
        %1136 = vdwg.mxu0
        %1137 = vmatprep.subr.mxu0 %v917
        %1138 = vmatpush1.msra.mxu0 %v916
        %1139 = vmatprep.subr.mxu0 %v921
        %1140 = vmatpush1.msra.mxu0 %v920
        %1141 = vmatprep.subr.mxu0 %v925
        %1142 = vmatpush1.msra.mxu0 %v924
        %1143 = vmatprep.subr.mxu0 %v929
        %1144 = vmatpush1.msra.mxu0 %v928
        %1145 = vmatprep.subr.mxu0 %v933
        %1146 = vmatpush1.msra.mxu0 %v932
        %1147 = vmatprep.subr.mxu0 %v937
        %1148 = vmatpush1.msra.mxu0 %v936
        %1149 = vmatprep.subr.mxu0 %v941
        %1150 = vmatpush1.msra.mxu0 %v940
        %1151 = vmatprep.subr.mxu0 %v945
        %1152 = vmatpush1.msra.mxu0 %v944
        %1153 = vmatprep.subr.mxu0 %v949
        %1154 = vmatpush1.msra.mxu0 %v948
        %1155 = vmatprep.subr.mxu0 %v953
        %1156 = vmatpush1.msra.mxu0 %v952
        %1157 = vmatprep.subr.mxu0 %v957
        %1158 = vmatpush1.msra.mxu0 %v956
        %1159 = vmatprep.subr.mxu0 %v961
        %1160 = vmatpush1.msra.mxu0 %v960
        %1161 = vmatprep.subr.mxu0 %v965
        %1162 = vmatpush1.msra.mxu0 %v964
        %1163 = vmatprep.subr.mxu0 %v969
        %1164 = vmatpush1.msra.mxu0 %v968
        %1165 = vmatprep.subr.mxu0 %v973
        %1166 = vmatpush1.msra.mxu0 %v972
        %1167 = vmatprep.subr.mxu0 %v977
        %1168 = vmatpush1.msra.mxu0 %v976
        %1169 = vmatprep.subr.mxu0 %v981
        %1170 = vmatpush1.msra.mxu0 %v980
        %1171 = vmatprep.subr.mxu0 %v985
        %1172 = vmatpush1.msra.mxu0 %v984
        %1173 = vmatprep.subr.mxu0 %v989
        %1174 = vmatpush1.msra.mxu0 %v988
        %1175 = vmatprep.subr.mxu0 %v993
        %1176 = vmatpush1.msra.mxu0 %v992
        %1177 = vmatprep.subr.mxu0 %v997
        %1178 = vmatpush1.msra.mxu0 %v996
        %1179 = vmatprep.subr.mxu0 %v1001
        %1180 = vmatpush1.msra.mxu0 %v1000
        %1181 = vmatprep.subr.mxu0 %v1005
        %1182 = vmatpush1.msra.mxu0 %v1004
        %1183 = vmatprep.subr.mxu0 %v1009
        %1184 = vmatpush1.msra.mxu0 %v1008
        %1185 = vmatprep.subr.mxu0 %v1013
        %1186 = vmatpush1.msra.mxu0 %v1012
        %1187 = vmatprep.subr.mxu0 %v1017
        %1188 = vmatpush1.msra.mxu0 %v1016
        %1189 = vmatprep.subr.mxu0 %v1021
        %1190 = vmatpush1.msra.mxu0 %v1020
        %1191 = vmatprep.subr.mxu0 %v1025
        %1192 = vmatpush1.msra.mxu0 %v1024
        %1193 = vmatprep.subr.mxu0 %v1029
        %1194 = vmatpush1.msra.mxu0 %v1028
        %1195 = vmatprep.subr.mxu0 %v1033
        %1196 = vmatpush1.msra.mxu0 %v1032
        %1197 = vmatprep.subr.mxu0 %v1037
        %1198 = vmatpush1.msra.mxu0 %v1036
        %1199 = vmatprep.subr.mxu0 %v1041
        %1200 = vmatpush1.msra.mxu0 %v1040
        %1201 = vmatprep.mubr.f32.mxu0 %v787
        %1202 = vmatmul.mubr.f32.gmra.mrb[0].mxu0 %v786
        %v1203 = vpop.f32.mrb[0].mxu0
        %v1204 = vadd.f32 %v1133, %v1203
        %v1205 = vpop.f32.mrb[0].mxu0
        %v1206 = vadd.f32 %v1135, %v1205
        %1207 = vdwg.mxu0
        %1208 = vmatprep.subr.mxu0 %v791
        %1209 = vmatpush1.msra.mxu0 %v790
        %1210 = vmatprep.subr.mxu0 %v795
        %1211 = vmatpush1.msra.mxu0 %v794
        %1212 = vmatprep.subr.mxu0 %v799
        %1213 = vmatpush1.msra.mxu0 %v798
        %1214 = vmatprep.subr.mxu0 %v803
        %1215 = vmatpush1.msra.mxu0 %v802
        %1216 = vmatprep.subr.mxu0 %v807
        %1217 = vmatpush1.msra.mxu0 %v806
        %1218 = vmatprep.subr.mxu0 %v811
        %1219 = vmatpush1.msra.mxu0 %v810
        %1220 = vmatprep.subr.mxu0 %v815
        %1221 = vmatpush1.msra.mxu0 %v814
        %1222 = vmatprep.subr.mxu0 %v819
        %1223 = vmatpush1.msra.mxu0 %v818
        %1224 = vmatprep.subr.mxu0 %v823
        %1225 = vmatpush1.msra.mxu0 %v822
        %1226 = vmatprep.subr.mxu0 %v827
        %1227 = vmatpush1.msra.mxu0 %v826
        %1228 = vmatprep.subr.mxu0 %v831
        %1229 = vmatpush1.msra.mxu0 %v830
        %1230 = vmatprep.subr.mxu0 %v835
        %1231 = vmatpush1.msra.mxu0 %v834
        %1232 = vmatprep.subr.mxu0 %v839
        %1233 = vmatpush1.msra.mxu0 %v838
        %1234 = vmatprep.subr.mxu0 %v843
        %1235 = vmatpush1.msra.mxu0 %v842
        %1236 = vmatprep.subr.mxu0 %v847
        %1237 = vmatpush1.msra.mxu0 %v846
        %1238 = vmatprep.subr.mxu0 %v851
        %1239 = vmatpush1.msra.mxu0 %v850
        %1240 = vmatprep.subr.mxu0 %v855
        %1241 = vmatpush1.msra.mxu0 %v854
        %1242 = vmatprep.subr.mxu0 %v859
        %1243 = vmatpush1.msra.mxu0 %v858
        %1244 = vmatprep.subr.mxu0 %v863
        %1245 = vmatpush1.msra.mxu0 %v862
        %1246 = vmatprep.subr.mxu0 %v867
        %1247 = vmatpush1.msra.mxu0 %v866
        %1248 = vmatprep.subr.mxu0 %v871
        %1249 = vmatpush1.msra.mxu0 %v870
        %1250 = vmatprep.subr.mxu0 %v875
        %1251 = vmatpush1.msra.mxu0 %v874
        %1252 = vmatprep.subr.mxu0 %v879
        %1253 = vmatpush1.msra.mxu0 %v878
        %1254 = vmatprep.subr.mxu0 %v883
        %1255 = vmatpush1.msra.mxu0 %v882
        %1256 = vmatprep.subr.mxu0 %v887
        %1257 = vmatpush1.msra.mxu0 %v886
        %1258 = vmatprep.subr.mxu0 %v891
        %1259 = vmatpush1.msra.mxu0 %v890
        %1260 = vmatprep.subr.mxu0 %v895
        %1261 = vmatpush1.msra.mxu0 %v894
        %1262 = vmatprep.subr.mxu0 %v899
        %1263 = vmatpush1.msra.mxu0 %v898
        %1264 = vmatprep.subr.mxu0 %v903
        %1265 = vmatpush1.msra.mxu0 %v902
        %1266 = vmatprep.subr.mxu0 %v907
        %1267 = vmatpush1.msra.mxu0 %v906
        %1268 = vmatprep.subr.mxu0 %v911
        %1269 = vmatpush1.msra.mxu0 %v910
        %1270 = vmatprep.subr.mxu0 %v915
        %1271 = vmatpush1.msra.mxu0 %v914
        %1272 = vmatprep.mubr.f32.mxu0 %v785
        %1273 = vmatmul.mubr.f32.gmra.mrb[0].mxu0 %v784
        %v1274 = vpop.f32.mrb[0].mxu0
        %v1275 = vadd.f32 %v1057, %v1274
        %v1276 = vpop.f32.mrb[0].mxu0
        %v1277 = vadd.f32 %v1061, %v1276
        %1278 = vdwg.mxu0
        %1279 = vmatprep.subr.mxu0 %v919
        %1280 = vmatpush1.msra.mxu0 %v918
        %1281 = vmatprep.subr.mxu0 %v923
        %1282 = vmatpush1.msra.mxu0 %v922
        %1283 = vmatprep.subr.mxu0 %v927
        %1284 = vmatpush1.msra.mxu0 %v926
        %1285 = vmatprep.subr.mxu0 %v931
        %1286 = vmatpush1.msra.mxu0 %v930
        %1287 = vmatprep.subr.mxu0 %v935
        %1288 = vmatpush1.msra.mxu0 %v934
        %1289 = vmatprep.subr.mxu0 %v939
        %1290 = vmatpush1.msra.mxu0 %v938
        %1291 = vmatprep.subr.mxu0 %v943
        %1292 = vmatpush1.msra.mxu0 %v942
        %1293 = vmatprep.subr.mxu0 %v947
        %1294 = vmatpush1.msra.mxu0 %v946
        %1295 = vmatprep.subr.mxu0 %v951
        %1296 = vmatpush1.msra.mxu0 %v950
        %1297 = vmatprep.subr.mxu0 %v955
        %1298 = vmatpush1.msra.mxu0 %v954
        %1299 = vmatprep.subr.mxu0 %v959
        %1300 = vmatpush1.msra.mxu0 %v958
        %1301 = vmatprep.subr.mxu0 %v963
        %1302 = vmatpush1.msra.mxu0 %v962
        %1303 = vmatprep.subr.mxu0 %v967
        %1304 = vmatpush1.msra.mxu0 %v966
        %1305 = vmatprep.subr.mxu0 %v971
        %1306 = vmatpush1.msra.mxu0 %v970
        %1307 = vmatprep.subr.mxu0 %v975
        %1308 = vmatpush1.msra.mxu0 %v974
        %1309 = vmatprep.subr.mxu0 %v979
        %1310 = vmatpush1.msra.mxu0 %v978
        %1311 = vmatprep.subr.mxu0 %v983
        %1312 = vmatpush1.msra.mxu0 %v982
        %1313 = vmatprep.subr.mxu0 %v987
        %1314 = vmatpush1.msra.mxu0 %v986
        %1315 = vmatprep.subr.mxu0 %v991
        %1316 = vmatpush1.msra.mxu0 %v990
        %1317 = vmatprep.subr.mxu0 %v995
        %1318 = vmatpush1.msra.mxu0 %v994
        %1319 = vmatprep.subr.mxu0 %v999
        %1320 = vmatpush1.msra.mxu0 %v998
        %1321 = vmatprep.subr.mxu0 %v1003
        %1322 = vmatpush1.msra.mxu0 %v1002
        %1323 = vmatprep.subr.mxu0 %v1007
        %1324 = vmatpush1.msra.mxu0 %v1006
        %1325 = vmatprep.subr.mxu0 %v1011
        %1326 = vmatpush1.msra.mxu0 %v1010
        %1327 = vmatprep.subr.mxu0 %v1015
        %1328 = vmatpush1.msra.mxu0 %v1014
        %1329 = vmatprep.subr.mxu0 %v1019
        %1330 = vmatpush1.msra.mxu0 %v1018
        %1331 = vmatprep.subr.mxu0 %v1023
        %1332 = vmatpush1.msra.mxu0 %v1022
        %1333 = vmatprep.subr.mxu0 %v1027
        %1334 = vmatpush1.msra.mxu0 %v1026
        %1335 = vmatprep.subr.mxu0 %v1031
        %1336 = vmatpush1.msra.mxu0 %v1030
        %1337 = vmatprep.subr.mxu0 %v1035
        %1338 = vmatpush1.msra.mxu0 %v1034
        %1339 = vmatprep.subr.mxu0 %v1039
        %1340 = vmatpush1.msra.mxu0 %v1038
        %1341 = vmatprep.subr.mxu0 %v1043
        %1342 = vmatpush1.msra.mxu0 %v1042
        %1343 = vmatprep.mubr.f32.mxu0 %v787
        %1344 = vmatmul.mubr.f32.gmra.mrb[0].mxu0 %v786
        %v1345 = vpop.f32.mrb[0].mxu0
        %v1346 = vadd.f32 %v1275, %v1345
        %v1347 = vpop.f32.mrb[0].mxu0
        %v1348 = vadd.f32 %v1277, %v1347
        %1349 = vdwg.mxu0
        %s1350 = scalar_lea.vmem [#allocation9], 1
        %v1351 = vld [vmem:[%s1350] ss:$4 sm:$0xf]
        %s1352 = scalar_lea.vmem [#allocation9], 2
        %v1353 = vld [vmem:[%s1352] ss:$4 sm:$0xf]
        %v1354 = vrot.slane %v1204, 4
        %v1355 = vadd.f32 %v1204, %v1354
        %v1356 = vrot.slane %v1355, 2
        %v1357 = vadd.f32 %v1355, %v1356
        %v1358 = vrot.slane %v1357, 1
        %v1359 = vadd.f32 %v1357, %v1358
        %v1360 = vrot.slane %v1206, 4
        %v1361 = vadd.f32 %v1206, %v1360
        %v1362 = vrot.slane %v1361, 2
        %v1363 = vadd.f32 %v1361, %v1362
        %v1364 = vrot.slane %v1363, 1
        %v1365 = vadd.f32 %v1363, %v1364
        %v1366 = vrot.slane %v1346, 4
        %v1367 = vadd.f32 %v1346, %v1366
        %v1368 = vrot.slane %v1367, 2
        %v1369 = vadd.f32 %v1367, %v1368
        %v1370 = vrot.slane %v1369, 1
        %v1371 = vadd.f32 %v1369, %v1370
        %v1372 = vrot.slane %v1348, 4
        %v1373 = vadd.f32 %v1348, %v1372
        %v1374 = vrot.slane %v1373, 2
        %v1375 = vadd.f32 %v1373, %v1374
        %v1376 = vrot.slane %v1375, 1
        %v1377 = vadd.f32 %v1375, %v1376
        %v1378 = vmul.f32 %v1359, %v661
        %v1379 = vmul.f32 %v1365, %v661
        %v1380 = vmul.f32 %v1371, %v661
        %v1381 = vmul.f32 %v1377, %v661
        %v1382 = vsub.f32 %v1204, %v1378
        %v1383 = vsub.f32 %v1206, %v1379
        %v1384 = vsub.f32 %v1346, %v1380
        %v1385 = vsub.f32 %v1348, %v1381
        %v1386 = vmul.f32 %v1382, %v1382
        %v1387 = vmul.f32 %v1383, %v1383
        %v1388 = vmul.f32 %v1384, %v1384
        %v1389 = vmul.f32 %v1385, %v1385
        %v1390 = vrot.slane %v1386, 4
        %v1391 = vadd.f32 %v1386, %v1390
        %v1392 = vrot.slane %v1391, 2
        %v1393 = vadd.f32 %v1391, %v1392
        %v1394 = vrot.slane %v1393, 1
        %v1395 = vadd.f32 %v1393, %v1394
        %v1396 = vrot.slane %v1387, 4
        %v1397 = vadd.f32 %v1387, %v1396
        %v1398 = vrot.slane %v1397, 2
        %v1399 = vadd.f32 %v1397, %v1398
        %v1400 = vrot.slane %v1399, 1
        %v1401 = vadd.f32 %v1399, %v1400
        %v1402 = vrot.slane %v1388, 4
        %v1403 = vadd.f32 %v1388, %v1402
        %v1404 = vrot.slane %v1403, 2
        %v1405 = vadd.f32 %v1403, %v1404
        %v1406 = vrot.slane %v1405, 1
        %v1407 = vadd.f32 %v1405, %v1406
        %v1408 = vrot.slane %v1389, 4
        %v1409 = vadd.f32 %v1389, %v1408
        %v1410 = vrot.slane %v1409, 2
        %v1411 = vadd.f32 %v1409, %v1410
        %v1412 = vrot.slane %v1411, 1
        %v1413 = vadd.f32 %v1411, %v1412
        %v1414 = vmul.f32 %v1395, %v661
        %v1415 = vmul.f32 %v1401, %v661
        %v1416 = vmul.f32 %v1407, %v661
        %v1417 = vmul.f32 %v1413, %v661
        %v1418 = vadd.f32 %v1414, 1e-05
        %v1419 = vadd.f32 %v1415, 1e-05
        %v1420 = vadd.f32 %v1416, 1e-05
        %v1421 = vadd.f32 %v1417, 1e-05
        %v1422 = vrsqrt.pop %v1418
        %v1423 = vrsqrt.pop %v1419
        %v1424 = vrsqrt.pop %v1420
        %v1425 = vrsqrt.pop %v1421
        %v1426 = vmul.f32 %v1382, %v1422
        %v1427 = vmul.f32 %v1383, %v1423
        %v1428 = vmul.f32 %v1384, %v1424
        %v1429 = vmul.f32 %v1385, %v1425
        %v1431 = vlaneseq
        %v1432 = vshrl.u32 %v1431, 7
        %v1433 = vsub.s32 0, %v1432
        %v1434 = vrot.slane %v1351, %v1433
        %v1435 = vlaneseq
        %v1436 = vshrl.u32 %v1435, 7
        %v1437 = vsub.s32 1, %v1436
        %v1438 = vrot.slane %v1351, %v1437
        %v1439 = vlaneseq
        %v1440 = vshrl.u32 %v1439, 7
        %v1441 = vsub.s32 2, %v1440
        %v1442 = vrot.slane %v1351, %v1441
        %v1443 = vlaneseq
        %v1444 = vshrl.u32 %v1443, 7
        %v1445 = vsub.s32 3, %v1444
        %v1446 = vrot.slane %v1351, %v1445
        %v1451 = vmul.f32 %v1434, %v1426
        %v1452 = vmul.f32 %v1438, %v1427
        %v1453 = vmul.f32 %v1442, %v1428
        %v1454 = vmul.f32 %v1446, %v1429
        %v1456 = vlaneseq
        %v1457 = vshrl.u32 %v1456, 7
        %v1458 = vsub.s32 0, %v1457
        %v1459 = vrot.slane %v1353, %v1458
        %v1460 = vlaneseq
        %v1461 = vshrl.u32 %v1460, 7
        %v1462 = vsub.s32 1, %v1461
        %v1463 = vrot.slane %v1353, %v1462
        %v1464 = vlaneseq
        %v1465 = vshrl.u32 %v1464, 7
        %v1466 = vsub.s32 2, %v1465
        %v1467 = vrot.slane %v1353, %v1466
        %v1468 = vlaneseq
        %v1469 = vshrl.u32 %v1468, 7
        %v1470 = vsub.s32 3, %v1469
        %v1471 = vrot.slane %v1353, %v1470
        %v1476 = vadd.f32 %v1451, %v1459
        %v1477 = vadd.f32 %v1452, %v1463
        %v1478 = vadd.f32 %v1453, %v1467
        %v1479 = vadd.f32 %v1454, %v1471
        %vm1480 = vcmp.gt.f32.partialorder %v1476, 0.0
        %vm1481 = vcmp.gt.f32.partialorder %v1477, 0.0
        %vm1482 = vcmp.gt.f32.partialorder %v1478, 0.0
        %vm1483 = vcmp.gt.f32.partialorder %v1479, 0.0
        %v1484 = vmin.f32 %v1476, 0.0
        %v1485 = vmin.f32 %v1477, 0.0
        %v1486 = vmin.f32 %v1478, 0.0
        %v1487 = vmin.f32 %v1479, 0.0
        %v1488 = vmul.f32 %v1484, 1.442695
        %v1489 = vpow.pop %v1488
        %v1490 = vmul.f32 %v1485, 1.442695
        %v1491 = vpow.pop %v1490
        %v1492 = vmul.f32 %v1486, 1.442695
        %v1493 = vpow.pop %v1492
        %v1494 = vmul.f32 %v1487, 1.442695
        %v1495 = vpow.pop %v1494
        %v1496 = vsub.f32 %v1489, 1.0
        %v1497 = vsub.f32 %v1491, 1.0
        %v1498 = vsub.f32 %v1493, 1.0
        %v1499 = vsub.f32 %v1495, 1.0
        %v1500 = vsel %vm1480, %v1476, %v1496
        %v1501 = vsel %vm1481, %v1477, %v1497
        %v1502 = vsel %vm1482, %v1478, %v1498
        %v1503 = vsel %vm1483, %v1479, %v1499
        %v1504 = vld [vmem:[%s351] sm:$0xff]
        %v1505 = vld [vmem:[%s351 + $0x8] sm:$0xff]
        %v1506 = vld [vmem:[%s351 + $0x10] sm:$0xff]
        %v1507 = vld [vmem:[%s351 + $0x18] sm:$0xff]
        %v1508 = vld [vmem:[%s351 + $0x20] sm:$0xff]
        %v1509 = vld [vmem:[%s351 + $0x28] sm:$0xff]
        %v1510 = vld [vmem:[%s351 + $0x30] sm:$0xff]
        %v1511 = vld [vmem:[%s351 + $0x38] sm:$0xff]
        %v1512 = vld [vmem:[%s351 + $0x40] sm:$0xff]
        %v1513 = vld [vmem:[%s351 + $0x48] sm:$0xff]
        %v1514 = vld [vmem:[%s351 + $0x50] sm:$0xff]
        %v1515 = vld [vmem:[%s351 + $0x58] sm:$0xff]
        %v1516 = vld [vmem:[%s351 + $0x60] sm:$0xff]
        %v1517 = vld [vmem:[%s351 + $0x68] sm:$0xff]
        %v1518 = vld [vmem:[%s351 + $0x70] sm:$0xff]
        %v1519 = vld [vmem:[%s351 + $0x78] sm:$0xff]
        %v1520 = vld [vmem:[%s351 + $0x80] sm:$0xff]
        %v1521 = vld [vmem:[%s351 + $0x88] sm:$0xff]
        %v1522 = vld [vmem:[%s351 + $0x90] sm:$0xff]
        %v1523 = vld [vmem:[%s351 + $0x98] sm:$0xff]
        %v1524 = vld [vmem:[%s351 + $0xa0] sm:$0xff]
        %v1525 = vld [vmem:[%s351 + $0xa8] sm:$0xff]
        %v1526 = vld [vmem:[%s351 + $0xb0] sm:$0xff]
        %v1527 = vld [vmem:[%s351 + $0xb8] sm:$0xff]
        %v1528 = vld [vmem:[%s351 + $0xc0] sm:$0xff]
        %v1529 = vld [vmem:[%s351 + $0xc8] sm:$0xff]
        %v1530 = vld [vmem:[%s351 + $0xd0] sm:$0xff]
        %v1531 = vld [vmem:[%s351 + $0xd8] sm:$0xff]
        %v1532 = vld [vmem:[%s351 + $0xe0] sm:$0xff]
        %v1533 = vld [vmem:[%s351 + $0xe8] sm:$0xff]
        %v1534 = vld [vmem:[%s351 + $0xf0] sm:$0xff]
        %v1535 = vld [vmem:[%s351 + $0xf8] sm:$0xff]
        %v1536 = vld [vmem:[%s351 + $0x100] sm:$0xff]
        %v1537 = vld [vmem:[%s351 + $0x108] sm:$0xff]
        %v1538 = vld [vmem:[%s351 + $0x110] sm:$0xff]
        %v1539 = vld [vmem:[%s351 + $0x118] sm:$0xff]
        %v1540 = vld [vmem:[%s351 + $0x120] sm:$0xff]
        %v1541 = vld [vmem:[%s351 + $0x128] sm:$0xff]
        %v1542 = vld [vmem:[%s351 + $0x130] sm:$0xff]
        %v1543 = vld [vmem:[%s351 + $0x138] sm:$0xff]
        %v1544 = vld [vmem:[%s351 + $0x140] sm:$0xff]
        %v1545 = vld [vmem:[%s351 + $0x148] sm:$0xff]
        %v1546 = vld [vmem:[%s351 + $0x150] sm:$0xff]
        %v1547 = vld [vmem:[%s351 + $0x158] sm:$0xff]
        %v1548 = vld [vmem:[%s351 + $0x160] sm:$0xff]
        %v1549 = vld [vmem:[%s351 + $0x168] sm:$0xff]
        %v1550 = vld [vmem:[%s351 + $0x170] sm:$0xff]
        %v1551 = vld [vmem:[%s351 + $0x178] sm:$0xff]
        %v1552 = vld [vmem:[%s351 + $0x180] sm:$0xff]
        %v1553 = vld [vmem:[%s351 + $0x188] sm:$0xff]
        %v1554 = vld [vmem:[%s351 + $0x190] sm:$0xff]
        %v1555 = vld [vmem:[%s351 + $0x198] sm:$0xff]
        %v1556 = vld [vmem:[%s351 + $0x1a0] sm:$0xff]
        %v1557 = vld [vmem:[%s351 + $0x1a8] sm:$0xff]
        %v1558 = vld [vmem:[%s351 + $0x1b0] sm:$0xff]
        %v1559 = vld [vmem:[%s351 + $0x1b8] sm:$0xff]
        %v1560 = vld [vmem:[%s351 + $0x1c0] sm:$0xff]
        %v1561 = vld [vmem:[%s351 + $0x1c8] sm:$0xff]
        %v1562 = vld [vmem:[%s351 + $0x1d0] sm:$0xff]
        %v1563 = vld [vmem:[%s351 + $0x1d8] sm:$0xff]
        %v1564 = vld [vmem:[%s351 + $0x1e0] sm:$0xff]
        %v1565 = vld [vmem:[%s351 + $0x1e8] sm:$0xff]
        %v1566 = vld [vmem:[%s351 + $0x1f0] sm:$0xff]
        %v1567 = vld [vmem:[%s351 + $0x1f8] sm:$0xff]
        %v1568 = vld [vmem:[%s351 + $0x200] sm:$0xff]
        %v1569 = vld [vmem:[%s351 + $0x208] sm:$0xff]
        %v1570 = vld [vmem:[%s351 + $0x210] sm:$0xff]
        %v1571 = vld [vmem:[%s351 + $0x218] sm:$0xff]
        %v1572 = vld [vmem:[%s351 + $0x220] sm:$0xff]
        %v1573 = vld [vmem:[%s351 + $0x228] sm:$0xff]
        %v1574 = vld [vmem:[%s351 + $0x230] sm:$0xff]
        %v1575 = vld [vmem:[%s351 + $0x238] sm:$0xff]
        %v1576 = vld [vmem:[%s351 + $0x240] sm:$0xff]
        %v1577 = vld [vmem:[%s351 + $0x248] sm:$0xff]
        %v1578 = vld [vmem:[%s351 + $0x250] sm:$0xff]
        %v1579 = vld [vmem:[%s351 + $0x258] sm:$0xff]
        %v1580 = vld [vmem:[%s351 + $0x260] sm:$0xff]
        %v1581 = vld [vmem:[%s351 + $0x268] sm:$0xff]
        %v1582 = vld [vmem:[%s351 + $0x270] sm:$0xff]
        %v1583 = vld [vmem:[%s351 + $0x278] sm:$0xff]
        %v1584 = vld [vmem:[%s351 + $0x280] sm:$0xff]
        %v1585 = vld [vmem:[%s351 + $0x288] sm:$0xff]
        %v1586 = vld [vmem:[%s351 + $0x290] sm:$0xff]
        %v1587 = vld [vmem:[%s351 + $0x298] sm:$0xff]
        %v1588 = vld [vmem:[%s351 + $0x2a0] sm:$0xff]
        %v1589 = vld [vmem:[%s351 + $0x2a8] sm:$0xff]
        %v1590 = vld [vmem:[%s351 + $0x2b0] sm:$0xff]
        %v1591 = vld [vmem:[%s351 + $0x2b8] sm:$0xff]
        %v1592 = vld [vmem:[%s351 + $0x2c0] sm:$0xff]
        %v1593 = vld [vmem:[%s351 + $0x2c8] sm:$0xff]
        %v1594 = vld [vmem:[%s351 + $0x2d0] sm:$0xff]
        %v1595 = vld [vmem:[%s351 + $0x2d8] sm:$0xff]
        %v1596 = vld [vmem:[%s351 + $0x2e0] sm:$0xff]
        %v1597 = vld [vmem:[%s351 + $0x2e8] sm:$0xff]
        %v1598 = vld [vmem:[%s351 + $0x2f0] sm:$0xff]
        %v1599 = vld [vmem:[%s351 + $0x2f8] sm:$0xff]
        %v1600 = vld [vmem:[%s351 + $0x300] sm:$0xff]
        %v1601 = vld [vmem:[%s351 + $0x308] sm:$0xff]
        %v1602 = vld [vmem:[%s351 + $0x310] sm:$0xff]
        %v1603 = vld [vmem:[%s351 + $0x318] sm:$0xff]
        %v1604 = vld [vmem:[%s351 + $0x320] sm:$0xff]
        %v1605 = vld [vmem:[%s351 + $0x328] sm:$0xff]
        %v1606 = vld [vmem:[%s351 + $0x330] sm:$0xff]
        %v1607 = vld [vmem:[%s351 + $0x338] sm:$0xff]
        %v1608 = vld [vmem:[%s351 + $0x340] sm:$0xff]
        %v1609 = vld [vmem:[%s351 + $0x348] sm:$0xff]
        %v1610 = vld [vmem:[%s351 + $0x350] sm:$0xff]
        %v1611 = vld [vmem:[%s351 + $0x358] sm:$0xff]
        %v1612 = vld [vmem:[%s351 + $0x360] sm:$0xff]
        %v1613 = vld [vmem:[%s351 + $0x368] sm:$0xff]
        %v1614 = vld [vmem:[%s351 + $0x370] sm:$0xff]
        %v1615 = vld [vmem:[%s351 + $0x378] sm:$0xff]
        %v1616 = vld [vmem:[%s351 + $0x380] sm:$0xff]
        %v1617 = vld [vmem:[%s351 + $0x388] sm:$0xff]
        %v1618 = vld [vmem:[%s351 + $0x390] sm:$0xff]
        %v1619 = vld [vmem:[%s351 + $0x398] sm:$0xff]
        %v1620 = vld [vmem:[%s351 + $0x3a0] sm:$0xff]
        %v1621 = vld [vmem:[%s351 + $0x3a8] sm:$0xff]
        %v1622 = vld [vmem:[%s351 + $0x3b0] sm:$0xff]
        %v1623 = vld [vmem:[%s351 + $0x3b8] sm:$0xff]
        %v1624 = vld [vmem:[%s351 + $0x3c0] sm:$0xff]
        %v1625 = vld [vmem:[%s351 + $0x3c8] sm:$0xff]
        %v1626 = vld [vmem:[%s351 + $0x3d0] sm:$0xff]
        %v1627 = vld [vmem:[%s351 + $0x3d8] sm:$0xff]
        %v1628 = vld [vmem:[%s351 + $0x3e0] sm:$0xff]
        %v1629 = vld [vmem:[%s351 + $0x3e8] sm:$0xff]
        %v1630 = vld [vmem:[%s351 + $0x3f0] sm:$0xff]
        %v1631 = vld [vmem:[%s351 + $0x3f8] sm:$0xff]
        %v1632 = vld [vmem:[%s351 + $0x400] sm:$0xff]
        %v1633 = vld [vmem:[%s351 + $0x408] sm:$0xff]
        %v1634 = vld [vmem:[%s351 + $0x410] sm:$0xff]
        %v1635 = vld [vmem:[%s351 + $0x418] sm:$0xff]
        %v1636 = vld [vmem:[%s351 + $0x420] sm:$0xff]
        %v1637 = vld [vmem:[%s351 + $0x428] sm:$0xff]
        %v1638 = vld [vmem:[%s351 + $0x430] sm:$0xff]
        %v1639 = vld [vmem:[%s351 + $0x438] sm:$0xff]
        %v1640 = vld [vmem:[%s351 + $0x440] sm:$0xff]
        %v1641 = vld [vmem:[%s351 + $0x448] sm:$0xff]
        %v1642 = vld [vmem:[%s351 + $0x450] sm:$0xff]
        %v1643 = vld [vmem:[%s351 + $0x458] sm:$0xff]
        %v1644 = vld [vmem:[%s351 + $0x460] sm:$0xff]
        %v1645 = vld [vmem:[%s351 + $0x468] sm:$0xff]
        %v1646 = vld [vmem:[%s351 + $0x470] sm:$0xff]
        %v1647 = vld [vmem:[%s351 + $0x478] sm:$0xff]
        %v1648 = vld [vmem:[%s351 + $0x480] sm:$0xff]
        %v1649 = vld [vmem:[%s351 + $0x488] sm:$0xff]
        %v1650 = vld [vmem:[%s351 + $0x490] sm:$0xff]
        %v1651 = vld [vmem:[%s351 + $0x498] sm:$0xff]
        %v1652 = vld [vmem:[%s351 + $0x4a0] sm:$0xff]
        %v1653 = vld [vmem:[%s351 + $0x4a8] sm:$0xff]
        %v1654 = vld [vmem:[%s351 + $0x4b0] sm:$0xff]
        %v1655 = vld [vmem:[%s351 + $0x4b8] sm:$0xff]
        %v1656 = vld [vmem:[%s351 + $0x4c0] sm:$0xff]
        %v1657 = vld [vmem:[%s351 + $0x4c8] sm:$0xff]
        %v1658 = vld [vmem:[%s351 + $0x4d0] sm:$0xff]
        %v1659 = vld [vmem:[%s351 + $0x4d8] sm:$0xff]
        %v1660 = vld [vmem:[%s351 + $0x4e0] sm:$0xff]
        %v1661 = vld [vmem:[%s351 + $0x4e8] sm:$0xff]
        %v1662 = vld [vmem:[%s351 + $0x4f0] sm:$0xff]
        %v1663 = vld [vmem:[%s351 + $0x4f8] sm:$0xff]
        %v1664 = vld [vmem:[%s351 + $0x500] sm:$0xff]
        %v1665 = vld [vmem:[%s351 + $0x508] sm:$0xff]
        %v1666 = vld [vmem:[%s351 + $0x510] sm:$0xff]
        %v1667 = vld [vmem:[%s351 + $0x518] sm:$0xff]
        %v1668 = vld [vmem:[%s351 + $0x520] sm:$0xff]
        %v1669 = vld [vmem:[%s351 + $0x528] sm:$0xff]
        %v1670 = vld [vmem:[%s351 + $0x530] sm:$0xff]
        %v1671 = vld [vmem:[%s351 + $0x538] sm:$0xff]
        %v1672 = vld [vmem:[%s351 + $0x540] sm:$0xff]
        %v1673 = vld [vmem:[%s351 + $0x548] sm:$0xff]
        %v1674 = vld [vmem:[%s351 + $0x550] sm:$0xff]
        %v1675 = vld [vmem:[%s351 + $0x558] sm:$0xff]
        %v1676 = vld [vmem:[%s351 + $0x560] sm:$0xff]
        %v1677 = vld [vmem:[%s351 + $0x568] sm:$0xff]
        %v1678 = vld [vmem:[%s351 + $0x570] sm:$0xff]
        %v1679 = vld [vmem:[%s351 + $0x578] sm:$0xff]
        %v1680 = vld [vmem:[%s351 + $0x580] sm:$0xff]
        %v1681 = vld [vmem:[%s351 + $0x588] sm:$0xff]
        %v1682 = vld [vmem:[%s351 + $0x590] sm:$0xff]
        %v1683 = vld [vmem:[%s351 + $0x598] sm:$0xff]
        %v1684 = vld [vmem:[%s351 + $0x5a0] sm:$0xff]
        %v1685 = vld [vmem:[%s351 + $0x5a8] sm:$0xff]
        %v1686 = vld [vmem:[%s351 + $0x5b0] sm:$0xff]
        %v1687 = vld [vmem:[%s351 + $0x5b8] sm:$0xff]
        %v1688 = vld [vmem:[%s351 + $0x5c0] sm:$0xff]
        %v1689 = vld [vmem:[%s351 + $0x5c8] sm:$0xff]
        %v1690 = vld [vmem:[%s351 + $0x5d0] sm:$0xff]
        %v1691 = vld [vmem:[%s351 + $0x5d8] sm:$0xff]
        %v1692 = vld [vmem:[%s351 + $0x5e0] sm:$0xff]
        %v1693 = vld [vmem:[%s351 + $0x5e8] sm:$0xff]
        %v1694 = vld [vmem:[%s351 + $0x5f0] sm:$0xff]
        %v1695 = vld [vmem:[%s351 + $0x5f8] sm:$0xff]
        %v1696 = vld [vmem:[%s351 + $0x600] sm:$0xff]
        %v1697 = vld [vmem:[%s351 + $0x608] sm:$0xff]
        %v1698 = vld [vmem:[%s351 + $0x610] sm:$0xff]
        %v1699 = vld [vmem:[%s351 + $0x618] sm:$0xff]
        %v1700 = vld [vmem:[%s351 + $0x620] sm:$0xff]
        %v1701 = vld [vmem:[%s351 + $0x628] sm:$0xff]
        %v1702 = vld [vmem:[%s351 + $0x630] sm:$0xff]
        %v1703 = vld [vmem:[%s351 + $0x638] sm:$0xff]
        %v1704 = vld [vmem:[%s351 + $0x640] sm:$0xff]
        %v1705 = vld [vmem:[%s351 + $0x648] sm:$0xff]
        %v1706 = vld [vmem:[%s351 + $0x650] sm:$0xff]
        %v1707 = vld [vmem:[%s351 + $0x658] sm:$0xff]
        %v1708 = vld [vmem:[%s351 + $0x660] sm:$0xff]
        %v1709 = vld [vmem:[%s351 + $0x668] sm:$0xff]
        %v1710 = vld [vmem:[%s351 + $0x670] sm:$0xff]
        %v1711 = vld [vmem:[%s351 + $0x678] sm:$0xff]
        %v1712 = vld [vmem:[%s351 + $0x680] sm:$0xff]
        %v1713 = vld [vmem:[%s351 + $0x688] sm:$0xff]
        %v1714 = vld [vmem:[%s351 + $0x690] sm:$0xff]
        %v1715 = vld [vmem:[%s351 + $0x698] sm:$0xff]
        %v1716 = vld [vmem:[%s351 + $0x6a0] sm:$0xff]
        %v1717 = vld [vmem:[%s351 + $0x6a8] sm:$0xff]
        %v1718 = vld [vmem:[%s351 + $0x6b0] sm:$0xff]
        %v1719 = vld [vmem:[%s351 + $0x6b8] sm:$0xff]
        %v1720 = vld [vmem:[%s351 + $0x6c0] sm:$0xff]
        %v1721 = vld [vmem:[%s351 + $0x6c8] sm:$0xff]
        %v1722 = vld [vmem:[%s351 + $0x6d0] sm:$0xff]
        %v1723 = vld [vmem:[%s351 + $0x6d8] sm:$0xff]
        %v1724 = vld [vmem:[%s351 + $0x6e0] sm:$0xff]
        %v1725 = vld [vmem:[%s351 + $0x6e8] sm:$0xff]
        %v1726 = vld [vmem:[%s351 + $0x6f0] sm:$0xff]
        %v1727 = vld [vmem:[%s351 + $0x6f8] sm:$0xff]
        %v1728 = vld [vmem:[%s351 + $0x700] sm:$0xff]
        %v1729 = vld [vmem:[%s351 + $0x708] sm:$0xff]
        %v1730 = vld [vmem:[%s351 + $0x710] sm:$0xff]
        %v1731 = vld [vmem:[%s351 + $0x718] sm:$0xff]
        %v1732 = vld [vmem:[%s351 + $0x720] sm:$0xff]
        %v1733 = vld [vmem:[%s351 + $0x728] sm:$0xff]
        %v1734 = vld [vmem:[%s351 + $0x730] sm:$0xff]
        %v1735 = vld [vmem:[%s351 + $0x738] sm:$0xff]
        %v1736 = vld [vmem:[%s351 + $0x740] sm:$0xff]
        %v1737 = vld [vmem:[%s351 + $0x748] sm:$0xff]
        %v1738 = vld [vmem:[%s351 + $0x750] sm:$0xff]
        %v1739 = vld [vmem:[%s351 + $0x758] sm:$0xff]
        %v1740 = vld [vmem:[%s351 + $0x760] sm:$0xff]
        %v1741 = vld [vmem:[%s351 + $0x768] sm:$0xff]
        %v1742 = vld [vmem:[%s351 + $0x770] sm:$0xff]
        %v1743 = vld [vmem:[%s351 + $0x778] sm:$0xff]
        %v1744 = vld [vmem:[%s351 + $0x780] sm:$0xff]
        %v1745 = vld [vmem:[%s351 + $0x788] sm:$0xff]
        %v1746 = vld [vmem:[%s351 + $0x790] sm:$0xff]
        %v1747 = vld [vmem:[%s351 + $0x798] sm:$0xff]
        %v1748 = vld [vmem:[%s351 + $0x7a0] sm:$0xff]
        %v1749 = vld [vmem:[%s351 + $0x7a8] sm:$0xff]
        %v1750 = vld [vmem:[%s351 + $0x7b0] sm:$0xff]
        %v1751 = vld [vmem:[%s351 + $0x7b8] sm:$0xff]
        %v1752 = vld [vmem:[%s351 + $0x7c0] sm:$0xff]
        %v1753 = vld [vmem:[%s351 + $0x7c8] sm:$0xff]
        %v1754 = vld [vmem:[%s351 + $0x7d0] sm:$0xff]
        %v1755 = vld [vmem:[%s351 + $0x7d8] sm:$0xff]
        %v1756 = vld [vmem:[%s351 + $0x7e0] sm:$0xff]
        %v1757 = vld [vmem:[%s351 + $0x7e8] sm:$0xff]
        %v1758 = vld [vmem:[%s351 + $0x7f0] sm:$0xff]
        %v1759 = vld [vmem:[%s351 + $0x7f8] sm:$0xff]
        %v1760 = vld [vmem:[%s351 + $0x800] sm:$0xff]
        %v1761 = vld [vmem:[%s351 + $0x808] sm:$0xff]
        %v1762 = vld [vmem:[%s351 + $0x810] sm:$0xff]
        %v1763 = vld [vmem:[%s351 + $0x818] sm:$0xff]
        %v1764 = vld [vmem:[%s351 + $0x820] sm:$0xff]
        %v1765 = vld [vmem:[%s351 + $0x828] sm:$0xff]
        %v1766 = vld [vmem:[%s351 + $0x830] sm:$0xff]
        %v1767 = vld [vmem:[%s351 + $0x838] sm:$0xff]
        %v1768 = vld [vmem:[%s351 + $0x840] sm:$0xff]
        %v1769 = vld [vmem:[%s351 + $0x848] sm:$0xff]
        %v1770 = vld [vmem:[%s351 + $0x850] sm:$0xff]
        %v1771 = vld [vmem:[%s351 + $0x858] sm:$0xff]
        %v1772 = vld [vmem:[%s351 + $0x860] sm:$0xff]
        %v1773 = vld [vmem:[%s351 + $0x868] sm:$0xff]
        %v1774 = vld [vmem:[%s351 + $0x870] sm:$0xff]
        %v1775 = vld [vmem:[%s351 + $0x878] sm:$0xff]
        %v1776 = vld [vmem:[%s351 + $0x880] sm:$0xff]
        %v1777 = vld [vmem:[%s351 + $0x888] sm:$0xff]
        %v1778 = vld [vmem:[%s351 + $0x890] sm:$0xff]
        %v1779 = vld [vmem:[%s351 + $0x898] sm:$0xff]
        %v1780 = vld [vmem:[%s351 + $0x8a0] sm:$0xff]
        %v1781 = vld [vmem:[%s351 + $0x8a8] sm:$0xff]
        %v1782 = vld [vmem:[%s351 + $0x8b0] sm:$0xff]
        %v1783 = vld [vmem:[%s351 + $0x8b8] sm:$0xff]
        %v1784 = vld [vmem:[%s351 + $0x8c0] sm:$0xff]
        %v1785 = vld [vmem:[%s351 + $0x8c8] sm:$0xff]
        %v1786 = vld [vmem:[%s351 + $0x8d0] sm:$0xff]
        %v1787 = vld [vmem:[%s351 + $0x8d8] sm:$0xff]
        %v1788 = vld [vmem:[%s351 + $0x8e0] sm:$0xff]
        %v1789 = vld [vmem:[%s351 + $0x8e8] sm:$0xff]
        %v1790 = vld [vmem:[%s351 + $0x8f0] sm:$0xff]
        %v1791 = vld [vmem:[%s351 + $0x8f8] sm:$0xff]
        %v1792 = vld [vmem:[%s351 + $0x900] sm:$0xff]
        %v1793 = vld [vmem:[%s351 + $0x908] sm:$0xff]
        %v1794 = vld [vmem:[%s351 + $0x910] sm:$0xff]
        %v1795 = vld [vmem:[%s351 + $0x918] sm:$0xff]
        %v1796 = vld [vmem:[%s351 + $0x920] sm:$0xff]
        %v1797 = vld [vmem:[%s351 + $0x928] sm:$0xff]
        %v1798 = vld [vmem:[%s351 + $0x930] sm:$0xff]
        %v1799 = vld [vmem:[%s351 + $0x938] sm:$0xff]
        %v1800 = vld [vmem:[%s351 + $0x940] sm:$0xff]
        %v1801 = vld [vmem:[%s351 + $0x948] sm:$0xff]
        %v1802 = vld [vmem:[%s351 + $0x950] sm:$0xff]
        %v1803 = vld [vmem:[%s351 + $0x958] sm:$0xff]
        %v1804 = vld [vmem:[%s351 + $0x960] sm:$0xff]
        %v1805 = vld [vmem:[%s351 + $0x968] sm:$0xff]
        %v1806 = vld [vmem:[%s351 + $0x970] sm:$0xff]
        %v1807 = vld [vmem:[%s351 + $0x978] sm:$0xff]
        %v1808 = vld [vmem:[%s351 + $0x980] sm:$0xff]
        %v1809 = vld [vmem:[%s351 + $0x988] sm:$0xff]
        %v1810 = vld [vmem:[%s351 + $0x990] sm:$0xff]
        %v1811 = vld [vmem:[%s351 + $0x998] sm:$0xff]
        %v1812 = vld [vmem:[%s351 + $0x9a0] sm:$0xff]
        %v1813 = vld [vmem:[%s351 + $0x9a8] sm:$0xff]
        %v1814 = vld [vmem:[%s351 + $0x9b0] sm:$0xff]
        %v1815 = vld [vmem:[%s351 + $0x9b8] sm:$0xff]
        %v1816 = vld [vmem:[%s351 + $0x9c0] sm:$0xff]
        %v1817 = vld [vmem:[%s351 + $0x9c8] sm:$0xff]
        %v1818 = vld [vmem:[%s351 + $0x9d0] sm:$0xff]
        %v1819 = vld [vmem:[%s351 + $0x9d8] sm:$0xff]
        %v1820 = vld [vmem:[%s351 + $0x9e0] sm:$0xff]
        %v1821 = vld [vmem:[%s351 + $0x9e8] sm:$0xff]
        %v1822 = vld [vmem:[%s351 + $0x9f0] sm:$0xff]
        %v1823 = vld [vmem:[%s351 + $0x9f8] sm:$0xff]
        %v1824 = vld [vmem:[%s351 + $0xa00] sm:$0xff]
        %v1825 = vld [vmem:[%s351 + $0xa08] sm:$0xff]
        %v1826 = vld [vmem:[%s351 + $0xa10] sm:$0xff]
        %v1827 = vld [vmem:[%s351 + $0xa18] sm:$0xff]
        %v1828 = vld [vmem:[%s351 + $0xa20] sm:$0xff]
        %v1829 = vld [vmem:[%s351 + $0xa28] sm:$0xff]
        %v1830 = vld [vmem:[%s351 + $0xa30] sm:$0xff]
        %v1831 = vld [vmem:[%s351 + $0xa38] sm:$0xff]
        %v1832 = vld [vmem:[%s351 + $0xa40] sm:$0xff]
        %v1833 = vld [vmem:[%s351 + $0xa48] sm:$0xff]
        %v1834 = vld [vmem:[%s351 + $0xa50] sm:$0xff]
        %v1835 = vld [vmem:[%s351 + $0xa58] sm:$0xff]
        %v1836 = vld [vmem:[%s351 + $0xa60] sm:$0xff]
        %v1837 = vld [vmem:[%s351 + $0xa68] sm:$0xff]
        %v1838 = vld [vmem:[%s351 + $0xa70] sm:$0xff]
        %v1839 = vld [vmem:[%s351 + $0xa78] sm:$0xff]
        %v1840 = vld [vmem:[%s351 + $0xa80] sm:$0xff]
        %v1841 = vld [vmem:[%s351 + $0xa88] sm:$0xff]
        %v1842 = vld [vmem:[%s351 + $0xa90] sm:$0xff]
        %v1843 = vld [vmem:[%s351 + $0xa98] sm:$0xff]
        %v1844 = vld [vmem:[%s351 + $0xaa0] sm:$0xff]
        %v1845 = vld [vmem:[%s351 + $0xaa8] sm:$0xff]
        %v1846 = vld [vmem:[%s351 + $0xab0] sm:$0xff]
        %v1847 = vld [vmem:[%s351 + $0xab8] sm:$0xff]
        %v1848 = vld [vmem:[%s351 + $0xac0] sm:$0xff]
        %v1849 = vld [vmem:[%s351 + $0xac8] sm:$0xff]
        %v1850 = vld [vmem:[%s351 + $0xad0] sm:$0xff]
        %v1851 = vld [vmem:[%s351 + $0xad8] sm:$0xff]
        %v1852 = vld [vmem:[%s351 + $0xae0] sm:$0xff]
        %v1853 = vld [vmem:[%s351 + $0xae8] sm:$0xff]
        %v1854 = vld [vmem:[%s351 + $0xaf0] sm:$0xff]
        %v1855 = vld [vmem:[%s351 + $0xaf8] sm:$0xff]
        %v1856 = vld [vmem:[%s351 + $0xb00] sm:$0xff]
        %v1857 = vld [vmem:[%s351 + $0xb08] sm:$0xff]
        %v1858 = vld [vmem:[%s351 + $0xb10] sm:$0xff]
        %v1859 = vld [vmem:[%s351 + $0xb18] sm:$0xff]
        %v1860 = vld [vmem:[%s351 + $0xb20] sm:$0xff]
        %v1861 = vld [vmem:[%s351 + $0xb28] sm:$0xff]
        %v1862 = vld [vmem:[%s351 + $0xb30] sm:$0xff]
        %v1863 = vld [vmem:[%s351 + $0xb38] sm:$0xff]
        %v1864 = vld [vmem:[%s351 + $0xb40] sm:$0xff]
        %v1865 = vld [vmem:[%s351 + $0xb48] sm:$0xff]
        %v1866 = vld [vmem:[%s351 + $0xb50] sm:$0xff]
        %v1867 = vld [vmem:[%s351 + $0xb58] sm:$0xff]
        %v1868 = vld [vmem:[%s351 + $0xb60] sm:$0xff]
        %v1869 = vld [vmem:[%s351 + $0xb68] sm:$0xff]
        %v1870 = vld [vmem:[%s351 + $0xb70] sm:$0xff]
        %v1871 = vld [vmem:[%s351 + $0xb78] sm:$0xff]
        %v1872 = vld [vmem:[%s351 + $0xb80] sm:$0xff]
        %v1873 = vld [vmem:[%s351 + $0xb88] sm:$0xff]
        %v1874 = vld [vmem:[%s351 + $0xb90] sm:$0xff]
        %v1875 = vld [vmem:[%s351 + $0xb98] sm:$0xff]
        %v1876 = vld [vmem:[%s351 + $0xba0] sm:$0xff]
        %v1877 = vld [vmem:[%s351 + $0xba8] sm:$0xff]
        %v1878 = vld [vmem:[%s351 + $0xbb0] sm:$0xff]
        %v1879 = vld [vmem:[%s351 + $0xbb8] sm:$0xff]
        %v1880 = vld [vmem:[%s351 + $0xbc0] sm:$0xff]
        %v1881 = vld [vmem:[%s351 + $0xbc8] sm:$0xff]
        %v1882 = vld [vmem:[%s351 + $0xbd0] sm:$0xff]
        %v1883 = vld [vmem:[%s351 + $0xbd8] sm:$0xff]
        %v1884 = vld [vmem:[%s351 + $0xbe0] sm:$0xff]
        %v1885 = vld [vmem:[%s351 + $0xbe8] sm:$0xff]
        %v1886 = vld [vmem:[%s351 + $0xbf0] sm:$0xff]
        %v1887 = vld [vmem:[%s351 + $0xbf8] sm:$0xff]
        %v1888 = vld [vmem:[%s351 + $0xc00] sm:$0xff]
        %v1889 = vld [vmem:[%s351 + $0xc08] sm:$0xff]
        %v1890 = vld [vmem:[%s351 + $0xc10] sm:$0xff]
        %v1891 = vld [vmem:[%s351 + $0xc18] sm:$0xff]
        %v1892 = vld [vmem:[%s351 + $0xc20] sm:$0xff]
        %v1893 = vld [vmem:[%s351 + $0xc28] sm:$0xff]
        %v1894 = vld [vmem:[%s351 + $0xc30] sm:$0xff]
        %v1895 = vld [vmem:[%s351 + $0xc38] sm:$0xff]
        %v1896 = vld [vmem:[%s351 + $0xc40] sm:$0xff]
        %v1897 = vld [vmem:[%s351 + $0xc48] sm:$0xff]
        %v1898 = vld [vmem:[%s351 + $0xc50] sm:$0xff]
        %v1899 = vld [vmem:[%s351 + $0xc58] sm:$0xff]
        %v1900 = vld [vmem:[%s351 + $0xc60] sm:$0xff]
        %v1901 = vld [vmem:[%s351 + $0xc68] sm:$0xff]
        %v1902 = vld [vmem:[%s351 + $0xc70] sm:$0xff]
        %v1903 = vld [vmem:[%s351 + $0xc78] sm:$0xff]
        %v1904 = vld [vmem:[%s351 + $0xc80] sm:$0xff]
        %v1905 = vld [vmem:[%s351 + $0xc88] sm:$0xff]
        %v1906 = vld [vmem:[%s351 + $0xc90] sm:$0xff]
        %v1907 = vld [vmem:[%s351 + $0xc98] sm:$0xff]
        %v1908 = vld [vmem:[%s351 + $0xca0] sm:$0xff]
        %v1909 = vld [vmem:[%s351 + $0xca8] sm:$0xff]
        %v1910 = vld [vmem:[%s351 + $0xcb0] sm:$0xff]
        %v1911 = vld [vmem:[%s351 + $0xcb8] sm:$0xff]
        %v1912 = vld [vmem:[%s351 + $0xcc0] sm:$0xff]
        %v1913 = vld [vmem:[%s351 + $0xcc8] sm:$0xff]
        %v1914 = vld [vmem:[%s351 + $0xcd0] sm:$0xff]
        %v1915 = vld [vmem:[%s351 + $0xcd8] sm:$0xff]
        %v1916 = vld [vmem:[%s351 + $0xce0] sm:$0xff]
        %v1917 = vld [vmem:[%s351 + $0xce8] sm:$0xff]
        %v1918 = vld [vmem:[%s351 + $0xcf0] sm:$0xff]
        %v1919 = vld [vmem:[%s351 + $0xcf8] sm:$0xff]
        %v1920 = vld [vmem:[%s351 + $0xd00] sm:$0xff]
        %v1921 = vld [vmem:[%s351 + $0xd08] sm:$0xff]
        %v1922 = vld [vmem:[%s351 + $0xd10] sm:$0xff]
        %v1923 = vld [vmem:[%s351 + $0xd18] sm:$0xff]
        %v1924 = vld [vmem:[%s351 + $0xd20] sm:$0xff]
        %v1925 = vld [vmem:[%s351 + $0xd28] sm:$0xff]
        %v1926 = vld [vmem:[%s351 + $0xd30] sm:$0xff]
        %v1927 = vld [vmem:[%s351 + $0xd38] sm:$0xff]
        %v1928 = vld [vmem:[%s351 + $0xd40] sm:$0xff]
        %v1929 = vld [vmem:[%s351 + $0xd48] sm:$0xff]
        %v1930 = vld [vmem:[%s351 + $0xd50] sm:$0xff]
        %v1931 = vld [vmem:[%s351 + $0xd58] sm:$0xff]
        %v1932 = vld [vmem:[%s351 + $0xd60] sm:$0xff]
        %v1933 = vld [vmem:[%s351 + $0xd68] sm:$0xff]
        %v1934 = vld [vmem:[%s351 + $0xd70] sm:$0xff]
        %v1935 = vld [vmem:[%s351 + $0xd78] sm:$0xff]
        %v1936 = vld [vmem:[%s351 + $0xd80] sm:$0xff]
        %v1937 = vld [vmem:[%s351 + $0xd88] sm:$0xff]
        %v1938 = vld [vmem:[%s351 + $0xd90] sm:$0xff]
        %v1939 = vld [vmem:[%s351 + $0xd98] sm:$0xff]
        %v1940 = vld [vmem:[%s351 + $0xda0] sm:$0xff]
        %v1941 = vld [vmem:[%s351 + $0xda8] sm:$0xff]
        %v1942 = vld [vmem:[%s351 + $0xdb0] sm:$0xff]
        %v1943 = vld [vmem:[%s351 + $0xdb8] sm:$0xff]
        %v1944 = vld [vmem:[%s351 + $0xdc0] sm:$0xff]
        %v1945 = vld [vmem:[%s351 + $0xdc8] sm:$0xff]
        %v1946 = vld [vmem:[%s351 + $0xdd0] sm:$0xff]
        %v1947 = vld [vmem:[%s351 + $0xdd8] sm:$0xff]
        %v1948 = vld [vmem:[%s351 + $0xde0] sm:$0xff]
        %v1949 = vld [vmem:[%s351 + $0xde8] sm:$0xff]
        %v1950 = vld [vmem:[%s351 + $0xdf0] sm:$0xff]
        %v1951 = vld [vmem:[%s351 + $0xdf8] sm:$0xff]
        %v1952 = vld [vmem:[%s351 + $0xe00] sm:$0xff]
        %v1953 = vld [vmem:[%s351 + $0xe08] sm:$0xff]
        %v1954 = vld [vmem:[%s351 + $0xe10] sm:$0xff]
        %v1955 = vld [vmem:[%s351 + $0xe18] sm:$0xff]
        %v1956 = vld [vmem:[%s351 + $0xe20] sm:$0xff]
        %v1957 = vld [vmem:[%s351 + $0xe28] sm:$0xff]
        %v1958 = vld [vmem:[%s351 + $0xe30] sm:$0xff]
        %v1959 = vld [vmem:[%s351 + $0xe38] sm:$0xff]
        %v1960 = vld [vmem:[%s351 + $0xe40] sm:$0xff]
        %v1961 = vld [vmem:[%s351 + $0xe48] sm:$0xff]
        %v1962 = vld [vmem:[%s351 + $0xe50] sm:$0xff]
        %v1963 = vld [vmem:[%s351 + $0xe58] sm:$0xff]
        %v1964 = vld [vmem:[%s351 + $0xe60] sm:$0xff]
        %v1965 = vld [vmem:[%s351 + $0xe68] sm:$0xff]
        %v1966 = vld [vmem:[%s351 + $0xe70] sm:$0xff]
        %v1967 = vld [vmem:[%s351 + $0xe78] sm:$0xff]
        %v1968 = vld [vmem:[%s351 + $0xe80] sm:$0xff]
        %v1969 = vld [vmem:[%s351 + $0xe88] sm:$0xff]
        %v1970 = vld [vmem:[%s351 + $0xe90] sm:$0xff]
        %v1971 = vld [vmem:[%s351 + $0xe98] sm:$0xff]
        %v1972 = vld [vmem:[%s351 + $0xea0] sm:$0xff]
        %v1973 = vld [vmem:[%s351 + $0xea8] sm:$0xff]
        %v1974 = vld [vmem:[%s351 + $0xeb0] sm:$0xff]
        %v1975 = vld [vmem:[%s351 + $0xeb8] sm:$0xff]
        %v1976 = vld [vmem:[%s351 + $0xec0] sm:$0xff]
        %v1977 = vld [vmem:[%s351 + $0xec8] sm:$0xff]
        %v1978 = vld [vmem:[%s351 + $0xed0] sm:$0xff]
        %v1979 = vld [vmem:[%s351 + $0xed8] sm:$0xff]
        %v1980 = vld [vmem:[%s351 + $0xee0] sm:$0xff]
        %v1981 = vld [vmem:[%s351 + $0xee8] sm:$0xff]
        %v1982 = vld [vmem:[%s351 + $0xef0] sm:$0xff]
        %v1983 = vld [vmem:[%s351 + $0xef8] sm:$0xff]
        %v1984 = vld [vmem:[%s351 + $0xf00] sm:$0xff]
        %v1985 = vld [vmem:[%s351 + $0xf08] sm:$0xff]
        %v1986 = vld [vmem:[%s351 + $0xf10] sm:$0xff]
        %v1987 = vld [vmem:[%s351 + $0xf18] sm:$0xff]
        %v1988 = vld [vmem:[%s351 + $0xf20] sm:$0xff]
        %v1989 = vld [vmem:[%s351 + $0xf28] sm:$0xff]
        %v1990 = vld [vmem:[%s351 + $0xf30] sm:$0xff]
        %v1991 = vld [vmem:[%s351 + $0xf38] sm:$0xff]
        %v1992 = vld [vmem:[%s351 + $0xf40] sm:$0xff]
        %v1993 = vld [vmem:[%s351 + $0xf48] sm:$0xff]
        %v1994 = vld [vmem:[%s351 + $0xf50] sm:$0xff]
        %v1995 = vld [vmem:[%s351 + $0xf58] sm:$0xff]
        %v1996 = vld [vmem:[%s351 + $0xf60] sm:$0xff]
        %v1997 = vld [vmem:[%s351 + $0xf68] sm:$0xff]
        %v1998 = vld [vmem:[%s351 + $0xf70] sm:$0xff]
        %v1999 = vld [vmem:[%s351 + $0xf78] sm:$0xff]
        %v2000 = vld [vmem:[%s351 + $0xf80] sm:$0xff]
        %v2001 = vld [vmem:[%s351 + $0xf88] sm:$0xff]
        %v2002 = vld [vmem:[%s351 + $0xf90] sm:$0xff]
        %v2003 = vld [vmem:[%s351 + $0xf98] sm:$0xff]
        %v2004 = vld [vmem:[%s351 + $0xfa0] sm:$0xff]
        %v2005 = vld [vmem:[%s351 + $0xfa8] sm:$0xff]
        %v2006 = vld [vmem:[%s351 + $0xfb0] sm:$0xff]
        %v2007 = vld [vmem:[%s351 + $0xfb8] sm:$0xff]
        %v2008 = vld [vmem:[%s351 + $0xfc0] sm:$0xff]
        %v2009 = vld [vmem:[%s351 + $0xfc8] sm:$0xff]
        %v2010 = vld [vmem:[%s351 + $0xfd0] sm:$0xff]
        %v2011 = vld [vmem:[%s351 + $0xfd8] sm:$0xff]
        %v2012 = vld [vmem:[%s351 + $0xfe0] sm:$0xff]
        %v2013 = vld [vmem:[%s351 + $0xfe8] sm:$0xff]
        %v2014 = vld [vmem:[%s351 + $0xff0] sm:$0xff]
        %v2015 = vld [vmem:[%s351 + $0xff8] sm:$0xff]
        %v2016 = vld [vmem:[%s351 + $0x1000] sm:$0xff]
        %v2017 = vld [vmem:[%s351 + $0x1008] sm:$0xff]
        %v2018 = vld [vmem:[%s351 + $0x1010] sm:$0xff]
        %v2019 = vld [vmem:[%s351 + $0x1018] sm:$0xff]
        %v2020 = vld [vmem:[%s351 + $0x1020] sm:$0xff]
        %v2021 = vld [vmem:[%s351 + $0x1028] sm:$0xff]
        %v2022 = vld [vmem:[%s351 + $0x1030] sm:$0xff]
        %v2023 = vld [vmem:[%s351 + $0x1038] sm:$0xff]
        %v2024 = vld [vmem:[%s351 + $0x1040] sm:$0xff]
        %v2025 = vld [vmem:[%s351 + $0x1048] sm:$0xff]
        %v2026 = vld [vmem:[%s351 + $0x1050] sm:$0xff]
        %v2027 = vld [vmem:[%s351 + $0x1058] sm:$0xff]
        %v2028 = vld [vmem:[%s351 + $0x1060] sm:$0xff]
        %v2029 = vld [vmem:[%s351 + $0x1068] sm:$0xff]
        %v2030 = vld [vmem:[%s351 + $0x1070] sm:$0xff]
        %v2031 = vld [vmem:[%s351 + $0x1078] sm:$0xff]
        %v2032 = vld [vmem:[%s351 + $0x1080] sm:$0xff]
        %v2033 = vld [vmem:[%s351 + $0x1088] sm:$0xff]
        %v2034 = vld [vmem:[%s351 + $0x1090] sm:$0xff]
        %v2035 = vld [vmem:[%s351 + $0x1098] sm:$0xff]
        %v2036 = vld [vmem:[%s351 + $0x10a0] sm:$0xff]
        %v2037 = vld [vmem:[%s351 + $0x10a8] sm:$0xff]
        %v2038 = vld [vmem:[%s351 + $0x10b0] sm:$0xff]
        %v2039 = vld [vmem:[%s351 + $0x10b8] sm:$0xff]
        %v2040 = vld [vmem:[%s351 + $0x10c0] sm:$0xff]
        %v2041 = vld [vmem:[%s351 + $0x10c8] sm:$0xff]
        %v2042 = vld [vmem:[%s351 + $0x10d0] sm:$0xff]
        %v2043 = vld [vmem:[%s351 + $0x10d8] sm:$0xff]
        %v2044 = vld [vmem:[%s351 + $0x10e0] sm:$0xff]
        %v2045 = vld [vmem:[%s351 + $0x10e8] sm:$0xff]
        %v2046 = vld [vmem:[%s351 + $0x10f0] sm:$0xff]
        %v2047 = vld [vmem:[%s351 + $0x10f8] sm:$0xff]
        %v2048 = vld [vmem:[%s351 + $0x1100] sm:$0xff]
        %v2049 = vld [vmem:[%s351 + $0x1108] sm:$0xff]
        %v2050 = vld [vmem:[%s351 + $0x1110] sm:$0xff]
        %v2051 = vld [vmem:[%s351 + $0x1118] sm:$0xff]
        %v2052 = vld [vmem:[%s351 + $0x1120] sm:$0xff]
        %v2053 = vld [vmem:[%s351 + $0x1128] sm:$0xff]
        %v2054 = vld [vmem:[%s351 + $0x1130] sm:$0xff]
        %v2055 = vld [vmem:[%s351 + $0x1138] sm:$0xff]
        %v2056 = vld [vmem:[%s351 + $0x1140] sm:$0xff]
        %v2057 = vld [vmem:[%s351 + $0x1148] sm:$0xff]
        %v2058 = vld [vmem:[%s351 + $0x1150] sm:$0xff]
        %v2059 = vld [vmem:[%s351 + $0x1158] sm:$0xff]
        %v2060 = vld [vmem:[%s351 + $0x1160] sm:$0xff]
        %v2061 = vld [vmem:[%s351 + $0x1168] sm:$0xff]
        %v2062 = vld [vmem:[%s351 + $0x1170] sm:$0xff]
        %v2063 = vld [vmem:[%s351 + $0x1178] sm:$0xff]
        %v2064 = vld [vmem:[%s351 + $0x1180] sm:$0xff]
        %v2065 = vld [vmem:[%s351 + $0x1188] sm:$0xff]
        %v2066 = vld [vmem:[%s351 + $0x1190] sm:$0xff]
        %v2067 = vld [vmem:[%s351 + $0x1198] sm:$0xff]
        %v2068 = vld [vmem:[%s351 + $0x11a0] sm:$0xff]
        %v2069 = vld [vmem:[%s351 + $0x11a8] sm:$0xff]
        %v2070 = vld [vmem:[%s351 + $0x11b0] sm:$0xff]
        %v2071 = vld [vmem:[%s351 + $0x11b8] sm:$0xff]
        %v2072 = vld [vmem:[%s351 + $0x11c0] sm:$0xff]
        %v2073 = vld [vmem:[%s351 + $0x11c8] sm:$0xff]
        %v2074 = vld [vmem:[%s351 + $0x11d0] sm:$0xff]
        %v2075 = vld [vmem:[%s351 + $0x11d8] sm:$0xff]
        %v2076 = vld [vmem:[%s351 + $0x11e0] sm:$0xff]
        %v2077 = vld [vmem:[%s351 + $0x11e8] sm:$0xff]
        %v2078 = vld [vmem:[%s351 + $0x11f0] sm:$0xff]
        %v2079 = vld [vmem:[%s351 + $0x11f8] sm:$0xff]
        %v2080 = vld [vmem:[%s351 + $0x1200] sm:$0xff]
        %v2081 = vld [vmem:[%s351 + $0x1208] sm:$0xff]
        %v2082 = vld [vmem:[%s351 + $0x1210] sm:$0xff]
        %v2083 = vld [vmem:[%s351 + $0x1218] sm:$0xff]
        %v2084 = vld [vmem:[%s351 + $0x1220] sm:$0xff]
        %v2085 = vld [vmem:[%s351 + $0x1228] sm:$0xff]
        %v2086 = vld [vmem:[%s351 + $0x1230] sm:$0xff]
        %v2087 = vld [vmem:[%s351 + $0x1238] sm:$0xff]
        %v2088 = vld [vmem:[%s351 + $0x1240] sm:$0xff]
        %v2089 = vld [vmem:[%s351 + $0x1248] sm:$0xff]
        %v2090 = vld [vmem:[%s351 + $0x1250] sm:$0xff]
        %v2091 = vld [vmem:[%s351 + $0x1258] sm:$0xff]
        %v2092 = vld [vmem:[%s351 + $0x1260] sm:$0xff]
        %v2093 = vld [vmem:[%s351 + $0x1268] sm:$0xff]
        %v2094 = vld [vmem:[%s351 + $0x1270] sm:$0xff]
        %v2095 = vld [vmem:[%s351 + $0x1278] sm:$0xff]
        %v2096 = vld [vmem:[%s351 + $0x1280] sm:$0xff]
        %v2097 = vld [vmem:[%s351 + $0x1288] sm:$0xff]
        %v2098 = vld [vmem:[%s351 + $0x1290] sm:$0xff]
        %v2099 = vld [vmem:[%s351 + $0x1298] sm:$0xff]
        %v2100 = vld [vmem:[%s351 + $0x12a0] sm:$0xff]
        %v2101 = vld [vmem:[%s351 + $0x12a8] sm:$0xff]
        %v2102 = vld [vmem:[%s351 + $0x12b0] sm:$0xff]
        %v2103 = vld [vmem:[%s351 + $0x12b8] sm:$0xff]
        %v2104 = vld [vmem:[%s351 + $0x12c0] sm:$0xff]
        %v2105 = vld [vmem:[%s351 + $0x12c8] sm:$0xff]
        %v2106 = vld [vmem:[%s351 + $0x12d0] sm:$0xff]
        %v2107 = vld [vmem:[%s351 + $0x12d8] sm:$0xff]
        %v2108 = vld [vmem:[%s351 + $0x12e0] sm:$0xff]
        %v2109 = vld [vmem:[%s351 + $0x12e8] sm:$0xff]
        %v2110 = vld [vmem:[%s351 + $0x12f0] sm:$0xff]
        %v2111 = vld [vmem:[%s351 + $0x12f8] sm:$0xff]
        %v2112 = vld [vmem:[%s351 + $0x1300] sm:$0xff]
        %v2113 = vld [vmem:[%s351 + $0x1308] sm:$0xff]
        %v2114 = vld [vmem:[%s351 + $0x1310] sm:$0xff]
        %v2115 = vld [vmem:[%s351 + $0x1318] sm:$0xff]
        %v2116 = vld [vmem:[%s351 + $0x1320] sm:$0xff]
        %v2117 = vld [vmem:[%s351 + $0x1328] sm:$0xff]
        %v2118 = vld [vmem:[%s351 + $0x1330] sm:$0xff]
        %v2119 = vld [vmem:[%s351 + $0x1338] sm:$0xff]
        %v2120 = vld [vmem:[%s351 + $0x1340] sm:$0xff]
        %v2121 = vld [vmem:[%s351 + $0x1348] sm:$0xff]
        %v2122 = vld [vmem:[%s351 + $0x1350] sm:$0xff]
        %v2123 = vld [vmem:[%s351 + $0x1358] sm:$0xff]
        %v2124 = vld [vmem:[%s351 + $0x1360] sm:$0xff]
        %v2125 = vld [vmem:[%s351 + $0x1368] sm:$0xff]
        %v2126 = vld [vmem:[%s351 + $0x1370] sm:$0xff]
        %v2127 = vld [vmem:[%s351 + $0x1378] sm:$0xff]
        %v2128 = vld [vmem:[%s351 + $0x1380] sm:$0xff]
        %v2129 = vld [vmem:[%s351 + $0x1388] sm:$0xff]
        %v2130 = vld [vmem:[%s351 + $0x1390] sm:$0xff]
        %v2131 = vld [vmem:[%s351 + $0x1398] sm:$0xff]
        %v2132 = vld [vmem:[%s351 + $0x13a0] sm:$0xff]
        %v2133 = vld [vmem:[%s351 + $0x13a8] sm:$0xff]
        %v2134 = vld [vmem:[%s351 + $0x13b0] sm:$0xff]
        %v2135 = vld [vmem:[%s351 + $0x13b8] sm:$0xff]
        %v2136 = vld [vmem:[%s351 + $0x13c0] sm:$0xff]
        %v2137 = vld [vmem:[%s351 + $0x13c8] sm:$0xff]
        %v2138 = vld [vmem:[%s351 + $0x13d0] sm:$0xff]
        %v2139 = vld [vmem:[%s351 + $0x13d8] sm:$0xff]
        %v2140 = vld [vmem:[%s351 + $0x13e0] sm:$0xff]
        %v2141 = vld [vmem:[%s351 + $0x13e8] sm:$0xff]
        %v2142 = vld [vmem:[%s351 + $0x13f0] sm:$0xff]
        %v2143 = vld [vmem:[%s351 + $0x13f8] sm:$0xff]
        %v2144 = vld [vmem:[%s351 + $0x1400] sm:$0xff]
        %v2145 = vld [vmem:[%s351 + $0x1408] sm:$0xff]
        %v2146 = vld [vmem:[%s351 + $0x1410] sm:$0xff]
        %v2147 = vld [vmem:[%s351 + $0x1418] sm:$0xff]
        %v2148 = vld [vmem:[%s351 + $0x1420] sm:$0xff]
        %v2149 = vld [vmem:[%s351 + $0x1428] sm:$0xff]
        %v2150 = vld [vmem:[%s351 + $0x1430] sm:$0xff]
        %v2151 = vld [vmem:[%s351 + $0x1438] sm:$0xff]
        %v2152 = vld [vmem:[%s351 + $0x1440] sm:$0xff]
        %v2153 = vld [vmem:[%s351 + $0x1448] sm:$0xff]
        %v2154 = vld [vmem:[%s351 + $0x1450] sm:$0xff]
        %v2155 = vld [vmem:[%s351 + $0x1458] sm:$0xff]
        %v2156 = vld [vmem:[%s351 + $0x1460] sm:$0xff]
        %v2157 = vld [vmem:[%s351 + $0x1468] sm:$0xff]
        %v2158 = vld [vmem:[%s351 + $0x1470] sm:$0xff]
        %v2159 = vld [vmem:[%s351 + $0x1478] sm:$0xff]
        %v2160 = vld [vmem:[%s351 + $0x1480] sm:$0xff]
        %v2161 = vld [vmem:[%s351 + $0x1488] sm:$0xff]
        %v2162 = vld [vmem:[%s351 + $0x1490] sm:$0xff]
        %v2163 = vld [vmem:[%s351 + $0x1498] sm:$0xff]
        %v2164 = vld [vmem:[%s351 + $0x14a0] sm:$0xff]
        %v2165 = vld [vmem:[%s351 + $0x14a8] sm:$0xff]
        %v2166 = vld [vmem:[%s351 + $0x14b0] sm:$0xff]
        %v2167 = vld [vmem:[%s351 + $0x14b8] sm:$0xff]
        %v2168 = vld [vmem:[%s351 + $0x14c0] sm:$0xff]
        %v2169 = vld [vmem:[%s351 + $0x14c8] sm:$0xff]
        %v2170 = vld [vmem:[%s351 + $0x14d0] sm:$0xff]
        %v2171 = vld [vmem:[%s351 + $0x14d8] sm:$0xff]
        %v2172 = vld [vmem:[%s351 + $0x14e0] sm:$0xff]
        %v2173 = vld [vmem:[%s351 + $0x14e8] sm:$0xff]
        %v2174 = vld [vmem:[%s351 + $0x14f0] sm:$0xff]
        %v2175 = vld [vmem:[%s351 + $0x14f8] sm:$0xff]
        %v2176 = vld [vmem:[%s351 + $0x1500] sm:$0xff]
        %v2177 = vld [vmem:[%s351 + $0x1508] sm:$0xff]
        %v2178 = vld [vmem:[%s351 + $0x1510] sm:$0xff]
        %v2179 = vld [vmem:[%s351 + $0x1518] sm:$0xff]
        %v2180 = vld [vmem:[%s351 + $0x1520] sm:$0xff]
        %v2181 = vld [vmem:[%s351 + $0x1528] sm:$0xff]
        %v2182 = vld [vmem:[%s351 + $0x1530] sm:$0xff]
        %v2183 = vld [vmem:[%s351 + $0x1538] sm:$0xff]
        %v2184 = vld [vmem:[%s351 + $0x1540] sm:$0xff]
        %v2185 = vld [vmem:[%s351 + $0x1548] sm:$0xff]
        %v2186 = vld [vmem:[%s351 + $0x1550] sm:$0xff]
        %v2187 = vld [vmem:[%s351 + $0x1558] sm:$0xff]
        %v2188 = vld [vmem:[%s351 + $0x1560] sm:$0xff]
        %v2189 = vld [vmem:[%s351 + $0x1568] sm:$0xff]
        %v2190 = vld [vmem:[%s351 + $0x1570] sm:$0xff]
        %v2191 = vld [vmem:[%s351 + $0x1578] sm:$0xff]
        %v2192 = vld [vmem:[%s351 + $0x1580] sm:$0xff]
        %v2193 = vld [vmem:[%s351 + $0x1588] sm:$0xff]
        %v2194 = vld [vmem:[%s351 + $0x1590] sm:$0xff]
        %v2195 = vld [vmem:[%s351 + $0x1598] sm:$0xff]
        %v2196 = vld [vmem:[%s351 + $0x15a0] sm:$0xff]
        %v2197 = vld [vmem:[%s351 + $0x15a8] sm:$0xff]
        %v2198 = vld [vmem:[%s351 + $0x15b0] sm:$0xff]
        %v2199 = vld [vmem:[%s351 + $0x15b8] sm:$0xff]
        %v2200 = vld [vmem:[%s351 + $0x15c0] sm:$0xff]
        %v2201 = vld [vmem:[%s351 + $0x15c8] sm:$0xff]
        %v2202 = vld [vmem:[%s351 + $0x15d0] sm:$0xff]
        %v2203 = vld [vmem:[%s351 + $0x15d8] sm:$0xff]
        %v2204 = vld [vmem:[%s351 + $0x15e0] sm:$0xff]
        %v2205 = vld [vmem:[%s351 + $0x15e8] sm:$0xff]
        %v2206 = vld [vmem:[%s351 + $0x15f0] sm:$0xff]
        %v2207 = vld [vmem:[%s351 + $0x15f8] sm:$0xff]
        %v2208 = vld [vmem:[%s351 + $0x1600] sm:$0xff]
        %v2209 = vld [vmem:[%s351 + $0x1608] sm:$0xff]
        %v2210 = vld [vmem:[%s351 + $0x1610] sm:$0xff]
        %v2211 = vld [vmem:[%s351 + $0x1618] sm:$0xff]
        %v2212 = vld [vmem:[%s351 + $0x1620] sm:$0xff]
        %v2213 = vld [vmem:[%s351 + $0x1628] sm:$0xff]
        %v2214 = vld [vmem:[%s351 + $0x1630] sm:$0xff]
        %v2215 = vld [vmem:[%s351 + $0x1638] sm:$0xff]
        %v2216 = vld [vmem:[%s351 + $0x1640] sm:$0xff]
        %v2217 = vld [vmem:[%s351 + $0x1648] sm:$0xff]
        %v2218 = vld [vmem:[%s351 + $0x1650] sm:$0xff]
        %v2219 = vld [vmem:[%s351 + $0x1658] sm:$0xff]
        %v2220 = vld [vmem:[%s351 + $0x1660] sm:$0xff]
        %v2221 = vld [vmem:[%s351 + $0x1668] sm:$0xff]
        %v2222 = vld [vmem:[%s351 + $0x1670] sm:$0xff]
        %v2223 = vld [vmem:[%s351 + $0x1678] sm:$0xff]
        %v2224 = vld [vmem:[%s351 + $0x1680] sm:$0xff]
        %v2225 = vld [vmem:[%s351 + $0x1688] sm:$0xff]
        %v2226 = vld [vmem:[%s351 + $0x1690] sm:$0xff]
        %v2227 = vld [vmem:[%s351 + $0x1698] sm:$0xff]
        %v2228 = vld [vmem:[%s351 + $0x16a0] sm:$0xff]
        %v2229 = vld [vmem:[%s351 + $0x16a8] sm:$0xff]
        %v2230 = vld [vmem:[%s351 + $0x16b0] sm:$0xff]
        %v2231 = vld [vmem:[%s351 + $0x16b8] sm:$0xff]
        %v2232 = vld [vmem:[%s351 + $0x16c0] sm:$0xff]
        %v2233 = vld [vmem:[%s351 + $0x16c8] sm:$0xff]
        %v2234 = vld [vmem:[%s351 + $0x16d0] sm:$0xff]
        %v2235 = vld [vmem:[%s351 + $0x16d8] sm:$0xff]
        %v2236 = vld [vmem:[%s351 + $0x16e0] sm:$0xff]
        %v2237 = vld [vmem:[%s351 + $0x16e8] sm:$0xff]
        %v2238 = vld [vmem:[%s351 + $0x16f0] sm:$0xff]
        %v2239 = vld [vmem:[%s351 + $0x16f8] sm:$0xff]
        %v2240 = vld [vmem:[%s351 + $0x1700] sm:$0xff]
        %v2241 = vld [vmem:[%s351 + $0x1708] sm:$0xff]
        %v2242 = vld [vmem:[%s351 + $0x1710] sm:$0xff]
        %v2243 = vld [vmem:[%s351 + $0x1718] sm:$0xff]
        %v2244 = vld [vmem:[%s351 + $0x1720] sm:$0xff]
        %v2245 = vld [vmem:[%s351 + $0x1728] sm:$0xff]
        %v2246 = vld [vmem:[%s351 + $0x1730] sm:$0xff]
        %v2247 = vld [vmem:[%s351 + $0x1738] sm:$0xff]
        %v2248 = vld [vmem:[%s351 + $0x1740] sm:$0xff]
        %v2249 = vld [vmem:[%s351 + $0x1748] sm:$0xff]
        %v2250 = vld [vmem:[%s351 + $0x1750] sm:$0xff]
        %v2251 = vld [vmem:[%s351 + $0x1758] sm:$0xff]
        %v2252 = vld [vmem:[%s351 + $0x1760] sm:$0xff]
        %v2253 = vld [vmem:[%s351 + $0x1768] sm:$0xff]
        %v2254 = vld [vmem:[%s351 + $0x1770] sm:$0xff]
        %v2255 = vld [vmem:[%s351 + $0x1778] sm:$0xff]
        %v2256 = vld [vmem:[%s351 + $0x1780] sm:$0xff]
        %v2257 = vld [vmem:[%s351 + $0x1788] sm:$0xff]
        %v2258 = vld [vmem:[%s351 + $0x1790] sm:$0xff]
        %v2259 = vld [vmem:[%s351 + $0x1798] sm:$0xff]
        %v2260 = vld [vmem:[%s351 + $0x17a0] sm:$0xff]
        %v2261 = vld [vmem:[%s351 + $0x17a8] sm:$0xff]
        %v2262 = vld [vmem:[%s351 + $0x17b0] sm:$0xff]
        %v2263 = vld [vmem:[%s351 + $0x17b8] sm:$0xff]
        %v2264 = vld [vmem:[%s351 + $0x17c0] sm:$0xff]
        %v2265 = vld [vmem:[%s351 + $0x17c8] sm:$0xff]
        %v2266 = vld [vmem:[%s351 + $0x17d0] sm:$0xff]
        %v2267 = vld [vmem:[%s351 + $0x17d8] sm:$0xff]
        %v2268 = vld [vmem:[%s351 + $0x17e0] sm:$0xff]
        %v2269 = vld [vmem:[%s351 + $0x17e8] sm:$0xff]
        %v2270 = vld [vmem:[%s351 + $0x17f0] sm:$0xff]
        %v2271 = vld [vmem:[%s351 + $0x17f8] sm:$0xff]
        %v2272 = vld [vmem:[%s351 + $0x1800] sm:$0xff]
        %v2273 = vld [vmem:[%s351 + $0x1808] sm:$0xff]
        %v2274 = vld [vmem:[%s351 + $0x1810] sm:$0xff]
        %v2275 = vld [vmem:[%s351 + $0x1818] sm:$0xff]
        %v2276 = vld [vmem:[%s351 + $0x1820] sm:$0xff]
        %v2277 = vld [vmem:[%s351 + $0x1828] sm:$0xff]
        %v2278 = vld [vmem:[%s351 + $0x1830] sm:$0xff]
        %v2279 = vld [vmem:[%s351 + $0x1838] sm:$0xff]
        %v2280 = vld [vmem:[%s351 + $0x1840] sm:$0xff]
        %v2281 = vld [vmem:[%s351 + $0x1848] sm:$0xff]
        %v2282 = vld [vmem:[%s351 + $0x1850] sm:$0xff]
        %v2283 = vld [vmem:[%s351 + $0x1858] sm:$0xff]
        %v2284 = vld [vmem:[%s351 + $0x1860] sm:$0xff]
        %v2285 = vld [vmem:[%s351 + $0x1868] sm:$0xff]
        %v2286 = vld [vmem:[%s351 + $0x1870] sm:$0xff]
        %v2287 = vld [vmem:[%s351 + $0x1878] sm:$0xff]
        %v2288 = vld [vmem:[%s351 + $0x1880] sm:$0xff]
        %v2289 = vld [vmem:[%s351 + $0x1888] sm:$0xff]
        %v2290 = vld [vmem:[%s351 + $0x1890] sm:$0xff]
        %v2291 = vld [vmem:[%s351 + $0x1898] sm:$0xff]
        %v2292 = vld [vmem:[%s351 + $0x18a0] sm:$0xff]
        %v2293 = vld [vmem:[%s351 + $0x18a8] sm:$0xff]
        %v2294 = vld [vmem:[%s351 + $0x18b0] sm:$0xff]
        %v2295 = vld [vmem:[%s351 + $0x18b8] sm:$0xff]
        %v2296 = vld [vmem:[%s351 + $0x18c0] sm:$0xff]
        %v2297 = vld [vmem:[%s351 + $0x18c8] sm:$0xff]
        %v2298 = vld [vmem:[%s351 + $0x18d0] sm:$0xff]
        %v2299 = vld [vmem:[%s351 + $0x18d8] sm:$0xff]
        %v2300 = vld [vmem:[%s351 + $0x18e0] sm:$0xff]
        %v2301 = vld [vmem:[%s351 + $0x18e8] sm:$0xff]
        %v2302 = vld [vmem:[%s351 + $0x18f0] sm:$0xff]
        %v2303 = vld [vmem:[%s351 + $0x18f8] sm:$0xff]
        %v2304 = vld [vmem:[%s351 + $0x1900] sm:$0xff]
        %v2305 = vld [vmem:[%s351 + $0x1908] sm:$0xff]
        %v2306 = vld [vmem:[%s351 + $0x1910] sm:$0xff]
        %v2307 = vld [vmem:[%s351 + $0x1918] sm:$0xff]
        %v2308 = vld [vmem:[%s351 + $0x1920] sm:$0xff]
        %v2309 = vld [vmem:[%s351 + $0x1928] sm:$0xff]
        %v2310 = vld [vmem:[%s351 + $0x1930] sm:$0xff]
        %v2311 = vld [vmem:[%s351 + $0x1938] sm:$0xff]
        %v2312 = vld [vmem:[%s351 + $0x1940] sm:$0xff]
        %v2313 = vld [vmem:[%s351 + $0x1948] sm:$0xff]
        %v2314 = vld [vmem:[%s351 + $0x1950] sm:$0xff]
        %v2315 = vld [vmem:[%s351 + $0x1958] sm:$0xff]
        %v2316 = vld [vmem:[%s351 + $0x1960] sm:$0xff]
        %v2317 = vld [vmem:[%s351 + $0x1968] sm:$0xff]
        %v2318 = vld [vmem:[%s351 + $0x1970] sm:$0xff]
        %v2319 = vld [vmem:[%s351 + $0x1978] sm:$0xff]
        %v2320 = vld [vmem:[%s351 + $0x1980] sm:$0xff]
        %v2321 = vld [vmem:[%s351 + $0x1988] sm:$0xff]
        %v2322 = vld [vmem:[%s351 + $0x1990] sm:$0xff]
        %v2323 = vld [vmem:[%s351 + $0x1998] sm:$0xff]
        %v2324 = vld [vmem:[%s351 + $0x19a0] sm:$0xff]
        %v2325 = vld [vmem:[%s351 + $0x19a8] sm:$0xff]
        %v2326 = vld [vmem:[%s351 + $0x19b0] sm:$0xff]
        %v2327 = vld [vmem:[%s351 + $0x19b8] sm:$0xff]
        %v2328 = vld [vmem:[%s351 + $0x19c0] sm:$0xff]
        %v2329 = vld [vmem:[%s351 + $0x19c8] sm:$0xff]
        %v2330 = vld [vmem:[%s351 + $0x19d0] sm:$0xff]
        %v2331 = vld [vmem:[%s351 + $0x19d8] sm:$0xff]
        %v2332 = vld [vmem:[%s351 + $0x19e0] sm:$0xff]
        %v2333 = vld [vmem:[%s351 + $0x19e8] sm:$0xff]
        %v2334 = vld [vmem:[%s351 + $0x19f0] sm:$0xff]
        %v2335 = vld [vmem:[%s351 + $0x19f8] sm:$0xff]
        %v2336 = vld [vmem:[%s351 + $0x1a00] sm:$0xff]
        %v2337 = vld [vmem:[%s351 + $0x1a08] sm:$0xff]
        %v2338 = vld [vmem:[%s351 + $0x1a10] sm:$0xff]
        %v2339 = vld [vmem:[%s351 + $0x1a18] sm:$0xff]
        %v2340 = vld [vmem:[%s351 + $0x1a20] sm:$0xff]
        %v2341 = vld [vmem:[%s351 + $0x1a28] sm:$0xff]
        %v2342 = vld [vmem:[%s351 + $0x1a30] sm:$0xff]
        %v2343 = vld [vmem:[%s351 + $0x1a38] sm:$0xff]
        %v2344 = vld [vmem:[%s351 + $0x1a40] sm:$0xff]
        %v2345 = vld [vmem:[%s351 + $0x1a48] sm:$0xff]
        %v2346 = vld [vmem:[%s351 + $0x1a50] sm:$0xff]
        %v2347 = vld [vmem:[%s351 + $0x1a58] sm:$0xff]
        %v2348 = vld [vmem:[%s351 + $0x1a60] sm:$0xff]
        %v2349 = vld [vmem:[%s351 + $0x1a68] sm:$0xff]
        %v2350 = vld [vmem:[%s351 + $0x1a70] sm:$0xff]
        %v2351 = vld [vmem:[%s351 + $0x1a78] sm:$0xff]
        %v2352 = vld [vmem:[%s351 + $0x1a80] sm:$0xff]
        %v2353 = vld [vmem:[%s351 + $0x1a88] sm:$0xff]
        %v2354 = vld [vmem:[%s351 + $0x1a90] sm:$0xff]
        %v2355 = vld [vmem:[%s351 + $0x1a98] sm:$0xff]
        %v2356 = vld [vmem:[%s351 + $0x1aa0] sm:$0xff]
        %v2357 = vld [vmem:[%s351 + $0x1aa8] sm:$0xff]
        %v2358 = vld [vmem:[%s351 + $0x1ab0] sm:$0xff]
        %v2359 = vld [vmem:[%s351 + $0x1ab8] sm:$0xff]
        %v2360 = vld [vmem:[%s351 + $0x1ac0] sm:$0xff]
        %v2361 = vld [vmem:[%s351 + $0x1ac8] sm:$0xff]
        %v2362 = vld [vmem:[%s351 + $0x1ad0] sm:$0xff]
        %v2363 = vld [vmem:[%s351 + $0x1ad8] sm:$0xff]
        %v2364 = vld [vmem:[%s351 + $0x1ae0] sm:$0xff]
        %v2365 = vld [vmem:[%s351 + $0x1ae8] sm:$0xff]
        %v2366 = vld [vmem:[%s351 + $0x1af0] sm:$0xff]
        %v2367 = vld [vmem:[%s351 + $0x1af8] sm:$0xff]
        %v2368 = vld [vmem:[%s351 + $0x1b00] sm:$0xff]
        %v2369 = vld [vmem:[%s351 + $0x1b08] sm:$0xff]
        %v2370 = vld [vmem:[%s351 + $0x1b10] sm:$0xff]
        %v2371 = vld [vmem:[%s351 + $0x1b18] sm:$0xff]
        %v2372 = vld [vmem:[%s351 + $0x1b20] sm:$0xff]
        %v2373 = vld [vmem:[%s351 + $0x1b28] sm:$0xff]
        %v2374 = vld [vmem:[%s351 + $0x1b30] sm:$0xff]
        %v2375 = vld [vmem:[%s351 + $0x1b38] sm:$0xff]
        %v2376 = vld [vmem:[%s351 + $0x1b40] sm:$0xff]
        %v2377 = vld [vmem:[%s351 + $0x1b48] sm:$0xff]
        %v2378 = vld [vmem:[%s351 + $0x1b50] sm:$0xff]
        %v2379 = vld [vmem:[%s351 + $0x1b58] sm:$0xff]
        %v2380 = vld [vmem:[%s351 + $0x1b60] sm:$0xff]
        %v2381 = vld [vmem:[%s351 + $0x1b68] sm:$0xff]
        %v2382 = vld [vmem:[%s351 + $0x1b70] sm:$0xff]
        %v2383 = vld [vmem:[%s351 + $0x1b78] sm:$0xff]
        %v2384 = vld [vmem:[%s351 + $0x1b80] sm:$0xff]
        %v2385 = vld [vmem:[%s351 + $0x1b88] sm:$0xff]
        %v2386 = vld [vmem:[%s351 + $0x1b90] sm:$0xff]
        %v2387 = vld [vmem:[%s351 + $0x1b98] sm:$0xff]
        %v2388 = vld [vmem:[%s351 + $0x1ba0] sm:$0xff]
        %v2389 = vld [vmem:[%s351 + $0x1ba8] sm:$0xff]
        %v2390 = vld [vmem:[%s351 + $0x1bb0] sm:$0xff]
        %v2391 = vld [vmem:[%s351 + $0x1bb8] sm:$0xff]
        %v2392 = vld [vmem:[%s351 + $0x1bc0] sm:$0xff]
        %v2393 = vld [vmem:[%s351 + $0x1bc8] sm:$0xff]
        %v2394 = vld [vmem:[%s351 + $0x1bd0] sm:$0xff]
        %v2395 = vld [vmem:[%s351 + $0x1bd8] sm:$0xff]
        %v2396 = vld [vmem:[%s351 + $0x1be0] sm:$0xff]
        %v2397 = vld [vmem:[%s351 + $0x1be8] sm:$0xff]
        %v2398 = vld [vmem:[%s351 + $0x1bf0] sm:$0xff]
        %v2399 = vld [vmem:[%s351 + $0x1bf8] sm:$0xff]
        %v2400 = vld [vmem:[%s351 + $0x1c00] sm:$0xff]
        %v2401 = vld [vmem:[%s351 + $0x1c08] sm:$0xff]
        %v2402 = vld [vmem:[%s351 + $0x1c10] sm:$0xff]
        %v2403 = vld [vmem:[%s351 + $0x1c18] sm:$0xff]
        %v2404 = vld [vmem:[%s351 + $0x1c20] sm:$0xff]
        %v2405 = vld [vmem:[%s351 + $0x1c28] sm:$0xff]
        %v2406 = vld [vmem:[%s351 + $0x1c30] sm:$0xff]
        %v2407 = vld [vmem:[%s351 + $0x1c38] sm:$0xff]
        %v2408 = vld [vmem:[%s351 + $0x1c40] sm:$0xff]
        %v2409 = vld [vmem:[%s351 + $0x1c48] sm:$0xff]
        %v2410 = vld [vmem:[%s351 + $0x1c50] sm:$0xff]
        %v2411 = vld [vmem:[%s351 + $0x1c58] sm:$0xff]
        %v2412 = vld [vmem:[%s351 + $0x1c60] sm:$0xff]
        %v2413 = vld [vmem:[%s351 + $0x1c68] sm:$0xff]
        %v2414 = vld [vmem:[%s351 + $0x1c70] sm:$0xff]
        %v2415 = vld [vmem:[%s351 + $0x1c78] sm:$0xff]
        %v2416 = vld [vmem:[%s351 + $0x1c80] sm:$0xff]
        %v2417 = vld [vmem:[%s351 + $0x1c88] sm:$0xff]
        %v2418 = vld [vmem:[%s351 + $0x1c90] sm:$0xff]
        %v2419 = vld [vmem:[%s351 + $0x1c98] sm:$0xff]
        %v2420 = vld [vmem:[%s351 + $0x1ca0] sm:$0xff]
        %v2421 = vld [vmem:[%s351 + $0x1ca8] sm:$0xff]
        %v2422 = vld [vmem:[%s351 + $0x1cb0] sm:$0xff]
        %v2423 = vld [vmem:[%s351 + $0x1cb8] sm:$0xff]
        %v2424 = vld [vmem:[%s351 + $0x1cc0] sm:$0xff]
        %v2425 = vld [vmem:[%s351 + $0x1cc8] sm:$0xff]
        %v2426 = vld [vmem:[%s351 + $0x1cd0] sm:$0xff]
        %v2427 = vld [vmem:[%s351 + $0x1cd8] sm:$0xff]
        %v2428 = vld [vmem:[%s351 + $0x1ce0] sm:$0xff]
        %v2429 = vld [vmem:[%s351 + $0x1ce8] sm:$0xff]
        %v2430 = vld [vmem:[%s351 + $0x1cf0] sm:$0xff]
        %v2431 = vld [vmem:[%s351 + $0x1cf8] sm:$0xff]
        %v2432 = vld [vmem:[%s351 + $0x1d00] sm:$0xff]
        %v2433 = vld [vmem:[%s351 + $0x1d08] sm:$0xff]
        %v2434 = vld [vmem:[%s351 + $0x1d10] sm:$0xff]
        %v2435 = vld [vmem:[%s351 + $0x1d18] sm:$0xff]
        %v2436 = vld [vmem:[%s351 + $0x1d20] sm:$0xff]
        %v2437 = vld [vmem:[%s351 + $0x1d28] sm:$0xff]
        %v2438 = vld [vmem:[%s351 + $0x1d30] sm:$0xff]
        %v2439 = vld [vmem:[%s351 + $0x1d38] sm:$0xff]
        %v2440 = vld [vmem:[%s351 + $0x1d40] sm:$0xff]
        %v2441 = vld [vmem:[%s351 + $0x1d48] sm:$0xff]
        %v2442 = vld [vmem:[%s351 + $0x1d50] sm:$0xff]
        %v2443 = vld [vmem:[%s351 + $0x1d58] sm:$0xff]
        %v2444 = vld [vmem:[%s351 + $0x1d60] sm:$0xff]
        %v2445 = vld [vmem:[%s351 + $0x1d68] sm:$0xff]
        %v2446 = vld [vmem:[%s351 + $0x1d70] sm:$0xff]
        %v2447 = vld [vmem:[%s351 + $0x1d78] sm:$0xff]
        %v2448 = vld [vmem:[%s351 + $0x1d80] sm:$0xff]
        %v2449 = vld [vmem:[%s351 + $0x1d88] sm:$0xff]
        %v2450 = vld [vmem:[%s351 + $0x1d90] sm:$0xff]
        %v2451 = vld [vmem:[%s351 + $0x1d98] sm:$0xff]
        %v2452 = vld [vmem:[%s351 + $0x1da0] sm:$0xff]
        %v2453 = vld [vmem:[%s351 + $0x1da8] sm:$0xff]
        %v2454 = vld [vmem:[%s351 + $0x1db0] sm:$0xff]
        %v2455 = vld [vmem:[%s351 + $0x1db8] sm:$0xff]
        %v2456 = vld [vmem:[%s351 + $0x1dc0] sm:$0xff]
        %v2457 = vld [vmem:[%s351 + $0x1dc8] sm:$0xff]
        %v2458 = vld [vmem:[%s351 + $0x1dd0] sm:$0xff]
        %v2459 = vld [vmem:[%s351 + $0x1dd8] sm:$0xff]
        %v2460 = vld [vmem:[%s351 + $0x1de0] sm:$0xff]
        %v2461 = vld [vmem:[%s351 + $0x1de8] sm:$0xff]
        %v2462 = vld [vmem:[%s351 + $0x1df0] sm:$0xff]
        %v2463 = vld [vmem:[%s351 + $0x1df8] sm:$0xff]
        %v2464 = vld [vmem:[%s351 + $0x1e00] sm:$0xff]
        %v2465 = vld [vmem:[%s351 + $0x1e08] sm:$0xff]
        %v2466 = vld [vmem:[%s351 + $0x1e10] sm:$0xff]
        %v2467 = vld [vmem:[%s351 + $0x1e18] sm:$0xff]
        %v2468 = vld [vmem:[%s351 + $0x1e20] sm:$0xff]
        %v2469 = vld [vmem:[%s351 + $0x1e28] sm:$0xff]
        %v2470 = vld [vmem:[%s351 + $0x1e30] sm:$0xff]
        %v2471 = vld [vmem:[%s351 + $0x1e38] sm:$0xff]
        %v2472 = vld [vmem:[%s351 + $0x1e40] sm:$0xff]
        %v2473 = vld [vmem:[%s351 + $0x1e48] sm:$0xff]
        %v2474 = vld [vmem:[%s351 + $0x1e50] sm:$0xff]
        %v2475 = vld [vmem:[%s351 + $0x1e58] sm:$0xff]
        %v2476 = vld [vmem:[%s351 + $0x1e60] sm:$0xff]
        %v2477 = vld [vmem:[%s351 + $0x1e68] sm:$0xff]
        %v2478 = vld [vmem:[%s351 + $0x1e70] sm:$0xff]
        %v2479 = vld [vmem:[%s351 + $0x1e78] sm:$0xff]
        %v2480 = vld [vmem:[%s351 + $0x1e80] sm:$0xff]
        %v2481 = vld [vmem:[%s351 + $0x1e88] sm:$0xff]
        %v2482 = vld [vmem:[%s351 + $0x1e90] sm:$0xff]
        %v2483 = vld [vmem:[%s351 + $0x1e98] sm:$0xff]
        %v2484 = vld [vmem:[%s351 + $0x1ea0] sm:$0xff]
        %v2485 = vld [vmem:[%s351 + $0x1ea8] sm:$0xff]
        %v2486 = vld [vmem:[%s351 + $0x1eb0] sm:$0xff]
        %v2487 = vld [vmem:[%s351 + $0x1eb8] sm:$0xff]
        %v2488 = vld [vmem:[%s351 + $0x1ec0] sm:$0xff]
        %v2489 = vld [vmem:[%s351 + $0x1ec8] sm:$0xff]
        %v2490 = vld [vmem:[%s351 + $0x1ed0] sm:$0xff]
        %v2491 = vld [vmem:[%s351 + $0x1ed8] sm:$0xff]
        %v2492 = vld [vmem:[%s351 + $0x1ee0] sm:$0xff]
        %v2493 = vld [vmem:[%s351 + $0x1ee8] sm:$0xff]
        %v2494 = vld [vmem:[%s351 + $0x1ef0] sm:$0xff]
        %v2495 = vld [vmem:[%s351 + $0x1ef8] sm:$0xff]
        %v2496 = vld [vmem:[%s351 + $0x1f00] sm:$0xff]
        %v2497 = vld [vmem:[%s351 + $0x1f08] sm:$0xff]
        %v2498 = vld [vmem:[%s351 + $0x1f10] sm:$0xff]
        %v2499 = vld [vmem:[%s351 + $0x1f18] sm:$0xff]
        %v2500 = vld [vmem:[%s351 + $0x1f20] sm:$0xff]
        %v2501 = vld [vmem:[%s351 + $0x1f28] sm:$0xff]
        %v2502 = vld [vmem:[%s351 + $0x1f30] sm:$0xff]
        %v2503 = vld [vmem:[%s351 + $0x1f38] sm:$0xff]
        %v2504 = vld [vmem:[%s351 + $0x1f40] sm:$0xff]
        %v2505 = vld [vmem:[%s351 + $0x1f48] sm:$0xff]
        %v2506 = vld [vmem:[%s351 + $0x1f50] sm:$0xff]
        %v2507 = vld [vmem:[%s351 + $0x1f58] sm:$0xff]
        %v2508 = vld [vmem:[%s351 + $0x1f60] sm:$0xff]
        %v2509 = vld [vmem:[%s351 + $0x1f68] sm:$0xff]
        %v2510 = vld [vmem:[%s351 + $0x1f70] sm:$0xff]
        %v2511 = vld [vmem:[%s351 + $0x1f78] sm:$0xff]
        %v2512 = vld [vmem:[%s351 + $0x1f80] sm:$0xff]
        %v2513 = vld [vmem:[%s351 + $0x1f88] sm:$0xff]
        %v2514 = vld [vmem:[%s351 + $0x1f90] sm:$0xff]
        %v2515 = vld [vmem:[%s351 + $0x1f98] sm:$0xff]
        %v2516 = vld [vmem:[%s351 + $0x1fa0] sm:$0xff]
        %v2517 = vld [vmem:[%s351 + $0x1fa8] sm:$0xff]
        %v2518 = vld [vmem:[%s351 + $0x1fb0] sm:$0xff]
        %v2519 = vld [vmem:[%s351 + $0x1fb8] sm:$0xff]
        %v2520 = vld [vmem:[%s351 + $0x1fc0] sm:$0xff]
        %v2521 = vld [vmem:[%s351 + $0x1fc8] sm:$0xff]
        %v2522 = vld [vmem:[%s351 + $0x1fd0] sm:$0xff]
        %v2523 = vld [vmem:[%s351 + $0x1fd8] sm:$0xff]
        %v2524 = vld [vmem:[%s351 + $0x1fe0] sm:$0xff]
        %v2525 = vld [vmem:[%s351 + $0x1fe8] sm:$0xff]
        %v2526 = vld [vmem:[%s351 + $0x1ff0] sm:$0xff]
        %v2527 = vld [vmem:[%s351 + $0x1ff8] sm:$0xff]
        %v2528 = vld [vmem:[%s351 + $0x2000] sm:$0xff]
        %v2529 = vld [vmem:[%s351 + $0x2008] sm:$0xff]
        %v2530 = vld [vmem:[%s351 + $0x2010] sm:$0xff]
        %v2531 = vld [vmem:[%s351 + $0x2018] sm:$0xff]
        %v2532 = vld [vmem:[%s351 + $0x2020] sm:$0xff]
        %v2533 = vld [vmem:[%s351 + $0x2028] sm:$0xff]
        %v2534 = vld [vmem:[%s351 + $0x2030] sm:$0xff]
        %v2535 = vld [vmem:[%s351 + $0x2038] sm:$0xff]
        %v2536 = vld [vmem:[%s351 + $0x2040] sm:$0xff]
        %v2537 = vld [vmem:[%s351 + $0x2048] sm:$0xff]
        %v2538 = vld [vmem:[%s351 + $0x2050] sm:$0xff]
        %v2539 = vld [vmem:[%s351 + $0x2058] sm:$0xff]
        %v2540 = vld [vmem:[%s351 + $0x2060] sm:$0xff]
        %v2541 = vld [vmem:[%s351 + $0x2068] sm:$0xff]
        %v2542 = vld [vmem:[%s351 + $0x2070] sm:$0xff]
        %v2543 = vld [vmem:[%s351 + $0x2078] sm:$0xff]
        %v2544 = vld [vmem:[%s351 + $0x2080] sm:$0xff]
        %v2545 = vld [vmem:[%s351 + $0x2088] sm:$0xff]
        %v2546 = vld [vmem:[%s351 + $0x2090] sm:$0xff]
        %v2547 = vld [vmem:[%s351 + $0x2098] sm:$0xff]
        %v2548 = vld [vmem:[%s351 + $0x20a0] sm:$0xff]
        %v2549 = vld [vmem:[%s351 + $0x20a8] sm:$0xff]
        %v2550 = vld [vmem:[%s351 + $0x20b0] sm:$0xff]
        %v2551 = vld [vmem:[%s351 + $0x20b8] sm:$0xff]
        %v2552 = vld [vmem:[%s351 + $0x20c0] sm:$0xff]
        %v2553 = vld [vmem:[%s351 + $0x20c8] sm:$0xff]
        %v2554 = vld [vmem:[%s351 + $0x20d0] sm:$0xff]
        %v2555 = vld [vmem:[%s351 + $0x20d8] sm:$0xff]
        %v2556 = vld [vmem:[%s351 + $0x20e0] sm:$0xff]
        %v2557 = vld [vmem:[%s351 + $0x20e8] sm:$0xff]
        %v2558 = vld [vmem:[%s351 + $0x20f0] sm:$0xff]
        %v2559 = vld [vmem:[%s351 + $0x20f8] sm:$0xff]
        %v2560 = vld [vmem:[%s351 + $0x2100] sm:$0xff]
        %v2561 = vld [vmem:[%s351 + $0x2108] sm:$0xff]
        %v2562 = vld [vmem:[%s351 + $0x2110] sm:$0xff]
        %v2563 = vld [vmem:[%s351 + $0x2118] sm:$0xff]
        %v2564 = vld [vmem:[%s351 + $0x2120] sm:$0xff]
        %v2565 = vld [vmem:[%s351 + $0x2128] sm:$0xff]
        %v2566 = vld [vmem:[%s351 + $0x2130] sm:$0xff]
        %v2567 = vld [vmem:[%s351 + $0x2138] sm:$0xff]
        %v2568 = vld [vmem:[%s351 + $0x2140] sm:$0xff]
        %v2569 = vld [vmem:[%s351 + $0x2148] sm:$0xff]
        %v2570 = vld [vmem:[%s351 + $0x2150] sm:$0xff]
        %v2571 = vld [vmem:[%s351 + $0x2158] sm:$0xff]
        %v2572 = vld [vmem:[%s351 + $0x2160] sm:$0xff]
        %v2573 = vld [vmem:[%s351 + $0x2168] sm:$0xff]
        %v2574 = vld [vmem:[%s351 + $0x2170] sm:$0xff]
        %v2575 = vld [vmem:[%s351 + $0x2178] sm:$0xff]
        %v2576 = vld [vmem:[%s351 + $0x2180] sm:$0xff]
        %v2577 = vld [vmem:[%s351 + $0x2188] sm:$0xff]
        %v2578 = vld [vmem:[%s351 + $0x2190] sm:$0xff]
        %v2579 = vld [vmem:[%s351 + $0x2198] sm:$0xff]
        %v2580 = vld [vmem:[%s351 + $0x21a0] sm:$0xff]
        %v2581 = vld [vmem:[%s351 + $0x21a8] sm:$0xff]
        %v2582 = vld [vmem:[%s351 + $0x21b0] sm:$0xff]
        %v2583 = vld [vmem:[%s351 + $0x21b8] sm:$0xff]
        %v2584 = vld [vmem:[%s351 + $0x21c0] sm:$0xff]
        %v2585 = vld [vmem:[%s351 + $0x21c8] sm:$0xff]
        %v2586 = vld [vmem:[%s351 + $0x21d0] sm:$0xff]
        %v2587 = vld [vmem:[%s351 + $0x21d8] sm:$0xff]
        %v2588 = vld [vmem:[%s351 + $0x21e0] sm:$0xff]
        %v2589 = vld [vmem:[%s351 + $0x21e8] sm:$0xff]
        %v2590 = vld [vmem:[%s351 + $0x21f0] sm:$0xff]
        %v2591 = vld [vmem:[%s351 + $0x21f8] sm:$0xff]
        %v2592 = vld [vmem:[%s351 + $0x2200] sm:$0xff]
        %v2593 = vld [vmem:[%s351 + $0x2208] sm:$0xff]
        %v2594 = vld [vmem:[%s351 + $0x2210] sm:$0xff]
        %v2595 = vld [vmem:[%s351 + $0x2218] sm:$0xff]
        %v2596 = vld [vmem:[%s351 + $0x2220] sm:$0xff]
        %v2597 = vld [vmem:[%s351 + $0x2228] sm:$0xff]
        %v2598 = vld [vmem:[%s351 + $0x2230] sm:$0xff]
        %v2599 = vld [vmem:[%s351 + $0x2238] sm:$0xff]
        %v2600 = vld [vmem:[%s351 + $0x2240] sm:$0xff]
        %v2601 = vld [vmem:[%s351 + $0x2248] sm:$0xff]
        %v2602 = vld [vmem:[%s351 + $0x2250] sm:$0xff]
        %v2603 = vld [vmem:[%s351 + $0x2258] sm:$0xff]
        %v2604 = vld [vmem:[%s351 + $0x2260] sm:$0xff]
        %v2605 = vld [vmem:[%s351 + $0x2268] sm:$0xff]
        %v2606 = vld [vmem:[%s351 + $0x2270] sm:$0xff]
        %v2607 = vld [vmem:[%s351 + $0x2278] sm:$0xff]
        %v2608 = vld [vmem:[%s351 + $0x2280] sm:$0xff]
        %v2609 = vld [vmem:[%s351 + $0x2288] sm:$0xff]
        %v2610 = vld [vmem:[%s351 + $0x2290] sm:$0xff]
        %v2611 = vld [vmem:[%s351 + $0x2298] sm:$0xff]
        %v2612 = vld [vmem:[%s351 + $0x22a0] sm:$0xff]
        %v2613 = vld [vmem:[%s351 + $0x22a8] sm:$0xff]
        %v2614 = vld [vmem:[%s351 + $0x22b0] sm:$0xff]
        %v2615 = vld [vmem:[%s351 + $0x22b8] sm:$0xff]
        %v2616 = vld [vmem:[%s351 + $0x22c0] sm:$0xff]
        %v2617 = vld [vmem:[%s351 + $0x22c8] sm:$0xff]
        %v2618 = vld [vmem:[%s351 + $0x22d0] sm:$0xff]
        %v2619 = vld [vmem:[%s351 + $0x22d8] sm:$0xff]
        %v2620 = vld [vmem:[%s351 + $0x22e0] sm:$0xff]
        %v2621 = vld [vmem:[%s351 + $0x22e8] sm:$0xff]
        %v2622 = vld [vmem:[%s351 + $0x22f0] sm:$0xff]
        %v2623 = vld [vmem:[%s351 + $0x22f8] sm:$0xff]
        %v2624 = vld [vmem:[%s351 + $0x2300] sm:$0xff]
        %v2625 = vld [vmem:[%s351 + $0x2308] sm:$0xff]
        %v2626 = vld [vmem:[%s351 + $0x2310] sm:$0xff]
        %v2627 = vld [vmem:[%s351 + $0x2318] sm:$0xff]
        %v2628 = vld [vmem:[%s351 + $0x2320] sm:$0xff]
        %v2629 = vld [vmem:[%s351 + $0x2328] sm:$0xff]
        %v2630 = vld [vmem:[%s351 + $0x2330] sm:$0xff]
        %v2631 = vld [vmem:[%s351 + $0x2338] sm:$0xff]
        %v2632 = vld [vmem:[%s351 + $0x2340] sm:$0xff]
        %v2633 = vld [vmem:[%s351 + $0x2348] sm:$0xff]
        %v2634 = vld [vmem:[%s351 + $0x2350] sm:$0xff]
        %v2635 = vld [vmem:[%s351 + $0x2358] sm:$0xff]
        %v2636 = vld [vmem:[%s351 + $0x2360] sm:$0xff]
        %v2637 = vld [vmem:[%s351 + $0x2368] sm:$0xff]
        %v2638 = vld [vmem:[%s351 + $0x2370] sm:$0xff]
        %v2639 = vld [vmem:[%s351 + $0x2378] sm:$0xff]
        %v2640 = vld [vmem:[%s351 + $0x2380] sm:$0xff]
        %v2641 = vld [vmem:[%s351 + $0x2388] sm:$0xff]
        %v2642 = vld [vmem:[%s351 + $0x2390] sm:$0xff]
        %v2643 = vld [vmem:[%s351 + $0x2398] sm:$0xff]
        %v2644 = vld [vmem:[%s351 + $0x23a0] sm:$0xff]
        %v2645 = vld [vmem:[%s351 + $0x23a8] sm:$0xff]
        %v2646 = vld [vmem:[%s351 + $0x23b0] sm:$0xff]
        %v2647 = vld [vmem:[%s351 + $0x23b8] sm:$0xff]
        %v2648 = vld [vmem:[%s351 + $0x23c0] sm:$0xff]
        %v2649 = vld [vmem:[%s351 + $0x23c8] sm:$0xff]
        %v2650 = vld [vmem:[%s351 + $0x23d0] sm:$0xff]
        %v2651 = vld [vmem:[%s351 + $0x23d8] sm:$0xff]
        %v2652 = vld [vmem:[%s351 + $0x23e0] sm:$0xff]
        %v2653 = vld [vmem:[%s351 + $0x23e8] sm:$0xff]
        %v2654 = vld [vmem:[%s351 + $0x23f0] sm:$0xff]
        %v2655 = vld [vmem:[%s351 + $0x23f8] sm:$0xff]
        %v2656 = vld [vmem:[%s351 + $0x2400] sm:$0xff]
        %v2657 = vld [vmem:[%s351 + $0x2408] sm:$0xff]
        %v2658 = vld [vmem:[%s351 + $0x2410] sm:$0xff]
        %v2659 = vld [vmem:[%s351 + $0x2418] sm:$0xff]
        %v2660 = vld [vmem:[%s351 + $0x2420] sm:$0xff]
        %v2661 = vld [vmem:[%s351 + $0x2428] sm:$0xff]
        %v2662 = vld [vmem:[%s351 + $0x2430] sm:$0xff]
        %v2663 = vld [vmem:[%s351 + $0x2438] sm:$0xff]
        %v2664 = vld [vmem:[%s351 + $0x2440] sm:$0xff]
        %v2665 = vld [vmem:[%s351 + $0x2448] sm:$0xff]
        %v2666 = vld [vmem:[%s351 + $0x2450] sm:$0xff]
        %v2667 = vld [vmem:[%s351 + $0x2458] sm:$0xff]
        %v2668 = vld [vmem:[%s351 + $0x2460] sm:$0xff]
        %v2669 = vld [vmem:[%s351 + $0x2468] sm:$0xff]
        %v2670 = vld [vmem:[%s351 + $0x2470] sm:$0xff]
        %v2671 = vld [vmem:[%s351 + $0x2478] sm:$0xff]
        %v2672 = vld [vmem:[%s351 + $0x2480] sm:$0xff]
        %v2673 = vld [vmem:[%s351 + $0x2488] sm:$0xff]
        %v2674 = vld [vmem:[%s351 + $0x2490] sm:$0xff]
        %v2675 = vld [vmem:[%s351 + $0x2498] sm:$0xff]
        %v2676 = vld [vmem:[%s351 + $0x24a0] sm:$0xff]
        %v2677 = vld [vmem:[%s351 + $0x24a8] sm:$0xff]
        %v2678 = vld [vmem:[%s351 + $0x24b0] sm:$0xff]
        %v2679 = vld [vmem:[%s351 + $0x24b8] sm:$0xff]
        %v2680 = vld [vmem:[%s351 + $0x24c0] sm:$0xff]
        %v2681 = vld [vmem:[%s351 + $0x24c8] sm:$0xff]
        %v2682 = vld [vmem:[%s351 + $0x24d0] sm:$0xff]
        %v2683 = vld [vmem:[%s351 + $0x24d8] sm:$0xff]
        %v2684 = vld [vmem:[%s351 + $0x24e0] sm:$0xff]
        %v2685 = vld [vmem:[%s351 + $0x24e8] sm:$0xff]
        %v2686 = vld [vmem:[%s351 + $0x24f0] sm:$0xff]
        %v2687 = vld [vmem:[%s351 + $0x24f8] sm:$0xff]
        %v2688 = vld [vmem:[%s351 + $0x2500] sm:$0xff]
        %v2689 = vld [vmem:[%s351 + $0x2508] sm:$0xff]
        %v2690 = vld [vmem:[%s351 + $0x2510] sm:$0xff]
        %v2691 = vld [vmem:[%s351 + $0x2518] sm:$0xff]
        %v2692 = vld [vmem:[%s351 + $0x2520] sm:$0xff]
        %v2693 = vld [vmem:[%s351 + $0x2528] sm:$0xff]
        %v2694 = vld [vmem:[%s351 + $0x2530] sm:$0xff]
        %v2695 = vld [vmem:[%s351 + $0x2538] sm:$0xff]
        %v2696 = vld [vmem:[%s351 + $0x2540] sm:$0xff]
        %v2697 = vld [vmem:[%s351 + $0x2548] sm:$0xff]
        %v2698 = vld [vmem:[%s351 + $0x2550] sm:$0xff]
        %v2699 = vld [vmem:[%s351 + $0x2558] sm:$0xff]
        %v2700 = vld [vmem:[%s351 + $0x2560] sm:$0xff]
        %v2701 = vld [vmem:[%s351 + $0x2568] sm:$0xff]
        %v2702 = vld [vmem:[%s351 + $0x2570] sm:$0xff]
        %v2703 = vld [vmem:[%s351 + $0x2578] sm:$0xff]
        %v2704 = vld [vmem:[%s351 + $0x2580] sm:$0xff]
        %v2705 = vld [vmem:[%s351 + $0x2588] sm:$0xff]
        %v2706 = vld [vmem:[%s351 + $0x2590] sm:$0xff]
        %v2707 = vld [vmem:[%s351 + $0x2598] sm:$0xff]
        %v2708 = vld [vmem:[%s351 + $0x25a0] sm:$0xff]
        %v2709 = vld [vmem:[%s351 + $0x25a8] sm:$0xff]
        %v2710 = vld [vmem:[%s351 + $0x25b0] sm:$0xff]
        %v2711 = vld [vmem:[%s351 + $0x25b8] sm:$0xff]
        %v2712 = vld [vmem:[%s351 + $0x25c0] sm:$0xff]
        %v2713 = vld [vmem:[%s351 + $0x25c8] sm:$0xff]
        %v2714 = vld [vmem:[%s351 + $0x25d0] sm:$0xff]
        %v2715 = vld [vmem:[%s351 + $0x25d8] sm:$0xff]
        %v2716 = vld [vmem:[%s351 + $0x25e0] sm:$0xff]
        %v2717 = vld [vmem:[%s351 + $0x25e8] sm:$0xff]
        %v2718 = vld [vmem:[%s351 + $0x25f0] sm:$0xff]
        %v2719 = vld [vmem:[%s351 + $0x25f8] sm:$0xff]
        %v2720 = vld [vmem:[%s351 + $0x2600] sm:$0xff]
        %v2721 = vld [vmem:[%s351 + $0x2608] sm:$0xff]
        %v2722 = vld [vmem:[%s351 + $0x2610] sm:$0xff]
        %v2723 = vld [vmem:[%s351 + $0x2618] sm:$0xff]
        %v2724 = vld [vmem:[%s351 + $0x2620] sm:$0xff]
        %v2725 = vld [vmem:[%s351 + $0x2628] sm:$0xff]
        %v2726 = vld [vmem:[%s351 + $0x2630] sm:$0xff]
        %v2727 = vld [vmem:[%s351 + $0x2638] sm:$0xff]
        %v2728 = vld [vmem:[%s351 + $0x2640] sm:$0xff]
        %v2729 = vld [vmem:[%s351 + $0x2648] sm:$0xff]
        %v2730 = vld [vmem:[%s351 + $0x2650] sm:$0xff]
        %v2731 = vld [vmem:[%s351 + $0x2658] sm:$0xff]
        %v2732 = vld [vmem:[%s351 + $0x2660] sm:$0xff]
        %v2733 = vld [vmem:[%s351 + $0x2668] sm:$0xff]
        %v2734 = vld [vmem:[%s351 + $0x2670] sm:$0xff]
        %v2735 = vld [vmem:[%s351 + $0x2678] sm:$0xff]
        %v2736 = vld [vmem:[%s351 + $0x2680] sm:$0xff]
        %v2737 = vld [vmem:[%s351 + $0x2688] sm:$0xff]
        %v2738 = vld [vmem:[%s351 + $0x2690] sm:$0xff]
        %v2739 = vld [vmem:[%s351 + $0x2698] sm:$0xff]
        %v2740 = vld [vmem:[%s351 + $0x26a0] sm:$0xff]
        %v2741 = vld [vmem:[%s351 + $0x26a8] sm:$0xff]
        %v2742 = vld [vmem:[%s351 + $0x26b0] sm:$0xff]
        %v2743 = vld [vmem:[%s351 + $0x26b8] sm:$0xff]
        %v2744 = vld [vmem:[%s351 + $0x26c0] sm:$0xff]
        %v2745 = vld [vmem:[%s351 + $0x26c8] sm:$0xff]
        %v2746 = vld [vmem:[%s351 + $0x26d0] sm:$0xff]
        %v2747 = vld [vmem:[%s351 + $0x26d8] sm:$0xff]
        %v2748 = vld [vmem:[%s351 + $0x26e0] sm:$0xff]
        %v2749 = vld [vmem:[%s351 + $0x26e8] sm:$0xff]
        %v2750 = vld [vmem:[%s351 + $0x26f0] sm:$0xff]
        %v2751 = vld [vmem:[%s351 + $0x26f8] sm:$0xff]
        %v2752 = vld [vmem:[%s351 + $0x2700] sm:$0xff]
        %v2753 = vld [vmem:[%s351 + $0x2708] sm:$0xff]
        %v2754 = vld [vmem:[%s351 + $0x2710] sm:$0xff]
        %v2755 = vld [vmem:[%s351 + $0x2718] sm:$0xff]
        %v2756 = vld [vmem:[%s351 + $0x2720] sm:$0xff]
        %v2757 = vld [vmem:[%s351 + $0x2728] sm:$0xff]
        %v2758 = vld [vmem:[%s351 + $0x2730] sm:$0xff]
        %v2759 = vld [vmem:[%s351 + $0x2738] sm:$0xff]
        %v2760 = vld [vmem:[%s351 + $0x2740] sm:$0xff]
        %v2761 = vld [vmem:[%s351 + $0x2748] sm:$0xff]
        %v2762 = vld [vmem:[%s351 + $0x2750] sm:$0xff]
        %v2763 = vld [vmem:[%s351 + $0x2758] sm:$0xff]
        %v2764 = vld [vmem:[%s351 + $0x2760] sm:$0xff]
        %v2765 = vld [vmem:[%s351 + $0x2768] sm:$0xff]
        %v2766 = vld [vmem:[%s351 + $0x2770] sm:$0xff]
        %v2767 = vld [vmem:[%s351 + $0x2778] sm:$0xff]
        %v2768 = vld [vmem:[%s351 + $0x2780] sm:$0xff]
        %v2769 = vld [vmem:[%s351 + $0x2788] sm:$0xff]
        %v2770 = vld [vmem:[%s351 + $0x2790] sm:$0xff]
        %v2771 = vld [vmem:[%s351 + $0x2798] sm:$0xff]
        %v2772 = vld [vmem:[%s351 + $0x27a0] sm:$0xff]
        %v2773 = vld [vmem:[%s351 + $0x27a8] sm:$0xff]
        %v2774 = vld [vmem:[%s351 + $0x27b0] sm:$0xff]
        %v2775 = vld [vmem:[%s351 + $0x27b8] sm:$0xff]
        %v2776 = vld [vmem:[%s351 + $0x27c0] sm:$0xff]
        %v2777 = vld [vmem:[%s351 + $0x27c8] sm:$0xff]
        %v2778 = vld [vmem:[%s351 + $0x27d0] sm:$0xff]
        %v2779 = vld [vmem:[%s351 + $0x27d8] sm:$0xff]
        %v2780 = vld [vmem:[%s351 + $0x27e0] sm:$0xff]
        %v2781 = vld [vmem:[%s351 + $0x27e8] sm:$0xff]
        %v2782 = vld [vmem:[%s351 + $0x27f0] sm:$0xff]
        %v2783 = vld [vmem:[%s351 + $0x27f8] sm:$0xff]
        %v2784 = vld [vmem:[%s351 + $0x2800] sm:$0xff]
        %v2785 = vld [vmem:[%s351 + $0x2808] sm:$0xff]
        %v2786 = vld [vmem:[%s351 + $0x2810] sm:$0xff]
        %v2787 = vld [vmem:[%s351 + $0x2818] sm:$0xff]
        %v2788 = vld [vmem:[%s351 + $0x2820] sm:$0xff]
        %v2789 = vld [vmem:[%s351 + $0x2828] sm:$0xff]
        %v2790 = vld [vmem:[%s351 + $0x2830] sm:$0xff]
        %v2791 = vld [vmem:[%s351 + $0x2838] sm:$0xff]
        %v2792 = vld [vmem:[%s351 + $0x2840] sm:$0xff]
        %v2793 = vld [vmem:[%s351 + $0x2848] sm:$0xff]
        %v2794 = vld [vmem:[%s351 + $0x2850] sm:$0xff]
        %v2795 = vld [vmem:[%s351 + $0x2858] sm:$0xff]
        %v2796 = vld [vmem:[%s351 + $0x2860] sm:$0xff]
        %v2797 = vld [vmem:[%s351 + $0x2868] sm:$0xff]
        %v2798 = vld [vmem:[%s351 + $0x2870] sm:$0xff]
        %v2799 = vld [vmem:[%s351 + $0x2878] sm:$0xff]
        %v2800 = vld [vmem:[%s351 + $0x2880] sm:$0xff]
        %v2801 = vld [vmem:[%s351 + $0x2888] sm:$0xff]
        %v2802 = vld [vmem:[%s351 + $0x2890] sm:$0xff]
        %v2803 = vld [vmem:[%s351 + $0x2898] sm:$0xff]
        %v2804 = vld [vmem:[%s351 + $0x28a0] sm:$0xff]
        %v2805 = vld [vmem:[%s351 + $0x28a8] sm:$0xff]
        %v2806 = vld [vmem:[%s351 + $0x28b0] sm:$0xff]
        %v2807 = vld [vmem:[%s351 + $0x28b8] sm:$0xff]
        %v2808 = vld [vmem:[%s351 + $0x28c0] sm:$0xff]
        %v2809 = vld [vmem:[%s351 + $0x28c8] sm:$0xff]
        %v2810 = vld [vmem:[%s351 + $0x28d0] sm:$0xff]
        %v2811 = vld [vmem:[%s351 + $0x28d8] sm:$0xff]
        %v2812 = vld [vmem:[%s351 + $0x28e0] sm:$0xff]
        %v2813 = vld [vmem:[%s351 + $0x28e8] sm:$0xff]
        %v2814 = vld [vmem:[%s351 + $0x28f0] sm:$0xff]
        %v2815 = vld [vmem:[%s351 + $0x28f8] sm:$0xff]
        %v2816 = vld [vmem:[%s351 + $0x2900] sm:$0xff]
        %v2817 = vld [vmem:[%s351 + $0x2908] sm:$0xff]
        %v2818 = vld [vmem:[%s351 + $0x2910] sm:$0xff]
        %v2819 = vld [vmem:[%s351 + $0x2918] sm:$0xff]
        %v2820 = vld [vmem:[%s351 + $0x2920] sm:$0xff]
        %v2821 = vld [vmem:[%s351 + $0x2928] sm:$0xff]
        %v2822 = vld [vmem:[%s351 + $0x2930] sm:$0xff]
        %v2823 = vld [vmem:[%s351 + $0x2938] sm:$0xff]
        %v2824 = vld [vmem:[%s351 + $0x2940] sm:$0xff]
        %v2825 = vld [vmem:[%s351 + $0x2948] sm:$0xff]
        %v2826 = vld [vmem:[%s351 + $0x2950] sm:$0xff]
        %v2827 = vld [vmem:[%s351 + $0x2958] sm:$0xff]
        %v2828 = vld [vmem:[%s351 + $0x2960] sm:$0xff]
        %v2829 = vld [vmem:[%s351 + $0x2968] sm:$0xff]
        %v2830 = vld [vmem:[%s351 + $0x2970] sm:$0xff]
        %v2831 = vld [vmem:[%s351 + $0x2978] sm:$0xff]
        %v2832 = vld [vmem:[%s351 + $0x2980] sm:$0xff]
        %v2833 = vld [vmem:[%s351 + $0x2988] sm:$0xff]
        %v2834 = vld [vmem:[%s351 + $0x2990] sm:$0xff]
        %v2835 = vld [vmem:[%s351 + $0x2998] sm:$0xff]
        %v2836 = vld [vmem:[%s351 + $0x29a0] sm:$0xff]
        %v2837 = vld [vmem:[%s351 + $0x29a8] sm:$0xff]
        %v2838 = vld [vmem:[%s351 + $0x29b0] sm:$0xff]
        %v2839 = vld [vmem:[%s351 + $0x29b8] sm:$0xff]
        %v2840 = vld [vmem:[%s351 + $0x29c0] sm:$0xff]
        %v2841 = vld [vmem:[%s351 + $0x29c8] sm:$0xff]
        %v2842 = vld [vmem:[%s351 + $0x29d0] sm:$0xff]
        %v2843 = vld [vmem:[%s351 + $0x29d8] sm:$0xff]
        %v2844 = vld [vmem:[%s351 + $0x29e0] sm:$0xff]
        %v2845 = vld [vmem:[%s351 + $0x29e8] sm:$0xff]
        %v2846 = vld [vmem:[%s351 + $0x29f0] sm:$0xff]
        %v2847 = vld [vmem:[%s351 + $0x29f8] sm:$0xff]
        %v2848 = vld [vmem:[%s351 + $0x2a00] sm:$0xff]
        %v2849 = vld [vmem:[%s351 + $0x2a08] sm:$0xff]
        %v2850 = vld [vmem:[%s351 + $0x2a10] sm:$0xff]
        %v2851 = vld [vmem:[%s351 + $0x2a18] sm:$0xff]
        %v2852 = vld [vmem:[%s351 + $0x2a20] sm:$0xff]
        %v2853 = vld [vmem:[%s351 + $0x2a28] sm:$0xff]
        %v2854 = vld [vmem:[%s351 + $0x2a30] sm:$0xff]
        %v2855 = vld [vmem:[%s351 + $0x2a38] sm:$0xff]
        %v2856 = vld [vmem:[%s351 + $0x2a40] sm:$0xff]
        %v2857 = vld [vmem:[%s351 + $0x2a48] sm:$0xff]
        %v2858 = vld [vmem:[%s351 + $0x2a50] sm:$0xff]
        %v2859 = vld [vmem:[%s351 + $0x2a58] sm:$0xff]
        %v2860 = vld [vmem:[%s351 + $0x2a60] sm:$0xff]
        %v2861 = vld [vmem:[%s351 + $0x2a68] sm:$0xff]
        %v2862 = vld [vmem:[%s351 + $0x2a70] sm:$0xff]
        %v2863 = vld [vmem:[%s351 + $0x2a78] sm:$0xff]
        %v2864 = vld [vmem:[%s351 + $0x2a80] sm:$0xff]
        %v2865 = vld [vmem:[%s351 + $0x2a88] sm:$0xff]
        %v2866 = vld [vmem:[%s351 + $0x2a90] sm:$0xff]
        %v2867 = vld [vmem:[%s351 + $0x2a98] sm:$0xff]
        %v2868 = vld [vmem:[%s351 + $0x2aa0] sm:$0xff]
        %v2869 = vld [vmem:[%s351 + $0x2aa8] sm:$0xff]
        %v2870 = vld [vmem:[%s351 + $0x2ab0] sm:$0xff]
        %v2871 = vld [vmem:[%s351 + $0x2ab8] sm:$0xff]
        %v2872 = vld [vmem:[%s351 + $0x2ac0] sm:$0xff]
        %v2873 = vld [vmem:[%s351 + $0x2ac8] sm:$0xff]
        %v2874 = vld [vmem:[%s351 + $0x2ad0] sm:$0xff]
        %v2875 = vld [vmem:[%s351 + $0x2ad8] sm:$0xff]
        %v2876 = vld [vmem:[%s351 + $0x2ae0] sm:$0xff]
        %v2877 = vld [vmem:[%s351 + $0x2ae8] sm:$0xff]
        %v2878 = vld [vmem:[%s351 + $0x2af0] sm:$0xff]
        %v2879 = vld [vmem:[%s351 + $0x2af8] sm:$0xff]
        %v2880 = vld [vmem:[%s351 + $0x2b00] sm:$0xff]
        %v2881 = vld [vmem:[%s351 + $0x2b08] sm:$0xff]
        %v2882 = vld [vmem:[%s351 + $0x2b10] sm:$0xff]
        %v2883 = vld [vmem:[%s351 + $0x2b18] sm:$0xff]
        %v2884 = vld [vmem:[%s351 + $0x2b20] sm:$0xff]
        %v2885 = vld [vmem:[%s351 + $0x2b28] sm:$0xff]
        %v2886 = vld [vmem:[%s351 + $0x2b30] sm:$0xff]
        %v2887 = vld [vmem:[%s351 + $0x2b38] sm:$0xff]
        %v2888 = vld [vmem:[%s351 + $0x2b40] sm:$0xff]
        %v2889 = vld [vmem:[%s351 + $0x2b48] sm:$0xff]
        %v2890 = vld [vmem:[%s351 + $0x2b50] sm:$0xff]
        %v2891 = vld [vmem:[%s351 + $0x2b58] sm:$0xff]
        %v2892 = vld [vmem:[%s351 + $0x2b60] sm:$0xff]
        %v2893 = vld [vmem:[%s351 + $0x2b68] sm:$0xff]
        %v2894 = vld [vmem:[%s351 + $0x2b70] sm:$0xff]
        %v2895 = vld [vmem:[%s351 + $0x2b78] sm:$0xff]
        %v2896 = vld [vmem:[%s351 + $0x2b80] sm:$0xff]
        %v2897 = vld [vmem:[%s351 + $0x2b88] sm:$0xff]
        %v2898 = vld [vmem:[%s351 + $0x2b90] sm:$0xff]
        %v2899 = vld [vmem:[%s351 + $0x2b98] sm:$0xff]
        %v2900 = vld [vmem:[%s351 + $0x2ba0] sm:$0xff]
        %v2901 = vld [vmem:[%s351 + $0x2ba8] sm:$0xff]
        %v2902 = vld [vmem:[%s351 + $0x2bb0] sm:$0xff]
        %v2903 = vld [vmem:[%s351 + $0x2bb8] sm:$0xff]
        %v2904 = vld [vmem:[%s351 + $0x2bc0] sm:$0xff]
        %v2905 = vld [vmem:[%s351 + $0x2bc8] sm:$0xff]
        %v2906 = vld [vmem:[%s351 + $0x2bd0] sm:$0xff]
        %v2907 = vld [vmem:[%s351 + $0x2bd8] sm:$0xff]
        %v2908 = vld [vmem:[%s351 + $0x2be0] sm:$0xff]
        %v2909 = vld [vmem:[%s351 + $0x2be8] sm:$0xff]
        %v2910 = vld [vmem:[%s351 + $0x2bf0] sm:$0xff]
        %v2911 = vld [vmem:[%s351 + $0x2bf8] sm:$0xff]
        %v2912 = vld [vmem:[%s351 + $0x2c00] sm:$0xff]
        %v2913 = vld [vmem:[%s351 + $0x2c08] sm:$0xff]
        %v2914 = vld [vmem:[%s351 + $0x2c10] sm:$0xff]
        %v2915 = vld [vmem:[%s351 + $0x2c18] sm:$0xff]
        %v2916 = vld [vmem:[%s351 + $0x2c20] sm:$0xff]
        %v2917 = vld [vmem:[%s351 + $0x2c28] sm:$0xff]
        %v2918 = vld [vmem:[%s351 + $0x2c30] sm:$0xff]
        %v2919 = vld [vmem:[%s351 + $0x2c38] sm:$0xff]
        %v2920 = vld [vmem:[%s351 + $0x2c40] sm:$0xff]
        %v2921 = vld [vmem:[%s351 + $0x2c48] sm:$0xff]
        %v2922 = vld [vmem:[%s351 + $0x2c50] sm:$0xff]
        %v2923 = vld [vmem:[%s351 + $0x2c58] sm:$0xff]
        %v2924 = vld [vmem:[%s351 + $0x2c60] sm:$0xff]
        %v2925 = vld [vmem:[%s351 + $0x2c68] sm:$0xff]
        %v2926 = vld [vmem:[%s351 + $0x2c70] sm:$0xff]
        %v2927 = vld [vmem:[%s351 + $0x2c78] sm:$0xff]
        %v2928 = vld [vmem:[%s351 + $0x2c80] sm:$0xff]
        %v2929 = vld [vmem:[%s351 + $0x2c88] sm:$0xff]
        %v2930 = vld [vmem:[%s351 + $0x2c90] sm:$0xff]
        %v2931 = vld [vmem:[%s351 + $0x2c98] sm:$0xff]
        %v2932 = vld [vmem:[%s351 + $0x2ca0] sm:$0xff]
        %v2933 = vld [vmem:[%s351 + $0x2ca8] sm:$0xff]
        %v2934 = vld [vmem:[%s351 + $0x2cb0] sm:$0xff]
        %v2935 = vld [vmem:[%s351 + $0x2cb8] sm:$0xff]
        %v2936 = vld [vmem:[%s351 + $0x2cc0] sm:$0xff]
        %v2937 = vld [vmem:[%s351 + $0x2cc8] sm:$0xff]
        %v2938 = vld [vmem:[%s351 + $0x2cd0] sm:$0xff]
        %v2939 = vld [vmem:[%s351 + $0x2cd8] sm:$0xff]
        %v2940 = vld [vmem:[%s351 + $0x2ce0] sm:$0xff]
        %v2941 = vld [vmem:[%s351 + $0x2ce8] sm:$0xff]
        %v2942 = vld [vmem:[%s351 + $0x2cf0] sm:$0xff]
        %v2943 = vld [vmem:[%s351 + $0x2cf8] sm:$0xff]
        %v2944 = vld [vmem:[%s351 + $0x2d00] sm:$0xff]
        %v2945 = vld [vmem:[%s351 + $0x2d08] sm:$0xff]
        %v2946 = vld [vmem:[%s351 + $0x2d10] sm:$0xff]
        %v2947 = vld [vmem:[%s351 + $0x2d18] sm:$0xff]
        %v2948 = vld [vmem:[%s351 + $0x2d20] sm:$0xff]
        %v2949 = vld [vmem:[%s351 + $0x2d28] sm:$0xff]
        %v2950 = vld [vmem:[%s351 + $0x2d30] sm:$0xff]
        %v2951 = vld [vmem:[%s351 + $0x2d38] sm:$0xff]
        %v2952 = vld [vmem:[%s351 + $0x2d40] sm:$0xff]
        %v2953 = vld [vmem:[%s351 + $0x2d48] sm:$0xff]
        %v2954 = vld [vmem:[%s351 + $0x2d50] sm:$0xff]
        %v2955 = vld [vmem:[%s351 + $0x2d58] sm:$0xff]
        %v2956 = vld [vmem:[%s351 + $0x2d60] sm:$0xff]
        %v2957 = vld [vmem:[%s351 + $0x2d68] sm:$0xff]
        %v2958 = vld [vmem:[%s351 + $0x2d70] sm:$0xff]
        %v2959 = vld [vmem:[%s351 + $0x2d78] sm:$0xff]
        %v2960 = vld [vmem:[%s351 + $0x2d80] sm:$0xff]
        %v2961 = vld [vmem:[%s351 + $0x2d88] sm:$0xff]
        %v2962 = vld [vmem:[%s351 + $0x2d90] sm:$0xff]
        %v2963 = vld [vmem:[%s351 + $0x2d98] sm:$0xff]
        %v2964 = vld [vmem:[%s351 + $0x2da0] sm:$0xff]
        %v2965 = vld [vmem:[%s351 + $0x2da8] sm:$0xff]
        %v2966 = vld [vmem:[%s351 + $0x2db0] sm:$0xff]
        %v2967 = vld [vmem:[%s351 + $0x2db8] sm:$0xff]
        %v2968 = vld [vmem:[%s351 + $0x2dc0] sm:$0xff]
        %v2969 = vld [vmem:[%s351 + $0x2dc8] sm:$0xff]
        %v2970 = vld [vmem:[%s351 + $0x2dd0] sm:$0xff]
        %v2971 = vld [vmem:[%s351 + $0x2dd8] sm:$0xff]
        %v2972 = vld [vmem:[%s351 + $0x2de0] sm:$0xff]
        %v2973 = vld [vmem:[%s351 + $0x2de8] sm:$0xff]
        %v2974 = vld [vmem:[%s351 + $0x2df0] sm:$0xff]
        %v2975 = vld [vmem:[%s351 + $0x2df8] sm:$0xff]
        %v2976 = vld [vmem:[%s351 + $0x2e00] sm:$0xff]
        %v2977 = vld [vmem:[%s351 + $0x2e08] sm:$0xff]
        %v2978 = vld [vmem:[%s351 + $0x2e10] sm:$0xff]
        %v2979 = vld [vmem:[%s351 + $0x2e18] sm:$0xff]
        %v2980 = vld [vmem:[%s351 + $0x2e20] sm:$0xff]
        %v2981 = vld [vmem:[%s351 + $0x2e28] sm:$0xff]
        %v2982 = vld [vmem:[%s351 + $0x2e30] sm:$0xff]
        %v2983 = vld [vmem:[%s351 + $0x2e38] sm:$0xff]
        %v2984 = vld [vmem:[%s351 + $0x2e40] sm:$0xff]
        %v2985 = vld [vmem:[%s351 + $0x2e48] sm:$0xff]
        %v2986 = vld [vmem:[%s351 + $0x2e50] sm:$0xff]
        %v2987 = vld [vmem:[%s351 + $0x2e58] sm:$0xff]
        %v2988 = vld [vmem:[%s351 + $0x2e60] sm:$0xff]
        %v2989 = vld [vmem:[%s351 + $0x2e68] sm:$0xff]
        %v2990 = vld [vmem:[%s351 + $0x2e70] sm:$0xff]
        %v2991 = vld [vmem:[%s351 + $0x2e78] sm:$0xff]
        %v2992 = vld [vmem:[%s351 + $0x2e80] sm:$0xff]
        %v2993 = vld [vmem:[%s351 + $0x2e88] sm:$0xff]
        %v2994 = vld [vmem:[%s351 + $0x2e90] sm:$0xff]
        %v2995 = vld [vmem:[%s351 + $0x2e98] sm:$0xff]
        %v2996 = vld [vmem:[%s351 + $0x2ea0] sm:$0xff]
        %v2997 = vld [vmem:[%s351 + $0x2ea8] sm:$0xff]
        %v2998 = vld [vmem:[%s351 + $0x2eb0] sm:$0xff]
        %v2999 = vld [vmem:[%s351 + $0x2eb8] sm:$0xff]
        %v3000 = vld [vmem:[%s351 + $0x2ec0] sm:$0xff]
        %v3001 = vld [vmem:[%s351 + $0x2ec8] sm:$0xff]
        %v3002 = vld [vmem:[%s351 + $0x2ed0] sm:$0xff]
        %v3003 = vld [vmem:[%s351 + $0x2ed8] sm:$0xff]
        %v3004 = vld [vmem:[%s351 + $0x2ee0] sm:$0xff]
        %v3005 = vld [vmem:[%s351 + $0x2ee8] sm:$0xff]
        %v3006 = vld [vmem:[%s351 + $0x2ef0] sm:$0xff]
        %v3007 = vld [vmem:[%s351 + $0x2ef8] sm:$0xff]
        %v3008 = vld [vmem:[%s351 + $0x2f00] sm:$0xff]
        %v3009 = vld [vmem:[%s351 + $0x2f08] sm:$0xff]
        %v3010 = vld [vmem:[%s351 + $0x2f10] sm:$0xff]
        %v3011 = vld [vmem:[%s351 + $0x2f18] sm:$0xff]
        %v3012 = vld [vmem:[%s351 + $0x2f20] sm:$0xff]
        %v3013 = vld [vmem:[%s351 + $0x2f28] sm:$0xff]
        %v3014 = vld [vmem:[%s351 + $0x2f30] sm:$0xff]
        %v3015 = vld [vmem:[%s351 + $0x2f38] sm:$0xff]
        %v3016 = vld [vmem:[%s351 + $0x2f40] sm:$0xff]
        %v3017 = vld [vmem:[%s351 + $0x2f48] sm:$0xff]
        %v3018 = vld [vmem:[%s351 + $0x2f50] sm:$0xff]
        %v3019 = vld [vmem:[%s351 + $0x2f58] sm:$0xff]
        %v3020 = vld [vmem:[%s351 + $0x2f60] sm:$0xff]
        %v3021 = vld [vmem:[%s351 + $0x2f68] sm:$0xff]
        %v3022 = vld [vmem:[%s351 + $0x2f70] sm:$0xff]
        %v3023 = vld [vmem:[%s351 + $0x2f78] sm:$0xff]
        %v3024 = vld [vmem:[%s351 + $0x2f80] sm:$0xff]
        %v3025 = vld [vmem:[%s351 + $0x2f88] sm:$0xff]
        %v3026 = vld [vmem:[%s351 + $0x2f90] sm:$0xff]
        %v3027 = vld [vmem:[%s351 + $0x2f98] sm:$0xff]
        %v3028 = vld [vmem:[%s351 + $0x2fa0] sm:$0xff]
        %v3029 = vld [vmem:[%s351 + $0x2fa8] sm:$0xff]
        %v3030 = vld [vmem:[%s351 + $0x2fb0] sm:$0xff]
        %v3031 = vld [vmem:[%s351 + $0x2fb8] sm:$0xff]
        %v3032 = vld [vmem:[%s351 + $0x2fc0] sm:$0xff]
        %v3033 = vld [vmem:[%s351 + $0x2fc8] sm:$0xff]
        %v3034 = vld [vmem:[%s351 + $0x2fd0] sm:$0xff]
        %v3035 = vld [vmem:[%s351 + $0x2fd8] sm:$0xff]
        %v3036 = vld [vmem:[%s351 + $0x2fe0] sm:$0xff]
        %v3037 = vld [vmem:[%s351 + $0x2fe8] sm:$0xff]
        %v3038 = vld [vmem:[%s351 + $0x2ff0] sm:$0xff]
        %v3039 = vld [vmem:[%s351 + $0x2ff8] sm:$0xff]
        %v3040 = vld [vmem:[%s351 + $0x3000] sm:$0xff]
        %v3041 = vld [vmem:[%s351 + $0x3008] sm:$0xff]
        %v3042 = vld [vmem:[%s351 + $0x3010] sm:$0xff]
        %v3043 = vld [vmem:[%s351 + $0x3018] sm:$0xff]
        %v3044 = vld [vmem:[%s351 + $0x3020] sm:$0xff]
        %v3045 = vld [vmem:[%s351 + $0x3028] sm:$0xff]
        %v3046 = vld [vmem:[%s351 + $0x3030] sm:$0xff]
        %v3047 = vld [vmem:[%s351 + $0x3038] sm:$0xff]
        %v3048 = vld [vmem:[%s351 + $0x3040] sm:$0xff]
        %v3049 = vld [vmem:[%s351 + $0x3048] sm:$0xff]
        %v3050 = vld [vmem:[%s351 + $0x3050] sm:$0xff]
        %v3051 = vld [vmem:[%s351 + $0x3058] sm:$0xff]
        %v3052 = vld [vmem:[%s351 + $0x3060] sm:$0xff]
        %v3053 = vld [vmem:[%s351 + $0x3068] sm:$0xff]
        %v3054 = vld [vmem:[%s351 + $0x3070] sm:$0xff]
        %v3055 = vld [vmem:[%s351 + $0x3078] sm:$0xff]
        %v3056 = vld [vmem:[%s351 + $0x3080] sm:$0xff]
        %v3057 = vld [vmem:[%s351 + $0x3088] sm:$0xff]
        %v3058 = vld [vmem:[%s351 + $0x3090] sm:$0xff]
        %v3059 = vld [vmem:[%s351 + $0x3098] sm:$0xff]
        %v3060 = vld [vmem:[%s351 + $0x30a0] sm:$0xff]
        %v3061 = vld [vmem:[%s351 + $0x30a8] sm:$0xff]
        %v3062 = vld [vmem:[%s351 + $0x30b0] sm:$0xff]
        %v3063 = vld [vmem:[%s351 + $0x30b8] sm:$0xff]
        %v3064 = vld [vmem:[%s351 + $0x30c0] sm:$0xff]
        %v3065 = vld [vmem:[%s351 + $0x30c8] sm:$0xff]
        %v3066 = vld [vmem:[%s351 + $0x30d0] sm:$0xff]
        %v3067 = vld [vmem:[%s351 + $0x30d8] sm:$0xff]
        %v3068 = vld [vmem:[%s351 + $0x30e0] sm:$0xff]
        %v3069 = vld [vmem:[%s351 + $0x30e8] sm:$0xff]
        %v3070 = vld [vmem:[%s351 + $0x30f0] sm:$0xff]
        %v3071 = vld [vmem:[%s351 + $0x30f8] sm:$0xff]
        %v3072 = vld [vmem:[%s351 + $0x3100] sm:$0xff]
        %v3073 = vld [vmem:[%s351 + $0x3108] sm:$0xff]
        %v3074 = vld [vmem:[%s351 + $0x3110] sm:$0xff]
        %v3075 = vld [vmem:[%s351 + $0x3118] sm:$0xff]
        %v3076 = vld [vmem:[%s351 + $0x3120] sm:$0xff]
        %v3077 = vld [vmem:[%s351 + $0x3128] sm:$0xff]
        %v3078 = vld [vmem:[%s351 + $0x3130] sm:$0xff]
        %v3079 = vld [vmem:[%s351 + $0x3138] sm:$0xff]
        %v3080 = vld [vmem:[%s351 + $0x3140] sm:$0xff]
        %v3081 = vld [vmem:[%s351 + $0x3148] sm:$0xff]
        %v3082 = vld [vmem:[%s351 + $0x3150] sm:$0xff]
        %v3083 = vld [vmem:[%s351 + $0x3158] sm:$0xff]
        %v3084 = vld [vmem:[%s351 + $0x3160] sm:$0xff]
        %v3085 = vld [vmem:[%s351 + $0x3168] sm:$0xff]
        %v3086 = vld [vmem:[%s351 + $0x3170] sm:$0xff]
        %v3087 = vld [vmem:[%s351 + $0x3178] sm:$0xff]
        %v3088 = vld [vmem:[%s351 + $0x3180] sm:$0xff]
        %v3089 = vld [vmem:[%s351 + $0x3188] sm:$0xff]
        %v3090 = vld [vmem:[%s351 + $0x3190] sm:$0xff]
        %v3091 = vld [vmem:[%s351 + $0x3198] sm:$0xff]
        %v3092 = vld [vmem:[%s351 + $0x31a0] sm:$0xff]
        %v3093 = vld [vmem:[%s351 + $0x31a8] sm:$0xff]
        %v3094 = vld [vmem:[%s351 + $0x31b0] sm:$0xff]
        %v3095 = vld [vmem:[%s351 + $0x31b8] sm:$0xff]
        %v3096 = vld [vmem:[%s351 + $0x31c0] sm:$0xff]
        %v3097 = vld [vmem:[%s351 + $0x31c8] sm:$0xff]
        %v3098 = vld [vmem:[%s351 + $0x31d0] sm:$0xff]
        %v3099 = vld [vmem:[%s351 + $0x31d8] sm:$0xff]
        %v3100 = vld [vmem:[%s351 + $0x31e0] sm:$0xff]
        %v3101 = vld [vmem:[%s351 + $0x31e8] sm:$0xff]
        %v3102 = vld [vmem:[%s351 + $0x31f0] sm:$0xff]
        %v3103 = vld [vmem:[%s351 + $0x31f8] sm:$0xff]
        %v3104 = vld [vmem:[%s360] sm:$0xff]
        %v3105 = vld [vmem:[%s360 + $0x8] sm:$0xff]
        %v3106 = vld [vmem:[%s360 + $0x10] sm:$0xff]
        %v3107 = vld [vmem:[%s360 + $0x18] sm:$0x1]
        %v3112 = vlaneseq
        %v3113 = vshrl.u32 %v3112, 7
        %v3114 = vsub.s32 0, %v3113
        %v3115 = vrot.slane %v3104, %v3114
        %v3116 = vlaneseq
        %v3117 = vshrl.u32 %v3116, 7
        %v3118 = vsub.s32 1, %v3117
        %v3119 = vrot.slane %v3104, %v3118
        %v3120 = vlaneseq
        %v3121 = vshrl.u32 %v3120, 7
        %v3122 = vsub.s32 2, %v3121
        %v3123 = vrot.slane %v3104, %v3122
        %v3124 = vlaneseq
        %v3125 = vshrl.u32 %v3124, 7
        %v3126 = vsub.s32 3, %v3125
        %v3127 = vrot.slane %v3104, %v3126
        %v3128 = vlaneseq
        %v3129 = vshrl.u32 %v3128, 7
        %v3130 = vsub.s32 4, %v3129
        %v3131 = vrot.slane %v3104, %v3130
        %v3132 = vlaneseq
        %v3133 = vshrl.u32 %v3132, 7
        %v3134 = vsub.s32 5, %v3133
        %v3135 = vrot.slane %v3104, %v3134
        %v3136 = vlaneseq
        %v3137 = vshrl.u32 %v3136, 7
        %v3138 = vsub.s32 6, %v3137
        %v3139 = vrot.slane %v3104, %v3138
        %v3140 = vlaneseq
        %v3141 = vshrl.u32 %v3140, 7
        %v3142 = vsub.s32 7, %v3141
        %v3143 = vrot.slane %v3104, %v3142
        %v3144 = vlaneseq
        %v3145 = vshrl.u32 %v3144, 7
        %v3146 = vsub.s32 0, %v3145
        %v3147 = vrot.slane %v3105, %v3146
        %v3148 = vlaneseq
        %v3149 = vshrl.u32 %v3148, 7
        %v3150 = vsub.s32 1, %v3149
        %v3151 = vrot.slane %v3105, %v3150
        %v3152 = vlaneseq
        %v3153 = vshrl.u32 %v3152, 7
        %v3154 = vsub.s32 2, %v3153
        %v3155 = vrot.slane %v3105, %v3154
        %v3156 = vlaneseq
        %v3157 = vshrl.u32 %v3156, 7
        %v3158 = vsub.s32 3, %v3157
        %v3159 = vrot.slane %v3105, %v3158
        %v3160 = vlaneseq
        %v3161 = vshrl.u32 %v3160, 7
        %v3162 = vsub.s32 4, %v3161
        %v3163 = vrot.slane %v3105, %v3162
        %v3164 = vlaneseq
        %v3165 = vshrl.u32 %v3164, 7
        %v3166 = vsub.s32 5, %v3165
        %v3167 = vrot.slane %v3105, %v3166
        %v3168 = vlaneseq
        %v3169 = vshrl.u32 %v3168, 7
        %v3170 = vsub.s32 6, %v3169
        %v3171 = vrot.slane %v3105, %v3170
        %v3172 = vlaneseq
        %v3173 = vshrl.u32 %v3172, 7
        %v3174 = vsub.s32 7, %v3173
        %v3175 = vrot.slane %v3105, %v3174
        %v3176 = vlaneseq
        %v3177 = vshrl.u32 %v3176, 7
        %v3178 = vsub.s32 0, %v3177
        %v3179 = vrot.slane %v3106, %v3178
        %v3180 = vlaneseq
        %v3181 = vshrl.u32 %v3180, 7
        %v3182 = vsub.s32 1, %v3181
        %v3183 = vrot.slane %v3106, %v3182
        %v3184 = vlaneseq
        %v3185 = vshrl.u32 %v3184, 7
        %v3186 = vsub.s32 2, %v3185
        %v3187 = vrot.slane %v3106, %v3186
        %v3188 = vlaneseq
        %v3189 = vshrl.u32 %v3188, 7
        %v3190 = vsub.s32 3, %v3189
        %v3191 = vrot.slane %v3106, %v3190
        %v3192 = vlaneseq
        %v3193 = vshrl.u32 %v3192, 7
        %v3194 = vsub.s32 4, %v3193
        %v3195 = vrot.slane %v3106, %v3194
        %v3196 = vlaneseq
        %v3197 = vshrl.u32 %v3196, 7
        %v3198 = vsub.s32 5, %v3197
        %v3199 = vrot.slane %v3106, %v3198
        %v3200 = vlaneseq
        %v3201 = vshrl.u32 %v3200, 7
        %v3202 = vsub.s32 6, %v3201
        %v3203 = vrot.slane %v3106, %v3202
        %v3204 = vlaneseq
        %v3205 = vshrl.u32 %v3204, 7
        %v3206 = vsub.s32 7, %v3205
        %v3207 = vrot.slane %v3106, %v3206
        %v3208 = vlaneseq
        %v3209 = vshrl.u32 %v3208, 7
        %v3210 = vsub.s32 0, %v3209
        %v3211 = vrot.slane %v3107, %v3210
        %3237 = vmatprep.subr.mxu0 %v1505
        %3238 = vmatpush1.msra.mxu0 %v1504
        %3239 = vmatprep.subr.mxu0 %v1530
        %3240 = vmatpush1.msra.mxu0 %v1529
        %3241 = vmatprep.subr.mxu0 %v1555
        %3242 = vmatpush1.msra.mxu0 %v1554
        %3243 = vmatprep.subr.mxu0 %v1580
        %3244 = vmatpush1.msra.mxu0 %v1579
        %3245 = vmatprep.subr.mxu0 %v1605
        %3246 = vmatpush1.msra.mxu0 %v1604
        %3247 = vmatprep.subr.mxu0 %v1630
        %3248 = vmatpush1.msra.mxu0 %v1629
        %3249 = vmatprep.subr.mxu0 %v1655
        %3250 = vmatpush1.msra.mxu0 %v1654
        %3251 = vmatprep.subr.mxu0 %v1680
        %3252 = vmatpush1.msra.mxu0 %v1679
        %3253 = vmatprep.subr.mxu0 %v1705
        %3254 = vmatpush1.msra.mxu0 %v1704
        %3255 = vmatprep.subr.mxu0 %v1730
        %3256 = vmatpush1.msra.mxu0 %v1729
        %3257 = vmatprep.subr.mxu0 %v1755
        %3258 = vmatpush1.msra.mxu0 %v1754
        %3259 = vmatprep.subr.mxu0 %v1780
        %3260 = vmatpush1.msra.mxu0 %v1779
        %3261 = vmatprep.subr.mxu0 %v1805
        %3262 = vmatpush1.msra.mxu0 %v1804
        %3263 = vmatprep.subr.mxu0 %v1830
        %3264 = vmatpush1.msra.mxu0 %v1829
        %3265 = vmatprep.subr.mxu0 %v1855
        %3266 = vmatpush1.msra.mxu0 %v1854
        %3267 = vmatprep.subr.mxu0 %v1880
        %3268 = vmatpush1.msra.mxu0 %v1879
        %3269 = vmatprep.subr.mxu0 %v1905
        %3270 = vmatpush1.msra.mxu0 %v1904
        %3271 = vmatprep.subr.mxu0 %v1930
        %3272 = vmatpush1.msra.mxu0 %v1929
        %3273 = vmatprep.subr.mxu0 %v1955
        %3274 = vmatpush1.msra.mxu0 %v1954
        %3275 = vmatprep.subr.mxu0 %v1980
        %3276 = vmatpush1.msra.mxu0 %v1979
        %3277 = vmatprep.subr.mxu0 %v2005
        %3278 = vmatpush1.msra.mxu0 %v2004
        %3279 = vmatprep.subr.mxu0 %v2030
        %3280 = vmatpush1.msra.mxu0 %v2029
        %3281 = vmatprep.subr.mxu0 %v2055
        %3282 = vmatpush1.msra.mxu0 %v2054
        %3283 = vmatprep.subr.mxu0 %v2080
        %3284 = vmatpush1.msra.mxu0 %v2079
        %3285 = vmatprep.subr.mxu0 %v2105
        %3286 = vmatpush1.msra.mxu0 %v2104
        %3287 = vmatprep.subr.mxu0 %v2130
        %3288 = vmatpush1.msra.mxu0 %v2129
        %3289 = vmatprep.subr.mxu0 %v2155
        %3290 = vmatpush1.msra.mxu0 %v2154
        %3291 = vmatprep.subr.mxu0 %v2180
        %3292 = vmatpush1.msra.mxu0 %v2179
        %3293 = vmatprep.subr.mxu0 %v2205
        %3294 = vmatpush1.msra.mxu0 %v2204
        %3295 = vmatprep.subr.mxu0 %v2230
        %3296 = vmatpush1.msra.mxu0 %v2229
        %3297 = vmatprep.subr.mxu0 %v2255
        %3298 = vmatpush1.msra.mxu0 %v2254
        %3299 = vmatprep.subr.mxu0 %v2280
        %3300 = vmatpush1.msra.mxu0 %v2279
        %3301 = vmatprep.mubr.f32.mxu0 %v1501
        %3302 = vmatmul.mubr.f32.gmra.mrb[0].mxu0 %v1500
        %v3303 = vpop.f32.mrb[0].mxu0
        %v3304 = vadd.f32 %v3115, %v3303
        %v3305 = vpop.f32.mrb[0].mxu0
        %v3306 = vadd.f32 %v3119, %v3305
        %3307 = vdwg.mxu0
        %3308 = vmatprep.subr.mxu0 %v2305
        %3309 = vmatpush1.msra.mxu0 %v2304
        %3310 = vmatprep.subr.mxu0 %v2330
        %3311 = vmatpush1.msra.mxu0 %v2329
        %3312 = vmatprep.subr.mxu0 %v2355
        %3313 = vmatpush1.msra.mxu0 %v2354
        %3314 = vmatprep.subr.mxu0 %v2380
        %3315 = vmatpush1.msra.mxu0 %v2379
        %3316 = vmatprep.subr.mxu0 %v2405
        %3317 = vmatpush1.msra.mxu0 %v2404
        %3318 = vmatprep.subr.mxu0 %v2430
        %3319 = vmatpush1.msra.mxu0 %v2429
        %3320 = vmatprep.subr.mxu0 %v2455
        %3321 = vmatpush1.msra.mxu0 %v2454
        %3322 = vmatprep.subr.mxu0 %v2480
        %3323 = vmatpush1.msra.mxu0 %v2479
        %3324 = vmatprep.subr.mxu0 %v2505
        %3325 = vmatpush1.msra.mxu0 %v2504
        %3326 = vmatprep.subr.mxu0 %v2530
        %3327 = vmatpush1.msra.mxu0 %v2529
        %3328 = vmatprep.subr.mxu0 %v2555
        %3329 = vmatpush1.msra.mxu0 %v2554
        %3330 = vmatprep.subr.mxu0 %v2580
        %3331 = vmatpush1.msra.mxu0 %v2579
        %3332 = vmatprep.subr.mxu0 %v2605
        %3333 = vmatpush1.msra.mxu0 %v2604
        %3334 = vmatprep.subr.mxu0 %v2630
        %3335 = vmatpush1.msra.mxu0 %v2629
        %3336 = vmatprep.subr.mxu0 %v2655
        %3337 = vmatpush1.msra.mxu0 %v2654
        %3338 = vmatprep.subr.mxu0 %v2680
        %3339 = vmatpush1.msra.mxu0 %v2679
        %3340 = vmatprep.subr.mxu0 %v2705
        %3341 = vmatpush1.msra.mxu0 %v2704
        %3342 = vmatprep.subr.mxu0 %v2730
        %3343 = vmatpush1.msra.mxu0 %v2729
        %3344 = vmatprep.subr.mxu0 %v2755
        %3345 = vmatpush1.msra.mxu0 %v2754
        %3346 = vmatprep.subr.mxu0 %v2780
        %3347 = vmatpush1.msra.mxu0 %v2779
        %3348 = vmatprep.subr.mxu0 %v2805
        %3349 = vmatpush1.msra.mxu0 %v2804
        %3350 = vmatprep.subr.mxu0 %v2830
        %3351 = vmatpush1.msra.mxu0 %v2829
        %3352 = vmatprep.subr.mxu0 %v2855
        %3353 = vmatpush1.msra.mxu0 %v2854
        %3354 = vmatprep.subr.mxu0 %v2880
        %3355 = vmatpush1.msra.mxu0 %v2879
        %3356 = vmatprep.subr.mxu0 %v2905
        %3357 = vmatpush1.msra.mxu0 %v2904
        %3358 = vmatprep.subr.mxu0 %v2930
        %3359 = vmatpush1.msra.mxu0 %v2929
        %3360 = vmatprep.subr.mxu0 %v2955
        %3361 = vmatpush1.msra.mxu0 %v2954
        %3362 = vmatprep.subr.mxu0 %v2980
        %3363 = vmatpush1.msra.mxu0 %v2979
        %3364 = vmatprep.subr.mxu0 %v3005
        %3365 = vmatpush1.msra.mxu0 %v3004
        %3366 = vmatprep.subr.mxu0 %v3030
        %3367 = vmatpush1.msra.mxu0 %v3029
        %3368 = vmatprep.subr.mxu0 %v3055
        %3369 = vmatpush1.msra.mxu0 %v3054
        %3370 = vmatprep.subr.mxu0 %v3080
        %3371 = vmatpush1.msra.mxu0 %v3079
        %3372 = vmatprep.mubr.f32.mxu0 %v1503
        %3373 = vmatmul.mubr.f32.gmra.mrb[0].mxu0 %v1502
        %v3374 = vpop.f32.mrb[0].mxu0
        %v3375 = vadd.f32 %v3304, %v3374
        %v3376 = vpop.f32.mrb[0].mxu0
        %v3377 = vadd.f32 %v3306, %v3376
        %3378 = vdwg.mxu0
        %3379 = vmatprep.subr.mxu0 %v1507
        %3380 = vmatpush1.msra.mxu0 %v1506
        %3381 = vmatprep.subr.mxu0 %v1532
        %3382 = vmatpush1.msra.mxu0 %v1531
        %3383 = vmatprep.subr.mxu0 %v1557
        %3384 = vmatpush1.msra.mxu0 %v1556
        %3385 = vmatprep.subr.mxu0 %v1582
        %3386 = vmatpush1.msra.mxu0 %v1581
        %3387 = vmatprep.subr.mxu0 %v1607
        %3388 = vmatpush1.msra.mxu0 %v1606
        %3389 = vmatprep.subr.mxu0 %v1632
        %3390 = vmatpush1.msra.mxu0 %v1631
        %3391 = vmatprep.subr.mxu0 %v1657
        %3392 = vmatpush1.msra.mxu0 %v1656
        %3393 = vmatprep.subr.mxu0 %v1682
        %3394 = vmatpush1.msra.mxu0 %v1681
        %3395 = vmatprep.subr.mxu0 %v1707
        %3396 = vmatpush1.msra.mxu0 %v1706
        %3397 = vmatprep.subr.mxu0 %v1732
        %3398 = vmatpush1.msra.mxu0 %v1731
        %3399 = vmatprep.subr.mxu0 %v1757
        %3400 = vmatpush1.msra.mxu0 %v1756
        %3401 = vmatprep.subr.mxu0 %v1782
        %3402 = vmatpush1.msra.mxu0 %v1781
        %3403 = vmatprep.subr.mxu0 %v1807
        %3404 = vmatpush1.msra.mxu0 %v1806
        %3405 = vmatprep.subr.mxu0 %v1832
        %3406 = vmatpush1.msra.mxu0 %v1831
        %3407 = vmatprep.subr.mxu0 %v1857
        %3408 = vmatpush1.msra.mxu0 %v1856
        %3409 = vmatprep.subr.mxu0 %v1882
        %3410 = vmatpush1.msra.mxu0 %v1881
        %3411 = vmatprep.subr.mxu0 %v1907
        %3412 = vmatpush1.msra.mxu0 %v1906
        %3413 = vmatprep.subr.mxu0 %v1932
        %3414 = vmatpush1.msra.mxu0 %v1931
        %3415 = vmatprep.subr.mxu0 %v1957
        %3416 = vmatpush1.msra.mxu0 %v1956
        %3417 = vmatprep.subr.mxu0 %v1982
        %3418 = vmatpush1.msra.mxu0 %v1981
        %3419 = vmatprep.subr.mxu0 %v2007
        %3420 = vmatpush1.msra.mxu0 %v2006
        %3421 = vmatprep.subr.mxu0 %v2032
        %3422 = vmatpush1.msra.mxu0 %v2031
        %3423 = vmatprep.subr.mxu0 %v2057
        %3424 = vmatpush1.msra.mxu0 %v2056
        %3425 = vmatprep.subr.mxu0 %v2082
        %3426 = vmatpush1.msra.mxu0 %v2081
        %3427 = vmatprep.subr.mxu0 %v2107
        %3428 = vmatpush1.msra.mxu0 %v2106
        %3429 = vmatprep.subr.mxu0 %v2132
        %3430 = vmatpush1.msra.mxu0 %v2131
        %3431 = vmatprep.subr.mxu0 %v2157
        %3432 = vmatpush1.msra.mxu0 %v2156
        %3433 = vmatprep.subr.mxu0 %v2182
        %3434 = vmatpush1.msra.mxu0 %v2181
        %3435 = vmatprep.subr.mxu0 %v2207
        %3436 = vmatpush1.msra.mxu0 %v2206
        %3437 = vmatprep.subr.mxu0 %v2232
        %3438 = vmatpush1.msra.mxu0 %v2231
        %3439 = vmatprep.subr.mxu0 %v2257
        %3440 = vmatpush1.msra.mxu0 %v2256
        %3441 = vmatprep.subr.mxu0 %v2282
        %3442 = vmatpush1.msra.mxu0 %v2281
        %3443 = vmatprep.mubr.f32.mxu0 %v1501
        %3444 = vmatmul.mubr.f32.gmra.mrb[0].mxu0 %v1500
        %v3445 = vpop.f32.mrb[0].mxu0
        %v3446 = vadd.f32 %v3123, %v3445
        %v3447 = vpop.f32.mrb[0].mxu0
        %v3448 = vadd.f32 %v3127, %v3447
        %3449 = vdwg.mxu0
        %3450 = vmatprep.subr.mxu0 %v2307
        %3451 = vmatpush1.msra.mxu0 %v2306
        %3452 = vmatprep.subr.mxu0 %v2332
        %3453 = vmatpush1.msra.mxu0 %v2331
        %3454 = vmatprep.subr.mxu0 %v2357
        %3455 = vmatpush1.msra.mxu0 %v2356
        %3456 = vmatprep.subr.mxu0 %v2382
        %3457 = vmatpush1.msra.mxu0 %v2381
        %3458 = vmatprep.subr.mxu0 %v2407
        %3459 = vmatpush1.msra.mxu0 %v2406
        %3460 = vmatprep.subr.mxu0 %v2432
        %3461 = vmatpush1.msra.mxu0 %v2431
        %3462 = vmatprep.subr.mxu0 %v2457
        %3463 = vmatpush1.msra.mxu0 %v2456
        %3464 = vmatprep.subr.mxu0 %v2482
        %3465 = vmatpush1.msra.mxu0 %v2481
        %3466 = vmatprep.subr.mxu0 %v2507
        %3467 = vmatpush1.msra.mxu0 %v2506
        %3468 = vmatprep.subr.mxu0 %v2532
        %3469 = vmatpush1.msra.mxu0 %v2531
        %3470 = vmatprep.subr.mxu0 %v2557
        %3471 = vmatpush1.msra.mxu0 %v2556
        %3472 = vmatprep.subr.mxu0 %v2582
        %3473 = vmatpush1.msra.mxu0 %v2581
        %3474 = vmatprep.subr.mxu0 %v2607
        %3475 = vmatpush1.msra.mxu0 %v2606
        %3476 = vmatprep.subr.mxu0 %v2632
        %3477 = vmatpush1.msra.mxu0 %v2631
        %3478 = vmatprep.subr.mxu0 %v2657
        %3479 = vmatpush1.msra.mxu0 %v2656
        %3480 = vmatprep.subr.mxu0 %v2682
        %3481 = vmatpush1.msra.mxu0 %v2681
        %3482 = vmatprep.subr.mxu0 %v2707
        %3483 = vmatpush1.msra.mxu0 %v2706
        %3484 = vmatprep.subr.mxu0 %v2732
        %3485 = vmatpush1.msra.mxu0 %v2731
        %3486 = vmatprep.subr.mxu0 %v2757
        %3487 = vmatpush1.msra.mxu0 %v2756
        %3488 = vmatprep.subr.mxu0 %v2782
        %3489 = vmatpush1.msra.mxu0 %v2781
        %3490 = vmatprep.subr.mxu0 %v2807
        %3491 = vmatpush1.msra.mxu0 %v2806
        %3492 = vmatprep.subr.mxu0 %v2832
        %3493 = vmatpush1.msra.mxu0 %v2831
        %3494 = vmatprep.subr.mxu0 %v2857
        %3495 = vmatpush1.msra.mxu0 %v2856
        %3496 = vmatprep.subr.mxu0 %v2882
        %3497 = vmatpush1.msra.mxu0 %v2881
        %3498 = vmatprep.subr.mxu0 %v2907
        %3499 = vmatpush1.msra.mxu0 %v2906
        %3500 = vmatprep.subr.mxu0 %v2932
        %3501 = vmatpush1.msra.mxu0 %v2931
        %3502 = vmatprep.subr.mxu0 %v2957
        %3503 = vmatpush1.msra.mxu0 %v2956
        %3504 = vmatprep.subr.mxu0 %v2982
        %3505 = vmatpush1.msra.mxu0 %v2981
        %3506 = vmatprep.subr.mxu0 %v3007
        %3507 = vmatpush1.msra.mxu0 %v3006
        %3508 = vmatprep.subr.mxu0 %v3032
        %3509 = vmatpush1.msra.mxu0 %v3031
        %3510 = vmatprep.subr.mxu0 %v3057
        %3511 = vmatpush1.msra.mxu0 %v3056
        %3512 = vmatprep.subr.mxu0 %v3082
        %3513 = vmatpush1.msra.mxu0 %v3081
        %3514 = vmatprep.mubr.f32.mxu0 %v1503
        %3515 = vmatmul.mubr.f32.gmra.mrb[0].mxu0 %v1502
        %v3516 = vpop.f32.mrb[0].mxu0
        %v3517 = vadd.f32 %v3446, %v3516
        %v3518 = vpop.f32.mrb[0].mxu0
        %v3519 = vadd.f32 %v3448, %v3518
        %3520 = vdwg.mxu0
        %3521 = vmatprep.subr.mxu0 %v1509
        %3522 = vmatpush1.msra.mxu0 %v1508
        %3523 = vmatprep.subr.mxu0 %v1534
        %3524 = vmatpush1.msra.mxu0 %v1533
        %3525 = vmatprep.subr.mxu0 %v1559
        %3526 = vmatpush1.msra.mxu0 %v1558
        %3527 = vmatprep.subr.mxu0 %v1584
        %3528 = vmatpush1.msra.mxu0 %v1583
        %3529 = vmatprep.subr.mxu0 %v1609
        %3530 = vmatpush1.msra.mxu0 %v1608
        %3531 = vmatprep.subr.mxu0 %v1634
        %3532 = vmatpush1.msra.mxu0 %v1633
        %3533 = vmatprep.subr.mxu0 %v1659
        %3534 = vmatpush1.msra.mxu0 %v1658
        %3535 = vmatprep.subr.mxu0 %v1684
        %3536 = vmatpush1.msra.mxu0 %v1683
        %3537 = vmatprep.subr.mxu0 %v1709
        %3538 = vmatpush1.msra.mxu0 %v1708
        %3539 = vmatprep.subr.mxu0 %v1734
        %3540 = vmatpush1.msra.mxu0 %v1733
        %3541 = vmatprep.subr.mxu0 %v1759
        %3542 = vmatpush1.msra.mxu0 %v1758
        %3543 = vmatprep.subr.mxu0 %v1784
        %3544 = vmatpush1.msra.mxu0 %v1783
        %3545 = vmatprep.subr.mxu0 %v1809
        %3546 = vmatpush1.msra.mxu0 %v1808
        %3547 = vmatprep.subr.mxu0 %v1834
        %3548 = vmatpush1.msra.mxu0 %v1833
        %3549 = vmatprep.subr.mxu0 %v1859
        %3550 = vmatpush1.msra.mxu0 %v1858
        %3551 = vmatprep.subr.mxu0 %v1884
        %3552 = vmatpush1.msra.mxu0 %v1883
        %3553 = vmatprep.subr.mxu0 %v1909
        %3554 = vmatpush1.msra.mxu0 %v1908
        %3555 = vmatprep.subr.mxu0 %v1934
        %3556 = vmatpush1.msra.mxu0 %v1933
        %3557 = vmatprep.subr.mxu0 %v1959
        %3558 = vmatpush1.msra.mxu0 %v1958
        %3559 = vmatprep.subr.mxu0 %v1984
        %3560 = vmatpush1.msra.mxu0 %v1983
        %3561 = vmatprep.subr.mxu0 %v2009
        %3562 = vmatpush1.msra.mxu0 %v2008
        %3563 = vmatprep.subr.mxu0 %v2034
        %3564 = vmatpush1.msra.mxu0 %v2033
        %3565 = vmatprep.subr.mxu0 %v2059
        %3566 = vmatpush1.msra.mxu0 %v2058
        %3567 = vmatprep.subr.mxu0 %v2084
        %3568 = vmatpush1.msra.mxu0 %v2083
        %3569 = vmatprep.subr.mxu0 %v2109
        %3570 = vmatpush1.msra.mxu0 %v2108
        %3571 = vmatprep.subr.mxu0 %v2134
        %3572 = vmatpush1.msra.mxu0 %v2133
        %3573 = vmatprep.subr.mxu0 %v2159
        %3574 = vmatpush1.msra.mxu0 %v2158
        %3575 = vmatprep.subr.mxu0 %v2184
        %3576 = vmatpush1.msra.mxu0 %v2183
        %3577 = vmatprep.subr.mxu0 %v2209
        %3578 = vmatpush1.msra.mxu0 %v2208
        %3579 = vmatprep.subr.mxu0 %v2234
        %3580 = vmatpush1.msra.mxu0 %v2233
        %3581 = vmatprep.subr.mxu0 %v2259
        %3582 = vmatpush1.msra.mxu0 %v2258
        %3583 = vmatprep.subr.mxu0 %v2284
        %3584 = vmatpush1.msra.mxu0 %v2283
        %3585 = vmatprep.mubr.f32.mxu0 %v1501
        %3586 = vmatmul.mubr.f32.gmra.mrb[0].mxu0 %v1500
        %v3587 = vpop.f32.mrb[0].mxu0
        %v3588 = vadd.f32 %v3131, %v3587
        %v3589 = vpop.f32.mrb[0].mxu0
        %v3590 = vadd.f32 %v3135, %v3589
        %3591 = vdwg.mxu0
        %3592 = vmatprep.subr.mxu0 %v2309
        %3593 = vmatpush1.msra.mxu0 %v2308
        %3594 = vmatprep.subr.mxu0 %v2334
        %3595 = vmatpush1.msra.mxu0 %v2333
        %3596 = vmatprep.subr.mxu0 %v2359
        %3597 = vmatpush1.msra.mxu0 %v2358
        %3598 = vmatprep.subr.mxu0 %v2384
        %3599 = vmatpush1.msra.mxu0 %v2383
        %3600 = vmatprep.subr.mxu0 %v2409
        %3601 = vmatpush1.msra.mxu0 %v2408
        %3602 = vmatprep.subr.mxu0 %v2434
        %3603 = vmatpush1.msra.mxu0 %v2433
        %3604 = vmatprep.subr.mxu0 %v2459
        %3605 = vmatpush1.msra.mxu0 %v2458
        %3606 = vmatprep.subr.mxu0 %v2484
        %3607 = vmatpush1.msra.mxu0 %v2483
        %3608 = vmatprep.subr.mxu0 %v2509
        %3609 = vmatpush1.msra.mxu0 %v2508
        %3610 = vmatprep.subr.mxu0 %v2534
        %3611 = vmatpush1.msra.mxu0 %v2533
        %3612 = vmatprep.subr.mxu0 %v2559
        %3613 = vmatpush1.msra.mxu0 %v2558
        %3614 = vmatprep.subr.mxu0 %v2584
        %3615 = vmatpush1.msra.mxu0 %v2583
        %3616 = vmatprep.subr.mxu0 %v2609
        %3617 = vmatpush1.msra.mxu0 %v2608
        %3618 = vmatprep.subr.mxu0 %v2634
        %3619 = vmatpush1.msra.mxu0 %v2633
        %3620 = vmatprep.subr.mxu0 %v2659
        %3621 = vmatpush1.msra.mxu0 %v2658
        %3622 = vmatprep.subr.mxu0 %v2684
        %3623 = vmatpush1.msra.mxu0 %v2683
        %3624 = vmatprep.subr.mxu0 %v2709
        %3625 = vmatpush1.msra.mxu0 %v2708
        %3626 = vmatprep.subr.mxu0 %v2734
        %3627 = vmatpush1.msra.mxu0 %v2733
        %3628 = vmatprep.subr.mxu0 %v2759
        %3629 = vmatpush1.msra.mxu0 %v2758
        %3630 = vmatprep.subr.mxu0 %v2784
        %3631 = vmatpush1.msra.mxu0 %v2783
        %3632 = vmatprep.subr.mxu0 %v2809
        %3633 = vmatpush1.msra.mxu0 %v2808
        %3634 = vmatprep.subr.mxu0 %v2834
        %3635 = vmatpush1.msra.mxu0 %v2833
        %3636 = vmatprep.subr.mxu0 %v2859
        %3637 = vmatpush1.msra.mxu0 %v2858
        %3638 = vmatprep.subr.mxu0 %v2884
        %3639 = vmatpush1.msra.mxu0 %v2883
        %3640 = vmatprep.subr.mxu0 %v2909
        %3641 = vmatpush1.msra.mxu0 %v2908
        %3642 = vmatprep.subr.mxu0 %v2934
        %3643 = vmatpush1.msra.mxu0 %v2933
        %3644 = vmatprep.subr.mxu0 %v2959
        %3645 = vmatpush1.msra.mxu0 %v2958
        %3646 = vmatprep.subr.mxu0 %v2984
        %3647 = vmatpush1.msra.mxu0 %v2983
        %3648 = vmatprep.subr.mxu0 %v3009
        %3649 = vmatpush1.msra.mxu0 %v3008
        %3650 = vmatprep.subr.mxu0 %v3034
        %3651 = vmatpush1.msra.mxu0 %v3033
        %3652 = vmatprep.subr.mxu0 %v3059
        %3653 = vmatpush1.msra.mxu0 %v3058
        %3654 = vmatprep.subr.mxu0 %v3084
        %3655 = vmatpush1.msra.mxu0 %v3083
        %3656 = vmatprep.mubr.f32.mxu0 %v1503
        %3657 = vmatmul.mubr.f32.gmra.mrb[0].mxu0 %v1502
        %v3658 = vpop.f32.mrb[0].mxu0
        %v3659 = vadd.f32 %v3588, %v3658
        %v3660 = vpop.f32.mrb[0].mxu0
        %v3661 = vadd.f32 %v3590, %v3660
        %3662 = vdwg.mxu0
        %3663 = vmatprep.subr.mxu0 %v1511
        %3664 = vmatpush1.msra.mxu0 %v1510
        %3665 = vmatprep.subr.mxu0 %v1536
        %3666 = vmatpush1.msra.mxu0 %v1535
        %3667 = vmatprep.subr.mxu0 %v1561
        %3668 = vmatpush1.msra.mxu0 %v1560
        %3669 = vmatprep.subr.mxu0 %v1586
        %3670 = vmatpush1.msra.mxu0 %v1585
        %3671 = vmatprep.subr.mxu0 %v1611
        %3672 = vmatpush1.msra.mxu0 %v1610
        %3673 = vmatprep.subr.mxu0 %v1636
        %3674 = vmatpush1.msra.mxu0 %v1635
        %3675 = vmatprep.subr.mxu0 %v1661
        %3676 = vmatpush1.msra.mxu0 %v1660
        %3677 = vmatprep.subr.mxu0 %v1686
        %3678 = vmatpush1.msra.mxu0 %v1685
        %3679 = vmatprep.subr.mxu0 %v1711
        %3680 = vmatpush1.msra.mxu0 %v1710
        %3681 = vmatprep.subr.mxu0 %v1736
        %3682 = vmatpush1.msra.mxu0 %v1735
        %3683 = vmatprep.subr.mxu0 %v1761
        %3684 = vmatpush1.msra.mxu0 %v1760
        %3685 = vmatprep.subr.mxu0 %v1786
        %3686 = vmatpush1.msra.mxu0 %v1785
        %3687 = vmatprep.subr.mxu0 %v1811
        %3688 = vmatpush1.msra.mxu0 %v1810
        %3689 = vmatprep.subr.mxu0 %v1836
        %3690 = vmatpush1.msra.mxu0 %v1835
        %3691 = vmatprep.subr.mxu0 %v1861
        %3692 = vmatpush1.msra.mxu0 %v1860
        %3693 = vmatprep.subr.mxu0 %v1886
        %3694 = vmatpush1.msra.mxu0 %v1885
        %3695 = vmatprep.subr.mxu0 %v1911
        %3696 = vmatpush1.msra.mxu0 %v1910
        %3697 = vmatprep.subr.mxu0 %v1936
        %3698 = vmatpush1.msra.mxu0 %v1935
        %3699 = vmatprep.subr.mxu0 %v1961
        %3700 = vmatpush1.msra.mxu0 %v1960
        %3701 = vmatprep.subr.mxu0 %v1986
        %3702 = vmatpush1.msra.mxu0 %v1985
        %3703 = vmatprep.subr.mxu0 %v2011
        %3704 = vmatpush1.msra.mxu0 %v2010
        %3705 = vmatprep.subr.mxu0 %v2036
        %3706 = vmatpush1.msra.mxu0 %v2035
        %3707 = vmatprep.subr.mxu0 %v2061
        %3708 = vmatpush1.msra.mxu0 %v2060
        %3709 = vmatprep.subr.mxu0 %v2086
        %3710 = vmatpush1.msra.mxu0 %v2085
        %3711 = vmatprep.subr.mxu0 %v2111
        %3712 = vmatpush1.msra.mxu0 %v2110
        %3713 = vmatprep.subr.mxu0 %v2136
        %3714 = vmatpush1.msra.mxu0 %v2135
        %3715 = vmatprep.subr.mxu0 %v2161
        %3716 = vmatpush1.msra.mxu0 %v2160
        %3717 = vmatprep.subr.mxu0 %v2186
        %3718 = vmatpush1.msra.mxu0 %v2185
        %3719 = vmatprep.subr.mxu0 %v2211
        %3720 = vmatpush1.msra.mxu0 %v2210
        %3721 = vmatprep.subr.mxu0 %v2236
        %3722 = vmatpush1.msra.mxu0 %v2235
        %3723 = vmatprep.subr.mxu0 %v2261
        %3724 = vmatpush1.msra.mxu0 %v2260
        %3725 = vmatprep.subr.mxu0 %v2286
        %3726 = vmatpush1.msra.mxu0 %v2285
        %3727 = vmatprep.mubr.f32.mxu0 %v1501
        %3728 = vmatmul.mubr.f32.gmra.mrb[0].mxu0 %v1500
        %v3729 = vpop.f32.mrb[0].mxu0
        %v3730 = vadd.f32 %v3139, %v3729
        %v3731 = vpop.f32.mrb[0].mxu0
        %v3732 = vadd.f32 %v3143, %v3731
        %3733 = vdwg.mxu0
        %3734 = vmatprep.subr.mxu0 %v2311
        %3735 = vmatpush1.msra.mxu0 %v2310
        %3736 = vmatprep.subr.mxu0 %v2336
        %3737 = vmatpush1.msra.mxu0 %v2335
        %3738 = vmatprep.subr.mxu0 %v2361
        %3739 = vmatpush1.msra.mxu0 %v2360
        %3740 = vmatprep.subr.mxu0 %v2386
        %3741 = vmatpush1.msra.mxu0 %v2385
        %3742 = vmatprep.subr.mxu0 %v2411
        %3743 = vmatpush1.msra.mxu0 %v2410
        %3744 = vmatprep.subr.mxu0 %v2436
        %3745 = vmatpush1.msra.mxu0 %v2435
        %3746 = vmatprep.subr.mxu0 %v2461
        %3747 = vmatpush1.msra.mxu0 %v2460
        %3748 = vmatprep.subr.mxu0 %v2486
        %3749 = vmatpush1.msra.mxu0 %v2485
        %3750 = vmatprep.subr.mxu0 %v2511
        %3751 = vmatpush1.msra.mxu0 %v2510
        %3752 = vmatprep.subr.mxu0 %v2536
        %3753 = vmatpush1.msra.mxu0 %v2535
        %3754 = vmatprep.subr.mxu0 %v2561
        %3755 = vmatpush1.msra.mxu0 %v2560
        %3756 = vmatprep.subr.mxu0 %v2586
        %3757 = vmatpush1.msra.mxu0 %v2585
        %3758 = vmatprep.subr.mxu0 %v2611
        %3759 = vmatpush1.msra.mxu0 %v2610
        %3760 = vmatprep.subr.mxu0 %v2636
        %3761 = vmatpush1.msra.mxu0 %v2635
        %3762 = vmatprep.subr.mxu0 %v2661
        %3763 = vmatpush1.msra.mxu0 %v2660
        %3764 = vmatprep.subr.mxu0 %v2686
        %3765 = vmatpush1.msra.mxu0 %v2685
        %3766 = vmatprep.subr.mxu0 %v2711
        %3767 = vmatpush1.msra.mxu0 %v2710
        %3768 = vmatprep.subr.mxu0 %v2736
        %3769 = vmatpush1.msra.mxu0 %v2735
        %3770 = vmatprep.subr.mxu0 %v2761
        %3771 = vmatpush1.msra.mxu0 %v2760
        %3772 = vmatprep.subr.mxu0 %v2786
        %3773 = vmatpush1.msra.mxu0 %v2785
        %3774 = vmatprep.subr.mxu0 %v2811
        %3775 = vmatpush1.msra.mxu0 %v2810
        %3776 = vmatprep.subr.mxu0 %v2836
        %3777 = vmatpush1.msra.mxu0 %v2835
        %3778 = vmatprep.subr.mxu0 %v2861
        %3779 = vmatpush1.msra.mxu0 %v2860
        %3780 = vmatprep.subr.mxu0 %v2886
        %3781 = vmatpush1.msra.mxu0 %v2885
        %3782 = vmatprep.subr.mxu0 %v2911
        %3783 = vmatpush1.msra.mxu0 %v2910
        %3784 = vmatprep.subr.mxu0 %v2936
        %3785 = vmatpush1.msra.mxu0 %v2935
        %3786 = vmatprep.subr.mxu0 %v2961
        %3787 = vmatpush1.msra.mxu0 %v2960
        %3788 = vmatprep.subr.mxu0 %v2986
        %3789 = vmatpush1.msra.mxu0 %v2985
        %3790 = vmatprep.subr.mxu0 %v3011
        %3791 = vmatpush1.msra.mxu0 %v3010
        %3792 = vmatprep.subr.mxu0 %v3036
        %3793 = vmatpush1.msra.mxu0 %v3035
        %3794 = vmatprep.subr.mxu0 %v3061
        %3795 = vmatpush1.msra.mxu0 %v3060
        %3796 = vmatprep.subr.mxu0 %v3086
        %3797 = vmatpush1.msra.mxu0 %v3085
        %3798 = vmatprep.mubr.f32.mxu0 %v1503
        %3799 = vmatmul.mubr.f32.gmra.mrb[0].mxu0 %v1502
        %v3800 = vpop.f32.mrb[0].mxu0
        %v3801 = vadd.f32 %v3730, %v3800
        %v3802 = vpop.f32.mrb[0].mxu0
        %v3803 = vadd.f32 %v3732, %v3802
        %3804 = vdwg.mxu0
        %3805 = vmatprep.subr.mxu0 %v1513
        %3806 = vmatpush1.msra.mxu0 %v1512
        %3807 = vmatprep.subr.mxu0 %v1538
        %3808 = vmatpush1.msra.mxu0 %v1537
        %3809 = vmatprep.subr.mxu0 %v1563
        %3810 = vmatpush1.msra.mxu0 %v1562
        %3811 = vmatprep.subr.mxu0 %v1588
        %3812 = vmatpush1.msra.mxu0 %v1587
        %3813 = vmatprep.subr.mxu0 %v1613
        %3814 = vmatpush1.msra.mxu0 %v1612
        %3815 = vmatprep.subr.mxu0 %v1638
        %3816 = vmatpush1.msra.mxu0 %v1637
        %3817 = vmatprep.subr.mxu0 %v1663
        %3818 = vmatpush1.msra.mxu0 %v1662
        %3819 = vmatprep.subr.mxu0 %v1688
        %3820 = vmatpush1.msra.mxu0 %v1687
        %3821 = vmatprep.subr.mxu0 %v1713
        %3822 = vmatpush1.msra.mxu0 %v1712
        %3823 = vmatprep.subr.mxu0 %v1738
        %3824 = vmatpush1.msra.mxu0 %v1737
        %3825 = vmatprep.subr.mxu0 %v1763
        %3826 = vmatpush1.msra.mxu0 %v1762
        %3827 = vmatprep.subr.mxu0 %v1788
        %3828 = vmatpush1.msra.mxu0 %v1787
        %3829 = vmatprep.subr.mxu0 %v1813
        %3830 = vmatpush1.msra.mxu0 %v1812
        %3831 = vmatprep.subr.mxu0 %v1838
        %3832 = vmatpush1.msra.mxu0 %v1837
        %3833 = vmatprep.subr.mxu0 %v1863
        %3834 = vmatpush1.msra.mxu0 %v1862
        %3835 = vmatprep.subr.mxu0 %v1888
        %3836 = vmatpush1.msra.mxu0 %v1887
        %3837 = vmatprep.subr.mxu0 %v1913
        %3838 = vmatpush1.msra.mxu0 %v1912
        %3839 = vmatprep.subr.mxu0 %v1938
        %3840 = vmatpush1.msra.mxu0 %v1937
        %3841 = vmatprep.subr.mxu0 %v1963
        %3842 = vmatpush1.msra.mxu0 %v1962
        %3843 = vmatprep.subr.mxu0 %v1988
        %3844 = vmatpush1.msra.mxu0 %v1987
        %3845 = vmatprep.subr.mxu0 %v2013
        %3846 = vmatpush1.msra.mxu0 %v2012
        %3847 = vmatprep.subr.mxu0 %v2038
        %3848 = vmatpush1.msra.mxu0 %v2037
        %3849 = vmatprep.subr.mxu0 %v2063
        %3850 = vmatpush1.msra.mxu0 %v2062
        %3851 = vmatprep.subr.mxu0 %v2088
        %3852 = vmatpush1.msra.mxu0 %v2087
        %3853 = vmatprep.subr.mxu0 %v2113
        %3854 = vmatpush1.msra.mxu0 %v2112
        %3855 = vmatprep.subr.mxu0 %v2138
        %3856 = vmatpush1.msra.mxu0 %v2137
        %3857 = vmatprep.subr.mxu0 %v2163
        %3858 = vmatpush1.msra.mxu0 %v2162
        %3859 = vmatprep.subr.mxu0 %v2188
        %3860 = vmatpush1.msra.mxu0 %v2187
        %3861 = vmatprep.subr.mxu0 %v2213
        %3862 = vmatpush1.msra.mxu0 %v2212
        %3863 = vmatprep.subr.mxu0 %v2238
        %3864 = vmatpush1.msra.mxu0 %v2237
        %3865 = vmatprep.subr.mxu0 %v2263
        %3866 = vmatpush1.msra.mxu0 %v2262
        %3867 = vmatprep.subr.mxu0 %v2288
        %3868 = vmatpush1.msra.mxu0 %v2287
        %3869 = vmatprep.mubr.f32.mxu0 %v1501
        %3870 = vmatmul.mubr.f32.gmra.mrb[0].mxu0 %v1500
        %v3871 = vpop.f32.mrb[0].mxu0
        %v3872 = vadd.f32 %v3147, %v3871
        %v3873 = vpop.f32.mrb[0].mxu0
        %v3874 = vadd.f32 %v3151, %v3873
        %3875 = vdwg.mxu0
        %3876 = vmatprep.subr.mxu0 %v2313
        %3877 = vmatpush1.msra.mxu0 %v2312
        %3878 = vmatprep.subr.mxu0 %v2338
        %3879 = vmatpush1.msra.mxu0 %v2337
        %3880 = vmatprep.subr.mxu0 %v2363
        %3881 = vmatpush1.msra.mxu0 %v2362
        %3882 = vmatprep.subr.mxu0 %v2388
        %3883 = vmatpush1.msra.mxu0 %v2387
        %3884 = vmatprep.subr.mxu0 %v2413
        %3885 = vmatpush1.msra.mxu0 %v2412
        %3886 = vmatprep.subr.mxu0 %v2438
        %3887 = vmatpush1.msra.mxu0 %v2437
        %3888 = vmatprep.subr.mxu0 %v2463
        %3889 = vmatpush1.msra.mxu0 %v2462
        %3890 = vmatprep.subr.mxu0 %v2488
        %3891 = vmatpush1.msra.mxu0 %v2487
        %3892 = vmatprep.subr.mxu0 %v2513
        %3893 = vmatpush1.msra.mxu0 %v2512
        %3894 = vmatprep.subr.mxu0 %v2538
        %3895 = vmatpush1.msra.mxu0 %v2537
        %3896 = vmatprep.subr.mxu0 %v2563
        %3897 = vmatpush1.msra.mxu0 %v2562
        %3898 = vmatprep.subr.mxu0 %v2588
        %3899 = vmatpush1.msra.mxu0 %v2587
        %3900 = vmatprep.subr.mxu0 %v2613
        %3901 = vmatpush1.msra.mxu0 %v2612
        %3902 = vmatprep.subr.mxu0 %v2638
        %3903 = vmatpush1.msra.mxu0 %v2637
        %3904 = vmatprep.subr.mxu0 %v2663
        %3905 = vmatpush1.msra.mxu0 %v2662
        %3906 = vmatprep.subr.mxu0 %v2688
        %3907 = vmatpush1.msra.mxu0 %v2687
        %3908 = vmatprep.subr.mxu0 %v2713
        %3909 = vmatpush1.msra.mxu0 %v2712
        %3910 = vmatprep.subr.mxu0 %v2738
        %3911 = vmatpush1.msra.mxu0 %v2737
        %3912 = vmatprep.subr.mxu0 %v2763
        %3913 = vmatpush1.msra.mxu0 %v2762
        %3914 = vmatprep.subr.mxu0 %v2788
        %3915 = vmatpush1.msra.mxu0 %v2787
        %3916 = vmatprep.subr.mxu0 %v2813
        %3917 = vmatpush1.msra.mxu0 %v2812
        %3918 = vmatprep.subr.mxu0 %v2838
        %3919 = vmatpush1.msra.mxu0 %v2837
        %3920 = vmatprep.subr.mxu0 %v2863
        %3921 = vmatpush1.msra.mxu0 %v2862
        %3922 = vmatprep.subr.mxu0 %v2888
        %3923 = vmatpush1.msra.mxu0 %v2887
        %3924 = vmatprep.subr.mxu0 %v2913
        %3925 = vmatpush1.msra.mxu0 %v2912
        %3926 = vmatprep.subr.mxu0 %v2938
        %3927 = vmatpush1.msra.mxu0 %v2937
        %3928 = vmatprep.subr.mxu0 %v2963
        %3929 = vmatpush1.msra.mxu0 %v2962
        %3930 = vmatprep.subr.mxu0 %v2988
        %3931 = vmatpush1.msra.mxu0 %v2987
        %3932 = vmatprep.subr.mxu0 %v3013
        %3933 = vmatpush1.msra.mxu0 %v3012
        %3934 = vmatprep.subr.mxu0 %v3038
        %3935 = vmatpush1.msra.mxu0 %v3037
        %3936 = vmatprep.subr.mxu0 %v3063
        %3937 = vmatpush1.msra.mxu0 %v3062
        %3938 = vmatprep.subr.mxu0 %v3088
        %3939 = vmatpush1.msra.mxu0 %v3087
        %3940 = vmatprep.mubr.f32.mxu0 %v1503
        %3941 = vmatmul.mubr.f32.gmra.mrb[0].mxu0 %v1502
        %v3942 = vpop.f32.mrb[0].mxu0
        %v3943 = vadd.f32 %v3872, %v3942
        %v3944 = vpop.f32.mrb[0].mxu0
        %v3945 = vadd.f32 %v3874, %v3944
        %3946 = vdwg.mxu0
        %3947 = vmatprep.subr.mxu0 %v1515
        %3948 = vmatpush1.msra.mxu0 %v1514
        %3949 = vmatprep.subr.mxu0 %v1540
        %3950 = vmatpush1.msra.mxu0 %v1539
        %3951 = vmatprep.subr.mxu0 %v1565
        %3952 = vmatpush1.msra.mxu0 %v1564
        %3953 = vmatprep.subr.mxu0 %v1590
        %3954 = vmatpush1.msra.mxu0 %v1589
        %3955 = vmatprep.subr.mxu0 %v1615
        %3956 = vmatpush1.msra.mxu0 %v1614
        %3957 = vmatprep.subr.mxu0 %v1640
        %3958 = vmatpush1.msra.mxu0 %v1639
        %3959 = vmatprep.subr.mxu0 %v1665
        %3960 = vmatpush1.msra.mxu0 %v1664
        %3961 = vmatprep.subr.mxu0 %v1690
        %3962 = vmatpush1.msra.mxu0 %v1689
        %3963 = vmatprep.subr.mxu0 %v1715
        %3964 = vmatpush1.msra.mxu0 %v1714
        %3965 = vmatprep.subr.mxu0 %v1740
        %3966 = vmatpush1.msra.mxu0 %v1739
        %3967 = vmatprep.subr.mxu0 %v1765
        %3968 = vmatpush1.msra.mxu0 %v1764
        %3969 = vmatprep.subr.mxu0 %v1790
        %3970 = vmatpush1.msra.mxu0 %v1789
        %3971 = vmatprep.subr.mxu0 %v1815
        %3972 = vmatpush1.msra.mxu0 %v1814
        %3973 = vmatprep.subr.mxu0 %v1840
        %3974 = vmatpush1.msra.mxu0 %v1839
        %3975 = vmatprep.subr.mxu0 %v1865
        %3976 = vmatpush1.msra.mxu0 %v1864
        %3977 = vmatprep.subr.mxu0 %v1890
        %3978 = vmatpush1.msra.mxu0 %v1889
        %3979 = vmatprep.subr.mxu0 %v1915
        %3980 = vmatpush1.msra.mxu0 %v1914
        %3981 = vmatprep.subr.mxu0 %v1940
        %3982 = vmatpush1.msra.mxu0 %v1939
        %3983 = vmatprep.subr.mxu0 %v1965
        %3984 = vmatpush1.msra.mxu0 %v1964
        %3985 = vmatprep.subr.mxu0 %v1990
        %3986 = vmatpush1.msra.mxu0 %v1989
        %3987 = vmatprep.subr.mxu0 %v2015
        %3988 = vmatpush1.msra.mxu0 %v2014
        %3989 = vmatprep.subr.mxu0 %v2040
        %3990 = vmatpush1.msra.mxu0 %v2039
        %3991 = vmatprep.subr.mxu0 %v2065
        %3992 = vmatpush1.msra.mxu0 %v2064
        %3993 = vmatprep.subr.mxu0 %v2090
        %3994 = vmatpush1.msra.mxu0 %v2089
        %3995 = vmatprep.subr.mxu0 %v2115
        %3996 = vmatpush1.msra.mxu0 %v2114
        %3997 = vmatprep.subr.mxu0 %v2140
        %3998 = vmatpush1.msra.mxu0 %v2139
        %3999 = vmatprep.subr.mxu0 %v2165
        %4000 = vmatpush1.msra.mxu0 %v2164
        %4001 = vmatprep.subr.mxu0 %v2190
        %4002 = vmatpush1.msra.mxu0 %v2189
        %4003 = vmatprep.subr.mxu0 %v2215
        %4004 = vmatpush1.msra.mxu0 %v2214
        %4005 = vmatprep.subr.mxu0 %v2240
        %4006 = vmatpush1.msra.mxu0 %v2239
        %4007 = vmatprep.subr.mxu0 %v2265
        %4008 = vmatpush1.msra.mxu0 %v2264
        %4009 = vmatprep.subr.mxu0 %v2290
        %4010 = vmatpush1.msra.mxu0 %v2289
        %4011 = vmatprep.mubr.f32.mxu0 %v1501
        %4012 = vmatmul.mubr.f32.gmra.mrb[0].mxu0 %v1500
        %v4013 = vpop.f32.mrb[0].mxu0
        %v4014 = vadd.f32 %v3155, %v4013
        %v4015 = vpop.f32.mrb[0].mxu0
        %v4016 = vadd.f32 %v3159, %v4015
        %4017 = vdwg.mxu0
        %4018 = vmatprep.subr.mxu0 %v2315
        %4019 = vmatpush1.msra.mxu0 %v2314
        %4020 = vmatprep.subr.mxu0 %v2340
        %4021 = vmatpush1.msra.mxu0 %v2339
        %4022 = vmatprep.subr.mxu0 %v2365
        %4023 = vmatpush1.msra.mxu0 %v2364
        %4024 = vmatprep.subr.mxu0 %v2390
        %4025 = vmatpush1.msra.mxu0 %v2389
        %4026 = vmatprep.subr.mxu0 %v2415
        %4027 = vmatpush1.msra.mxu0 %v2414
        %4028 = vmatprep.subr.mxu0 %v2440
        %4029 = vmatpush1.msra.mxu0 %v2439
        %4030 = vmatprep.subr.mxu0 %v2465
        %4031 = vmatpush1.msra.mxu0 %v2464
        %4032 = vmatprep.subr.mxu0 %v2490
        %4033 = vmatpush1.msra.mxu0 %v2489
        %4034 = vmatprep.subr.mxu0 %v2515
        %4035 = vmatpush1.msra.mxu0 %v2514
        %4036 = vmatprep.subr.mxu0 %v2540
        %4037 = vmatpush1.msra.mxu0 %v2539
        %4038 = vmatprep.subr.mxu0 %v2565
        %4039 = vmatpush1.msra.mxu0 %v2564
        %4040 = vmatprep.subr.mxu0 %v2590
        %4041 = vmatpush1.msra.mxu0 %v2589
        %4042 = vmatprep.subr.mxu0 %v2615
        %4043 = vmatpush1.msra.mxu0 %v2614
        %4044 = vmatprep.subr.mxu0 %v2640
        %4045 = vmatpush1.msra.mxu0 %v2639
        %4046 = vmatprep.subr.mxu0 %v2665
        %4047 = vmatpush1.msra.mxu0 %v2664
        %4048 = vmatprep.subr.mxu0 %v2690
        %4049 = vmatpush1.msra.mxu0 %v2689
        %4050 = vmatprep.subr.mxu0 %v2715
        %4051 = vmatpush1.msra.mxu0 %v2714
        %4052 = vmatprep.subr.mxu0 %v2740
        %4053 = vmatpush1.msra.mxu0 %v2739
        %4054 = vmatprep.subr.mxu0 %v2765
        %4055 = vmatpush1.msra.mxu0 %v2764
        %4056 = vmatprep.subr.mxu0 %v2790
        %4057 = vmatpush1.msra.mxu0 %v2789
        %4058 = vmatprep.subr.mxu0 %v2815
        %4059 = vmatpush1.msra.mxu0 %v2814
        %4060 = vmatprep.subr.mxu0 %v2840
        %4061 = vmatpush1.msra.mxu0 %v2839
        %4062 = vmatprep.subr.mxu0 %v2865
        %4063 = vmatpush1.msra.mxu0 %v2864
        %4064 = vmatprep.subr.mxu0 %v2890
        %4065 = vmatpush1.msra.mxu0 %v2889
        %4066 = vmatprep.subr.mxu0 %v2915
        %4067 = vmatpush1.msra.mxu0 %v2914
        %4068 = vmatprep.subr.mxu0 %v2940
        %4069 = vmatpush1.msra.mxu0 %v2939
        %4070 = vmatprep.subr.mxu0 %v2965
        %4071 = vmatpush1.msra.mxu0 %v2964
        %4072 = vmatprep.subr.mxu0 %v2990
        %4073 = vmatpush1.msra.mxu0 %v2989
        %4074 = vmatprep.subr.mxu0 %v3015
        %4075 = vmatpush1.msra.mxu0 %v3014
        %4076 = vmatprep.subr.mxu0 %v3040
        %4077 = vmatpush1.msra.mxu0 %v3039
        %4078 = vmatprep.subr.mxu0 %v3065
        %4079 = vmatpush1.msra.mxu0 %v3064
        %4080 = vmatprep.subr.mxu0 %v3090
        %4081 = vmatpush1.msra.mxu0 %v3089
        %4082 = vmatprep.mubr.f32.mxu0 %v1503
        %4083 = vmatmul.mubr.f32.gmra.mrb[0].mxu0 %v1502
        %v4084 = vpop.f32.mrb[0].mxu0
        %v4085 = vadd.f32 %v4014, %v4084
        %v4086 = vpop.f32.mrb[0].mxu0
        %v4087 = vadd.f32 %v4016, %v4086
        %4088 = vdwg.mxu0
        %4089 = vmatprep.subr.mxu0 %v1517
        %4090 = vmatpush1.msra.mxu0 %v1516
        %4091 = vmatprep.subr.mxu0 %v1542
        %4092 = vmatpush1.msra.mxu0 %v1541
        %4093 = vmatprep.subr.mxu0 %v1567
        %4094 = vmatpush1.msra.mxu0 %v1566
        %4095 = vmatprep.subr.mxu0 %v1592
        %4096 = vmatpush1.msra.mxu0 %v1591
        %4097 = vmatprep.subr.mxu0 %v1617
        %4098 = vmatpush1.msra.mxu0 %v1616
        %4099 = vmatprep.subr.mxu0 %v1642
        %4100 = vmatpush1.msra.mxu0 %v1641
        %4101 = vmatprep.subr.mxu0 %v1667
        %4102 = vmatpush1.msra.mxu0 %v1666
        %4103 = vmatprep.subr.mxu0 %v1692
        %4104 = vmatpush1.msra.mxu0 %v1691
        %4105 = vmatprep.subr.mxu0 %v1717
        %4106 = vmatpush1.msra.mxu0 %v1716
        %4107 = vmatprep.subr.mxu0 %v1742
        %4108 = vmatpush1.msra.mxu0 %v1741
        %4109 = vmatprep.subr.mxu0 %v1767
        %4110 = vmatpush1.msra.mxu0 %v1766
        %4111 = vmatprep.subr.mxu0 %v1792
        %4112 = vmatpush1.msra.mxu0 %v1791
        %4113 = vmatprep.subr.mxu0 %v1817
        %4114 = vmatpush1.msra.mxu0 %v1816
        %4115 = vmatprep.subr.mxu0 %v1842
        %4116 = vmatpush1.msra.mxu0 %v1841
        %4117 = vmatprep.subr.mxu0 %v1867
        %4118 = vmatpush1.msra.mxu0 %v1866
        %4119 = vmatprep.subr.mxu0 %v1892
        %4120 = vmatpush1.msra.mxu0 %v1891
        %4121 = vmatprep.subr.mxu0 %v1917
        %4122 = vmatpush1.msra.mxu0 %v1916
        %4123 = vmatprep.subr.mxu0 %v1942
        %4124 = vmatpush1.msra.mxu0 %v1941
        %4125 = vmatprep.subr.mxu0 %v1967
        %4126 = vmatpush1.msra.mxu0 %v1966
        %4127 = vmatprep.subr.mxu0 %v1992
        %4128 = vmatpush1.msra.mxu0 %v1991
        %4129 = vmatprep.subr.mxu0 %v2017
        %4130 = vmatpush1.msra.mxu0 %v2016
        %4131 = vmatprep.subr.mxu0 %v2042
        %4132 = vmatpush1.msra.mxu0 %v2041
        %4133 = vmatprep.subr.mxu0 %v2067
        %4134 = vmatpush1.msra.mxu0 %v2066
        %4135 = vmatprep.subr.mxu0 %v2092
        %4136 = vmatpush1.msra.mxu0 %v2091
        %4137 = vmatprep.subr.mxu0 %v2117
        %4138 = vmatpush1.msra.mxu0 %v2116
        %4139 = vmatprep.subr.mxu0 %v2142
        %4140 = vmatpush1.msra.mxu0 %v2141
        %4141 = vmatprep.subr.mxu0 %v2167
        %4142 = vmatpush1.msra.mxu0 %v2166
        %4143 = vmatprep.subr.mxu0 %v2192
        %4144 = vmatpush1.msra.mxu0 %v2191
        %4145 = vmatprep.subr.mxu0 %v2217
        %4146 = vmatpush1.msra.mxu0 %v2216
        %4147 = vmatprep.subr.mxu0 %v2242
        %4148 = vmatpush1.msra.mxu0 %v2241
        %4149 = vmatprep.subr.mxu0 %v2267
        %4150 = vmatpush1.msra.mxu0 %v2266
        %4151 = vmatprep.subr.mxu0 %v2292
        %4152 = vmatpush1.msra.mxu0 %v2291
        %4153 = vmatprep.mubr.f32.mxu0 %v1501
        %4154 = vmatmul.mubr.f32.gmra.mrb[0].mxu0 %v1500
        %v4155 = vpop.f32.mrb[0].mxu0
        %v4156 = vadd.f32 %v3163, %v4155
        %v4157 = vpop.f32.mrb[0].mxu0
        %v4158 = vadd.f32 %v3167, %v4157
        %4159 = vdwg.mxu0
        %4160 = vmatprep.subr.mxu0 %v2317
        %4161 = vmatpush1.msra.mxu0 %v2316
        %4162 = vmatprep.subr.mxu0 %v2342
        %4163 = vmatpush1.msra.mxu0 %v2341
        %4164 = vmatprep.subr.mxu0 %v2367
        %4165 = vmatpush1.msra.mxu0 %v2366
        %4166 = vmatprep.subr.mxu0 %v2392
        %4167 = vmatpush1.msra.mxu0 %v2391
        %4168 = vmatprep.subr.mxu0 %v2417
        %4169 = vmatpush1.msra.mxu0 %v2416
        %4170 = vmatprep.subr.mxu0 %v2442
        %4171 = vmatpush1.msra.mxu0 %v2441
        %4172 = vmatprep.subr.mxu0 %v2467
        %4173 = vmatpush1.msra.mxu0 %v2466
        %4174 = vmatprep.subr.mxu0 %v2492
        %4175 = vmatpush1.msra.mxu0 %v2491
        %4176 = vmatprep.subr.mxu0 %v2517
        %4177 = vmatpush1.msra.mxu0 %v2516
        %4178 = vmatprep.subr.mxu0 %v2542
        %4179 = vmatpush1.msra.mxu0 %v2541
        %4180 = vmatprep.subr.mxu0 %v2567
        %4181 = vmatpush1.msra.mxu0 %v2566
        %4182 = vmatprep.subr.mxu0 %v2592
        %4183 = vmatpush1.msra.mxu0 %v2591
        %4184 = vmatprep.subr.mxu0 %v2617
        %4185 = vmatpush1.msra.mxu0 %v2616
        %4186 = vmatprep.subr.mxu0 %v2642
        %4187 = vmatpush1.msra.mxu0 %v2641
        %4188 = vmatprep.subr.mxu0 %v2667
        %4189 = vmatpush1.msra.mxu0 %v2666
        %4190 = vmatprep.subr.mxu0 %v2692
        %4191 = vmatpush1.msra.mxu0 %v2691
        %4192 = vmatprep.subr.mxu0 %v2717
        %4193 = vmatpush1.msra.mxu0 %v2716
        %4194 = vmatprep.subr.mxu0 %v2742
        %4195 = vmatpush1.msra.mxu0 %v2741
        %4196 = vmatprep.subr.mxu0 %v2767
        %4197 = vmatpush1.msra.mxu0 %v2766
        %4198 = vmatprep.subr.mxu0 %v2792
        %4199 = vmatpush1.msra.mxu0 %v2791
        %4200 = vmatprep.subr.mxu0 %v2817
        %4201 = vmatpush1.msra.mxu0 %v2816
        %4202 = vmatprep.subr.mxu0 %v2842
        %4203 = vmatpush1.msra.mxu0 %v2841
        %4204 = vmatprep.subr.mxu0 %v2867
        %4205 = vmatpush1.msra.mxu0 %v2866
        %4206 = vmatprep.subr.mxu0 %v2892
        %4207 = vmatpush1.msra.mxu0 %v2891
        %4208 = vmatprep.subr.mxu0 %v2917
        %4209 = vmatpush1.msra.mxu0 %v2916
        %4210 = vmatprep.subr.mxu0 %v2942
        %4211 = vmatpush1.msra.mxu0 %v2941
        %4212 = vmatprep.subr.mxu0 %v2967
        %4213 = vmatpush1.msra.mxu0 %v2966
        %4214 = vmatprep.subr.mxu0 %v2992
        %4215 = vmatpush1.msra.mxu0 %v2991
        %4216 = vmatprep.subr.mxu0 %v3017
        %4217 = vmatpush1.msra.mxu0 %v3016
        %4218 = vmatprep.subr.mxu0 %v3042
        %4219 = vmatpush1.msra.mxu0 %v3041
        %4220 = vmatprep.subr.mxu0 %v3067
        %4221 = vmatpush1.msra.mxu0 %v3066
        %4222 = vmatprep.subr.mxu0 %v3092
        %4223 = vmatpush1.msra.mxu0 %v3091
        %4224 = vmatprep.mubr.f32.mxu0 %v1503
        %4225 = vmatmul.mubr.f32.gmra.mrb[0].mxu0 %v1502
        %v4226 = vpop.f32.mrb[0].mxu0
        %v4227 = vadd.f32 %v4156, %v4226
        %v4228 = vpop.f32.mrb[0].mxu0
        %v4229 = vadd.f32 %v4158, %v4228
        %4230 = vdwg.mxu0
        %4231 = vmatprep.subr.mxu0 %v1519
        %4232 = vmatpush1.msra.mxu0 %v1518
        %4233 = vmatprep.subr.mxu0 %v1544
        %4234 = vmatpush1.msra.mxu0 %v1543
        %4235 = vmatprep.subr.mxu0 %v1569
        %4236 = vmatpush1.msra.mxu0 %v1568
        %4237 = vmatprep.subr.mxu0 %v1594
        %4238 = vmatpush1.msra.mxu0 %v1593
        %4239 = vmatprep.subr.mxu0 %v1619
        %4240 = vmatpush1.msra.mxu0 %v1618
        %4241 = vmatprep.subr.mxu0 %v1644
        %4242 = vmatpush1.msra.mxu0 %v1643
        %4243 = vmatprep.subr.mxu0 %v1669
        %4244 = vmatpush1.msra.mxu0 %v1668
        %4245 = vmatprep.subr.mxu0 %v1694
        %4246 = vmatpush1.msra.mxu0 %v1693
        %4247 = vmatprep.subr.mxu0 %v1719
        %4248 = vmatpush1.msra.mxu0 %v1718
        %4249 = vmatprep.subr.mxu0 %v1744
        %4250 = vmatpush1.msra.mxu0 %v1743
        %4251 = vmatprep.subr.mxu0 %v1769
        %4252 = vmatpush1.msra.mxu0 %v1768
        %4253 = vmatprep.subr.mxu0 %v1794
        %4254 = vmatpush1.msra.mxu0 %v1793
        %4255 = vmatprep.subr.mxu0 %v1819
        %4256 = vmatpush1.msra.mxu0 %v1818
        %4257 = vmatprep.subr.mxu0 %v1844
        %4258 = vmatpush1.msra.mxu0 %v1843
        %4259 = vmatprep.subr.mxu0 %v1869
        %4260 = vmatpush1.msra.mxu0 %v1868
        %4261 = vmatprep.subr.mxu0 %v1894
        %4262 = vmatpush1.msra.mxu0 %v1893
        %4263 = vmatprep.subr.mxu0 %v1919
        %4264 = vmatpush1.msra.mxu0 %v1918
        %4265 = vmatprep.subr.mxu0 %v1944
        %4266 = vmatpush1.msra.mxu0 %v1943
        %4267 = vmatprep.subr.mxu0 %v1969
        %4268 = vmatpush1.msra.mxu0 %v1968
        %4269 = vmatprep.subr.mxu0 %v1994
        %4270 = vmatpush1.msra.mxu0 %v1993
        %4271 = vmatprep.subr.mxu0 %v2019
        %4272 = vmatpush1.msra.mxu0 %v2018
        %4273 = vmatprep.subr.mxu0 %v2044
        %4274 = vmatpush1.msra.mxu0 %v2043
        %4275 = vmatprep.subr.mxu0 %v2069
        %4276 = vmatpush1.msra.mxu0 %v2068
        %4277 = vmatprep.subr.mxu0 %v2094
        %4278 = vmatpush1.msra.mxu0 %v2093
        %4279 = vmatprep.subr.mxu0 %v2119
        %4280 = vmatpush1.msra.mxu0 %v2118
        %4281 = vmatprep.subr.mxu0 %v2144
        %4282 = vmatpush1.msra.mxu0 %v2143
        %4283 = vmatprep.subr.mxu0 %v2169
        %4284 = vmatpush1.msra.mxu0 %v2168
        %4285 = vmatprep.subr.mxu0 %v2194
        %4286 = vmatpush1.msra.mxu0 %v2193
        %4287 = vmatprep.subr.mxu0 %v2219
        %4288 = vmatpush1.msra.mxu0 %v2218
        %4289 = vmatprep.subr.mxu0 %v2244
        %4290 = vmatpush1.msra.mxu0 %v2243
        %4291 = vmatprep.subr.mxu0 %v2269
        %4292 = vmatpush1.msra.mxu0 %v2268
        %4293 = vmatprep.subr.mxu0 %v2294
        %4294 = vmatpush1.msra.mxu0 %v2293
        %4295 = vmatprep.mubr.f32.mxu0 %v1501
        %4296 = vmatmul.mubr.f32.gmra.mrb[0].mxu0 %v1500
        %v4297 = vpop.f32.mrb[0].mxu0
        %v4298 = vadd.f32 %v3171, %v4297
        %v4299 = vpop.f32.mrb[0].mxu0
        %v4300 = vadd.f32 %v3175, %v4299
        %4301 = vdwg.mxu0
        %4302 = vmatprep.subr.mxu0 %v2319
        %4303 = vmatpush1.msra.mxu0 %v2318
        %4304 = vmatprep.subr.mxu0 %v2344
        %4305 = vmatpush1.msra.mxu0 %v2343
        %4306 = vmatprep.subr.mxu0 %v2369
        %4307 = vmatpush1.msra.mxu0 %v2368
        %4308 = vmatprep.subr.mxu0 %v2394
        %4309 = vmatpush1.msra.mxu0 %v2393
        %4310 = vmatprep.subr.mxu0 %v2419
        %4311 = vmatpush1.msra.mxu0 %v2418
        %4312 = vmatprep.subr.mxu0 %v2444
        %4313 = vmatpush1.msra.mxu0 %v2443
        %4314 = vmatprep.subr.mxu0 %v2469
        %4315 = vmatpush1.msra.mxu0 %v2468
        %4316 = vmatprep.subr.mxu0 %v2494
        %4317 = vmatpush1.msra.mxu0 %v2493
        %4318 = vmatprep.subr.mxu0 %v2519
        %4319 = vmatpush1.msra.mxu0 %v2518
        %4320 = vmatprep.subr.mxu0 %v2544
        %4321 = vmatpush1.msra.mxu0 %v2543
        %4322 = vmatprep.subr.mxu0 %v2569
        %4323 = vmatpush1.msra.mxu0 %v2568
        %4324 = vmatprep.subr.mxu0 %v2594
        %4325 = vmatpush1.msra.mxu0 %v2593
        %4326 = vmatprep.subr.mxu0 %v2619
        %4327 = vmatpush1.msra.mxu0 %v2618
        %4328 = vmatprep.subr.mxu0 %v2644
        %4329 = vmatpush1.msra.mxu0 %v2643
        %4330 = vmatprep.subr.mxu0 %v2669
        %4331 = vmatpush1.msra.mxu0 %v2668
        %4332 = vmatprep.subr.mxu0 %v2694
        %4333 = vmatpush1.msra.mxu0 %v2693
        %4334 = vmatprep.subr.mxu0 %v2719
        %4335 = vmatpush1.msra.mxu0 %v2718
        %4336 = vmatprep.subr.mxu0 %v2744
        %4337 = vmatpush1.msra.mxu0 %v2743
        %4338 = vmatprep.subr.mxu0 %v2769
        %4339 = vmatpush1.msra.mxu0 %v2768
        %4340 = vmatprep.subr.mxu0 %v2794
        %4341 = vmatpush1.msra.mxu0 %v2793
        %4342 = vmatprep.subr.mxu0 %v2819
        %4343 = vmatpush1.msra.mxu0 %v2818
        %4344 = vmatprep.subr.mxu0 %v2844
        %4345 = vmatpush1.msra.mxu0 %v2843
        %4346 = vmatprep.subr.mxu0 %v2869
        %4347 = vmatpush1.msra.mxu0 %v2868
        %4348 = vmatprep.subr.mxu0 %v2894
        %4349 = vmatpush1.msra.mxu0 %v2893
        %4350 = vmatprep.subr.mxu0 %v2919
        %4351 = vmatpush1.msra.mxu0 %v2918
        %4352 = vmatprep.subr.mxu0 %v2944
        %4353 = vmatpush1.msra.mxu0 %v2943
        %4354 = vmatprep.subr.mxu0 %v2969
        %4355 = vmatpush1.msra.mxu0 %v2968
        %4356 = vmatprep.subr.mxu0 %v2994
        %4357 = vmatpush1.msra.mxu0 %v2993
        %4358 = vmatprep.subr.mxu0 %v3019
        %4359 = vmatpush1.msra.mxu0 %v3018
        %4360 = vmatprep.subr.mxu0 %v3044
        %4361 = vmatpush1.msra.mxu0 %v3043
        %4362 = vmatprep.subr.mxu0 %v3069
        %4363 = vmatpush1.msra.mxu0 %v3068
        %4364 = vmatprep.subr.mxu0 %v3094
        %4365 = vmatpush1.msra.mxu0 %v3093
        %4366 = vmatprep.mubr.f32.mxu0 %v1503
        %4367 = vmatmul.mubr.f32.gmra.mrb[0].mxu0 %v1502
        %v4368 = vpop.f32.mrb[0].mxu0
        %v4369 = vadd.f32 %v4298, %v4368
        %v4370 = vpop.f32.mrb[0].mxu0
        %v4371 = vadd.f32 %v4300, %v4370
        %4372 = vdwg.mxu0
        %4373 = vmatprep.subr.mxu0 %v1521
        %4374 = vmatpush1.msra.mxu0 %v1520
        %4375 = vmatprep.subr.mxu0 %v1546
        %4376 = vmatpush1.msra.mxu0 %v1545
        %4377 = vmatprep.subr.mxu0 %v1571
        %4378 = vmatpush1.msra.mxu0 %v1570
        %4379 = vmatprep.subr.mxu0 %v1596
        %4380 = vmatpush1.msra.mxu0 %v1595
        %4381 = vmatprep.subr.mxu0 %v1621
        %4382 = vmatpush1.msra.mxu0 %v1620
        %4383 = vmatprep.subr.mxu0 %v1646
        %4384 = vmatpush1.msra.mxu0 %v1645
        %4385 = vmatprep.subr.mxu0 %v1671
        %4386 = vmatpush1.msra.mxu0 %v1670
        %4387 = vmatprep.subr.mxu0 %v1696
        %4388 = vmatpush1.msra.mxu0 %v1695
        %4389 = vmatprep.subr.mxu0 %v1721
        %4390 = vmatpush1.msra.mxu0 %v1720
        %4391 = vmatprep.subr.mxu0 %v1746
        %4392 = vmatpush1.msra.mxu0 %v1745
        %4393 = vmatprep.subr.mxu0 %v1771
        %4394 = vmatpush1.msra.mxu0 %v1770
        %4395 = vmatprep.subr.mxu0 %v1796
        %4396 = vmatpush1.msra.mxu0 %v1795
        %4397 = vmatprep.subr.mxu0 %v1821
        %4398 = vmatpush1.msra.mxu0 %v1820
        %4399 = vmatprep.subr.mxu0 %v1846
        %4400 = vmatpush1.msra.mxu0 %v1845
        %4401 = vmatprep.subr.mxu0 %v1871
        %4402 = vmatpush1.msra.mxu0 %v1870
        %4403 = vmatprep.subr.mxu0 %v1896
        %4404 = vmatpush1.msra.mxu0 %v1895
        %4405 = vmatprep.subr.mxu0 %v1921
        %4406 = vmatpush1.msra.mxu0 %v1920
        %4407 = vmatprep.subr.mxu0 %v1946
        %4408 = vmatpush1.msra.mxu0 %v1945
        %4409 = vmatprep.subr.mxu0 %v1971
        %4410 = vmatpush1.msra.mxu0 %v1970
        %4411 = vmatprep.subr.mxu0 %v1996
        %4412 = vmatpush1.msra.mxu0 %v1995
        %4413 = vmatprep.subr.mxu0 %v2021
        %4414 = vmatpush1.msra.mxu0 %v2020
        %4415 = vmatprep.subr.mxu0 %v2046
        %4416 = vmatpush1.msra.mxu0 %v2045
        %4417 = vmatprep.subr.mxu0 %v2071
        %4418 = vmatpush1.msra.mxu0 %v2070
        %4419 = vmatprep.subr.mxu0 %v2096
        %4420 = vmatpush1.msra.mxu0 %v2095
        %4421 = vmatprep.subr.mxu0 %v2121
        %4422 = vmatpush1.msra.mxu0 %v2120
        %4423 = vmatprep.subr.mxu0 %v2146
        %4424 = vmatpush1.msra.mxu0 %v2145
        %4425 = vmatprep.subr.mxu0 %v2171
        %4426 = vmatpush1.msra.mxu0 %v2170
        %4427 = vmatprep.subr.mxu0 %v2196
        %4428 = vmatpush1.msra.mxu0 %v2195
        %4429 = vmatprep.subr.mxu0 %v2221
        %4430 = vmatpush1.msra.mxu0 %v2220
        %4431 = vmatprep.subr.mxu0 %v2246
        %4432 = vmatpush1.msra.mxu0 %v2245
        %4433 = vmatprep.subr.mxu0 %v2271
        %4434 = vmatpush1.msra.mxu0 %v2270
        %4435 = vmatprep.subr.mxu0 %v2296
        %4436 = vmatpush1.msra.mxu0 %v2295
        %4437 = vmatprep.mubr.f32.mxu0 %v1501
        %4438 = vmatmul.mubr.f32.gmra.mrb[0].mxu0 %v1500
        %v4439 = vpop.f32.mrb[0].mxu0
        %v4440 = vadd.f32 %v3179, %v4439
        %v4441 = vpop.f32.mrb[0].mxu0
        %v4442 = vadd.f32 %v3183, %v4441
        %4443 = vdwg.mxu0
        %4444 = vmatprep.subr.mxu0 %v2321
        %4445 = vmatpush1.msra.mxu0 %v2320
        %4446 = vmatprep.subr.mxu0 %v2346
        %4447 = vmatpush1.msra.mxu0 %v2345
        %4448 = vmatprep.subr.mxu0 %v2371
        %4449 = vmatpush1.msra.mxu0 %v2370
        %4450 = vmatprep.subr.mxu0 %v2396
        %4451 = vmatpush1.msra.mxu0 %v2395
        %4452 = vmatprep.subr.mxu0 %v2421
        %4453 = vmatpush1.msra.mxu0 %v2420
        %4454 = vmatprep.subr.mxu0 %v2446
        %4455 = vmatpush1.msra.mxu0 %v2445
        %4456 = vmatprep.subr.mxu0 %v2471
        %4457 = vmatpush1.msra.mxu0 %v2470
        %4458 = vmatprep.subr.mxu0 %v2496
        %4459 = vmatpush1.msra.mxu0 %v2495
        %4460 = vmatprep.subr.mxu0 %v2521
        %4461 = vmatpush1.msra.mxu0 %v2520
        %4462 = vmatprep.subr.mxu0 %v2546
        %4463 = vmatpush1.msra.mxu0 %v2545
        %4464 = vmatprep.subr.mxu0 %v2571
        %4465 = vmatpush1.msra.mxu0 %v2570
        %4466 = vmatprep.subr.mxu0 %v2596
        %4467 = vmatpush1.msra.mxu0 %v2595
        %4468 = vmatprep.subr.mxu0 %v2621
        %4469 = vmatpush1.msra.mxu0 %v2620
        %4470 = vmatprep.subr.mxu0 %v2646
        %4471 = vmatpush1.msra.mxu0 %v2645
        %4472 = vmatprep.subr.mxu0 %v2671
        %4473 = vmatpush1.msra.mxu0 %v2670
        %4474 = vmatprep.subr.mxu0 %v2696
        %4475 = vmatpush1.msra.mxu0 %v2695
        %4476 = vmatprep.subr.mxu0 %v2721
        %4477 = vmatpush1.msra.mxu0 %v2720
        %4478 = vmatprep.subr.mxu0 %v2746
        %4479 = vmatpush1.msra.mxu0 %v2745
        %4480 = vmatprep.subr.mxu0 %v2771
        %4481 = vmatpush1.msra.mxu0 %v2770
        %4482 = vmatprep.subr.mxu0 %v2796
        %4483 = vmatpush1.msra.mxu0 %v2795
        %4484 = vmatprep.subr.mxu0 %v2821
        %4485 = vmatpush1.msra.mxu0 %v2820
        %4486 = vmatprep.subr.mxu0 %v2846
        %4487 = vmatpush1.msra.mxu0 %v2845
        %4488 = vmatprep.subr.mxu0 %v2871
        %4489 = vmatpush1.msra.mxu0 %v2870
        %4490 = vmatprep.subr.mxu0 %v2896
        %4491 = vmatpush1.msra.mxu0 %v2895
        %4492 = vmatprep.subr.mxu0 %v2921
        %4493 = vmatpush1.msra.mxu0 %v2920
        %4494 = vmatprep.subr.mxu0 %v2946
        %4495 = vmatpush1.msra.mxu0 %v2945
        %4496 = vmatprep.subr.mxu0 %v2971
        %4497 = vmatpush1.msra.mxu0 %v2970
        %4498 = vmatprep.subr.mxu0 %v2996
        %4499 = vmatpush1.msra.mxu0 %v2995
        %4500 = vmatprep.subr.mxu0 %v3021
        %4501 = vmatpush1.msra.mxu0 %v3020
        %4502 = vmatprep.subr.mxu0 %v3046
        %4503 = vmatpush1.msra.mxu0 %v3045
        %4504 = vmatprep.subr.mxu0 %v3071
        %4505 = vmatpush1.msra.mxu0 %v3070
        %4506 = vmatprep.subr.mxu0 %v3096
        %4507 = vmatpush1.msra.mxu0 %v3095
        %4508 = vmatprep.mubr.f32.mxu0 %v1503
        %4509 = vmatmul.mubr.f32.gmra.mrb[0].mxu0 %v1502
        %v4510 = vpop.f32.mrb[0].mxu0
        %v4511 = vadd.f32 %v4440, %v4510
        %v4512 = vpop.f32.mrb[0].mxu0
        %v4513 = vadd.f32 %v4442, %v4512
        %4514 = vdwg.mxu0
        %4515 = vmatprep.subr.mxu0 %v1523
        %4516 = vmatpush1.msra.mxu0 %v1522
        %4517 = vmatprep.subr.mxu0 %v1548
        %4518 = vmatpush1.msra.mxu0 %v1547
        %4519 = vmatprep.subr.mxu0 %v1573
        %4520 = vmatpush1.msra.mxu0 %v1572
        %4521 = vmatprep.subr.mxu0 %v1598
        %4522 = vmatpush1.msra.mxu0 %v1597
        %4523 = vmatprep.subr.mxu0 %v1623
        %4524 = vmatpush1.msra.mxu0 %v1622
        %4525 = vmatprep.subr.mxu0 %v1648
        %4526 = vmatpush1.msra.mxu0 %v1647
        %4527 = vmatprep.subr.mxu0 %v1673
        %4528 = vmatpush1.msra.mxu0 %v1672
        %4529 = vmatprep.subr.mxu0 %v1698
        %4530 = vmatpush1.msra.mxu0 %v1697
        %4531 = vmatprep.subr.mxu0 %v1723
        %4532 = vmatpush1.msra.mxu0 %v1722
        %4533 = vmatprep.subr.mxu0 %v1748
        %4534 = vmatpush1.msra.mxu0 %v1747
        %4535 = vmatprep.subr.mxu0 %v1773
        %4536 = vmatpush1.msra.mxu0 %v1772
        %4537 = vmatprep.subr.mxu0 %v1798
        %4538 = vmatpush1.msra.mxu0 %v1797
        %4539 = vmatprep.subr.mxu0 %v1823
        %4540 = vmatpush1.msra.mxu0 %v1822
        %4541 = vmatprep.subr.mxu0 %v1848
        %4542 = vmatpush1.msra.mxu0 %v1847
        %4543 = vmatprep.subr.mxu0 %v1873
        %4544 = vmatpush1.msra.mxu0 %v1872
        %4545 = vmatprep.subr.mxu0 %v1898
        %4546 = vmatpush1.msra.mxu0 %v1897
        %4547 = vmatprep.subr.mxu0 %v1923
        %4548 = vmatpush1.msra.mxu0 %v1922
        %4549 = vmatprep.subr.mxu0 %v1948
        %4550 = vmatpush1.msra.mxu0 %v1947
        %4551 = vmatprep.subr.mxu0 %v1973
        %4552 = vmatpush1.msra.mxu0 %v1972
        %4553 = vmatprep.subr.mxu0 %v1998
        %4554 = vmatpush1.msra.mxu0 %v1997
        %4555 = vmatprep.subr.mxu0 %v2023
        %4556 = vmatpush1.msra.mxu0 %v2022
        %4557 = vmatprep.subr.mxu0 %v2048
        %4558 = vmatpush1.msra.mxu0 %v2047
        %4559 = vmatprep.subr.mxu0 %v2073
        %4560 = vmatpush1.msra.mxu0 %v2072
        %4561 = vmatprep.subr.mxu0 %v2098
        %4562 = vmatpush1.msra.mxu0 %v2097
        %4563 = vmatprep.subr.mxu0 %v2123
        %4564 = vmatpush1.msra.mxu0 %v2122
        %4565 = vmatprep.subr.mxu0 %v2148
        %4566 = vmatpush1.msra.mxu0 %v2147
        %4567 = vmatprep.subr.mxu0 %v2173
        %4568 = vmatpush1.msra.mxu0 %v2172
        %4569 = vmatprep.subr.mxu0 %v2198
        %4570 = vmatpush1.msra.mxu0 %v2197
        %4571 = vmatprep.subr.mxu0 %v2223
        %4572 = vmatpush1.msra.mxu0 %v2222
        %4573 = vmatprep.subr.mxu0 %v2248
        %4574 = vmatpush1.msra.mxu0 %v2247
        %4575 = vmatprep.subr.mxu0 %v2273
        %4576 = vmatpush1.msra.mxu0 %v2272
        %4577 = vmatprep.subr.mxu0 %v2298
        %4578 = vmatpush1.msra.mxu0 %v2297
        %4579 = vmatprep.mubr.f32.mxu0 %v1501
        %4580 = vmatmul.mubr.f32.gmra.mrb[0].mxu0 %v1500
        %v4581 = vpop.f32.mrb[0].mxu0
        %v4582 = vadd.f32 %v3187, %v4581
        %v4583 = vpop.f32.mrb[0].mxu0
        %v4584 = vadd.f32 %v3191, %v4583
        %4585 = vdwg.mxu0
        %4586 = vmatprep.subr.mxu0 %v2323
        %4587 = vmatpush1.msra.mxu0 %v2322
        %4588 = vmatprep.subr.mxu0 %v2348
        %4589 = vmatpush1.msra.mxu0 %v2347
        %4590 = vmatprep.subr.mxu0 %v2373
        %4591 = vmatpush1.msra.mxu0 %v2372
        %4592 = vmatprep.subr.mxu0 %v2398
        %4593 = vmatpush1.msra.mxu0 %v2397
        %4594 = vmatprep.subr.mxu0 %v2423
        %4595 = vmatpush1.msra.mxu0 %v2422
        %4596 = vmatprep.subr.mxu0 %v2448
        %4597 = vmatpush1.msra.mxu0 %v2447
        %4598 = vmatprep.subr.mxu0 %v2473
        %4599 = vmatpush1.msra.mxu0 %v2472
        %4600 = vmatprep.subr.mxu0 %v2498
        %4601 = vmatpush1.msra.mxu0 %v2497
        %4602 = vmatprep.subr.mxu0 %v2523
        %4603 = vmatpush1.msra.mxu0 %v2522
        %4604 = vmatprep.subr.mxu0 %v2548
        %4605 = vmatpush1.msra.mxu0 %v2547
        %4606 = vmatprep.subr.mxu0 %v2573
        %4607 = vmatpush1.msra.mxu0 %v2572
        %4608 = vmatprep.subr.mxu0 %v2598
        %4609 = vmatpush1.msra.mxu0 %v2597
        %4610 = vmatprep.subr.mxu0 %v2623
        %4611 = vmatpush1.msra.mxu0 %v2622
        %4612 = vmatprep.subr.mxu0 %v2648
        %4613 = vmatpush1.msra.mxu0 %v2647
        %4614 = vmatprep.subr.mxu0 %v2673
        %4615 = vmatpush1.msra.mxu0 %v2672
        %4616 = vmatprep.subr.mxu0 %v2698
        %4617 = vmatpush1.msra.mxu0 %v2697
        %4618 = vmatprep.subr.mxu0 %v2723
        %4619 = vmatpush1.msra.mxu0 %v2722
        %4620 = vmatprep.subr.mxu0 %v2748
        %4621 = vmatpush1.msra.mxu0 %v2747
        %4622 = vmatprep.subr.mxu0 %v2773
        %4623 = vmatpush1.msra.mxu0 %v2772
        %4624 = vmatprep.subr.mxu0 %v2798
        %4625 = vmatpush1.msra.mxu0 %v2797
        %4626 = vmatprep.subr.mxu0 %v2823
        %4627 = vmatpush1.msra.mxu0 %v2822
        %4628 = vmatprep.subr.mxu0 %v2848
        %4629 = vmatpush1.msra.mxu0 %v2847
        %4630 = vmatprep.subr.mxu0 %v2873
        %4631 = vmatpush1.msra.mxu0 %v2872
        %4632 = vmatprep.subr.mxu0 %v2898
        %4633 = vmatpush1.msra.mxu0 %v2897
        %4634 = vmatprep.subr.mxu0 %v2923
        %4635 = vmatpush1.msra.mxu0 %v2922
        %4636 = vmatprep.subr.mxu0 %v2948
        %4637 = vmatpush1.msra.mxu0 %v2947
        %4638 = vmatprep.subr.mxu0 %v2973
        %4639 = vmatpush1.msra.mxu0 %v2972
        %4640 = vmatprep.subr.mxu0 %v2998
        %4641 = vmatpush1.msra.mxu0 %v2997
        %4642 = vmatprep.subr.mxu0 %v3023
        %4643 = vmatpush1.msra.mxu0 %v3022
        %4644 = vmatprep.subr.mxu0 %v3048
        %4645 = vmatpush1.msra.mxu0 %v3047
        %4646 = vmatprep.subr.mxu0 %v3073
        %4647 = vmatpush1.msra.mxu0 %v3072
        %4648 = vmatprep.subr.mxu0 %v3098
        %4649 = vmatpush1.msra.mxu0 %v3097
        %4650 = vmatprep.mubr.f32.mxu0 %v1503
        %4651 = vmatmul.mubr.f32.gmra.mrb[0].mxu0 %v1502
        %v4652 = vpop.f32.mrb[0].mxu0
        %v4653 = vadd.f32 %v4582, %v4652
        %v4654 = vpop.f32.mrb[0].mxu0
        %v4655 = vadd.f32 %v4584, %v4654
        %4656 = vdwg.mxu0
        %4657 = vmatprep.subr.mxu0 %v1525
        %4658 = vmatpush1.msra.mxu0 %v1524
        %4659 = vmatprep.subr.mxu0 %v1550
        %4660 = vmatpush1.msra.mxu0 %v1549
        %4661 = vmatprep.subr.mxu0 %v1575
        %4662 = vmatpush1.msra.mxu0 %v1574
        %4663 = vmatprep.subr.mxu0 %v1600
        %4664 = vmatpush1.msra.mxu0 %v1599
        %4665 = vmatprep.subr.mxu0 %v1625
        %4666 = vmatpush1.msra.mxu0 %v1624
        %4667 = vmatprep.subr.mxu0 %v1650
        %4668 = vmatpush1.msra.mxu0 %v1649
        %4669 = vmatprep.subr.mxu0 %v1675
        %4670 = vmatpush1.msra.mxu0 %v1674
        %4671 = vmatprep.subr.mxu0 %v1700
        %4672 = vmatpush1.msra.mxu0 %v1699
        %4673 = vmatprep.subr.mxu0 %v1725
        %4674 = vmatpush1.msra.mxu0 %v1724
        %4675 = vmatprep.subr.mxu0 %v1750
        %4676 = vmatpush1.msra.mxu0 %v1749
        %4677 = vmatprep.subr.mxu0 %v1775
        %4678 = vmatpush1.msra.mxu0 %v1774
        %4679 = vmatprep.subr.mxu0 %v1800
        %4680 = vmatpush1.msra.mxu0 %v1799
        %4681 = vmatprep.subr.mxu0 %v1825
        %4682 = vmatpush1.msra.mxu0 %v1824
        %4683 = vmatprep.subr.mxu0 %v1850
        %4684 = vmatpush1.msra.mxu0 %v1849
        %4685 = vmatprep.subr.mxu0 %v1875
        %4686 = vmatpush1.msra.mxu0 %v1874
        %4687 = vmatprep.subr.mxu0 %v1900
        %4688 = vmatpush1.msra.mxu0 %v1899
        %4689 = vmatprep.subr.mxu0 %v1925
        %4690 = vmatpush1.msra.mxu0 %v1924
        %4691 = vmatprep.subr.mxu0 %v1950
        %4692 = vmatpush1.msra.mxu0 %v1949
        %4693 = vmatprep.subr.mxu0 %v1975
        %4694 = vmatpush1.msra.mxu0 %v1974
        %4695 = vmatprep.subr.mxu0 %v2000
        %4696 = vmatpush1.msra.mxu0 %v1999
        %4697 = vmatprep.subr.mxu0 %v2025
        %4698 = vmatpush1.msra.mxu0 %v2024
        %4699 = vmatprep.subr.mxu0 %v2050
        %4700 = vmatpush1.msra.mxu0 %v2049
        %4701 = vmatprep.subr.mxu0 %v2075
        %4702 = vmatpush1.msra.mxu0 %v2074
        %4703 = vmatprep.subr.mxu0 %v2100
        %4704 = vmatpush1.msra.mxu0 %v2099
        %4705 = vmatprep.subr.mxu0 %v2125
        %4706 = vmatpush1.msra.mxu0 %v2124
        %4707 = vmatprep.subr.mxu0 %v2150
        %4708 = vmatpush1.msra.mxu0 %v2149
        %4709 = vmatprep.subr.mxu0 %v2175
        %4710 = vmatpush1.msra.mxu0 %v2174
        %4711 = vmatprep.subr.mxu0 %v2200
        %4712 = vmatpush1.msra.mxu0 %v2199
        %4713 = vmatprep.subr.mxu0 %v2225
        %4714 = vmatpush1.msra.mxu0 %v2224
        %4715 = vmatprep.subr.mxu0 %v2250
        %4716 = vmatpush1.msra.mxu0 %v2249
        %4717 = vmatprep.subr.mxu0 %v2275
        %4718 = vmatpush1.msra.mxu0 %v2274
        %4719 = vmatprep.subr.mxu0 %v2300
        %4720 = vmatpush1.msra.mxu0 %v2299
        %4721 = vmatprep.mubr.f32.mxu0 %v1501
        %4722 = vmatmul.mubr.f32.gmra.mrb[0].mxu0 %v1500
        %v4723 = vpop.f32.mrb[0].mxu0
        %v4724 = vadd.f32 %v3195, %v4723
        %v4725 = vpop.f32.mrb[0].mxu0
        %v4726 = vadd.f32 %v3199, %v4725
        %4727 = vdwg.mxu0
        %4728 = vmatprep.subr.mxu0 %v2325
        %4729 = vmatpush1.msra.mxu0 %v2324
        %4730 = vmatprep.subr.mxu0 %v2350
        %4731 = vmatpush1.msra.mxu0 %v2349
        %4732 = vmatprep.subr.mxu0 %v2375
        %4733 = vmatpush1.msra.mxu0 %v2374
        %4734 = vmatprep.subr.mxu0 %v2400
        %4735 = vmatpush1.msra.mxu0 %v2399
        %4736 = vmatprep.subr.mxu0 %v2425
        %4737 = vmatpush1.msra.mxu0 %v2424
        %4738 = vmatprep.subr.mxu0 %v2450
        %4739 = vmatpush1.msra.mxu0 %v2449
        %4740 = vmatprep.subr.mxu0 %v2475
        %4741 = vmatpush1.msra.mxu0 %v2474
        %4742 = vmatprep.subr.mxu0 %v2500
        %4743 = vmatpush1.msra.mxu0 %v2499
        %4744 = vmatprep.subr.mxu0 %v2525
        %4745 = vmatpush1.msra.mxu0 %v2524
        %4746 = vmatprep.subr.mxu0 %v2550
        %4747 = vmatpush1.msra.mxu0 %v2549
        %4748 = vmatprep.subr.mxu0 %v2575
        %4749 = vmatpush1.msra.mxu0 %v2574
        %4750 = vmatprep.subr.mxu0 %v2600
        %4751 = vmatpush1.msra.mxu0 %v2599
        %4752 = vmatprep.subr.mxu0 %v2625
        %4753 = vmatpush1.msra.mxu0 %v2624
        %4754 = vmatprep.subr.mxu0 %v2650
        %4755 = vmatpush1.msra.mxu0 %v2649
        %4756 = vmatprep.subr.mxu0 %v2675
        %4757 = vmatpush1.msra.mxu0 %v2674
        %4758 = vmatprep.subr.mxu0 %v2700
        %4759 = vmatpush1.msra.mxu0 %v2699
        %4760 = vmatprep.subr.mxu0 %v2725
        %4761 = vmatpush1.msra.mxu0 %v2724
        %4762 = vmatprep.subr.mxu0 %v2750
        %4763 = vmatpush1.msra.mxu0 %v2749
        %4764 = vmatprep.subr.mxu0 %v2775
        %4765 = vmatpush1.msra.mxu0 %v2774
        %4766 = vmatprep.subr.mxu0 %v2800
        %4767 = vmatpush1.msra.mxu0 %v2799
        %4768 = vmatprep.subr.mxu0 %v2825
        %4769 = vmatpush1.msra.mxu0 %v2824
        %4770 = vmatprep.subr.mxu0 %v2850
        %4771 = vmatpush1.msra.mxu0 %v2849
        %4772 = vmatprep.subr.mxu0 %v2875
        %4773 = vmatpush1.msra.mxu0 %v2874
        %4774 = vmatprep.subr.mxu0 %v2900
        %4775 = vmatpush1.msra.mxu0 %v2899
        %4776 = vmatprep.subr.mxu0 %v2925
        %4777 = vmatpush1.msra.mxu0 %v2924
        %4778 = vmatprep.subr.mxu0 %v2950
        %4779 = vmatpush1.msra.mxu0 %v2949
        %4780 = vmatprep.subr.mxu0 %v2975
        %4781 = vmatpush1.msra.mxu0 %v2974
        %4782 = vmatprep.subr.mxu0 %v3000
        %4783 = vmatpush1.msra.mxu0 %v2999
        %4784 = vmatprep.subr.mxu0 %v3025
        %4785 = vmatpush1.msra.mxu0 %v3024
        %4786 = vmatprep.subr.mxu0 %v3050
        %4787 = vmatpush1.msra.mxu0 %v3049
        %4788 = vmatprep.subr.mxu0 %v3075
        %4789 = vmatpush1.msra.mxu0 %v3074
        %4790 = vmatprep.subr.mxu0 %v3100
        %4791 = vmatpush1.msra.mxu0 %v3099
        %4792 = vmatprep.mubr.f32.mxu0 %v1503
        %4793 = vmatmul.mubr.f32.gmra.mrb[0].mxu0 %v1502
        %v4794 = vpop.f32.mrb[0].mxu0
        %v4795 = vadd.f32 %v4724, %v4794
        %v4796 = vpop.f32.mrb[0].mxu0
        %v4797 = vadd.f32 %v4726, %v4796
        %4798 = vdwg.mxu0
        %4799 = vmatprep.subr.mxu0 %v1527
        %4800 = vmatpush1.msra.mxu0 %v1526
        %4801 = vmatprep.subr.mxu0 %v1552
        %4802 = vmatpush1.msra.mxu0 %v1551
        %4803 = vmatprep.subr.mxu0 %v1577
        %4804 = vmatpush1.msra.mxu0 %v1576
        %4805 = vmatprep.subr.mxu0 %v1602
        %4806 = vmatpush1.msra.mxu0 %v1601
        %4807 = vmatprep.subr.mxu0 %v1627
        %4808 = vmatpush1.msra.mxu0 %v1626
        %4809 = vmatprep.subr.mxu0 %v1652
        %4810 = vmatpush1.msra.mxu0 %v1651
        %4811 = vmatprep.subr.mxu0 %v1677
        %4812 = vmatpush1.msra.mxu0 %v1676
        %4813 = vmatprep.subr.mxu0 %v1702
        %4814 = vmatpush1.msra.mxu0 %v1701
        %4815 = vmatprep.subr.mxu0 %v1727
        %4816 = vmatpush1.msra.mxu0 %v1726
        %4817 = vmatprep.subr.mxu0 %v1752
        %4818 = vmatpush1.msra.mxu0 %v1751
        %4819 = vmatprep.subr.mxu0 %v1777
        %4820 = vmatpush1.msra.mxu0 %v1776
        %4821 = vmatprep.subr.mxu0 %v1802
        %4822 = vmatpush1.msra.mxu0 %v1801
        %4823 = vmatprep.subr.mxu0 %v1827
        %4824 = vmatpush1.msra.mxu0 %v1826
        %4825 = vmatprep.subr.mxu0 %v1852
        %4826 = vmatpush1.msra.mxu0 %v1851
        %4827 = vmatprep.subr.mxu0 %v1877
        %4828 = vmatpush1.msra.mxu0 %v1876
        %4829 = vmatprep.subr.mxu0 %v1902
        %4830 = vmatpush1.msra.mxu0 %v1901
        %4831 = vmatprep.subr.mxu0 %v1927
        %4832 = vmatpush1.msra.mxu0 %v1926
        %4833 = vmatprep.subr.mxu0 %v1952
        %4834 = vmatpush1.msra.mxu0 %v1951
        %4835 = vmatprep.subr.mxu0 %v1977
        %4836 = vmatpush1.msra.mxu0 %v1976
        %4837 = vmatprep.subr.mxu0 %v2002
        %4838 = vmatpush1.msra.mxu0 %v2001
        %4839 = vmatprep.subr.mxu0 %v2027
        %4840 = vmatpush1.msra.mxu0 %v2026
        %4841 = vmatprep.subr.mxu0 %v2052
        %4842 = vmatpush1.msra.mxu0 %v2051
        %4843 = vmatprep.subr.mxu0 %v2077
        %4844 = vmatpush1.msra.mxu0 %v2076
        %4845 = vmatprep.subr.mxu0 %v2102
        %4846 = vmatpush1.msra.mxu0 %v2101
        %4847 = vmatprep.subr.mxu0 %v2127
        %4848 = vmatpush1.msra.mxu0 %v2126
        %4849 = vmatprep.subr.mxu0 %v2152
        %4850 = vmatpush1.msra.mxu0 %v2151
        %4851 = vmatprep.subr.mxu0 %v2177
        %4852 = vmatpush1.msra.mxu0 %v2176
        %4853 = vmatprep.subr.mxu0 %v2202
        %4854 = vmatpush1.msra.mxu0 %v2201
        %4855 = vmatprep.subr.mxu0 %v2227
        %4856 = vmatpush1.msra.mxu0 %v2226
        %4857 = vmatprep.subr.mxu0 %v2252
        %4858 = vmatpush1.msra.mxu0 %v2251
        %4859 = vmatprep.subr.mxu0 %v2277
        %4860 = vmatpush1.msra.mxu0 %v2276
        %4861 = vmatprep.subr.mxu0 %v2302
        %4862 = vmatpush1.msra.mxu0 %v2301
        %4863 = vmatprep.mubr.f32.mxu0 %v1501
        %4864 = vmatmul.mubr.f32.gmra.mrb[0].mxu0 %v1500
        %v4865 = vpop.f32.mrb[0].mxu0
        %v4866 = vadd.f32 %v3203, %v4865
        %v4867 = vpop.f32.mrb[0].mxu0
        %v4868 = vadd.f32 %v3207, %v4867
        %4869 = vdwg.mxu0
        %4870 = vmatprep.subr.mxu0 %v2327
        %4871 = vmatpush1.msra.mxu0 %v2326
        %4872 = vmatprep.subr.mxu0 %v2352
        %4873 = vmatpush1.msra.mxu0 %v2351
        %4874 = vmatprep.subr.mxu0 %v2377
        %4875 = vmatpush1.msra.mxu0 %v2376
        %4876 = vmatprep.subr.mxu0 %v2402
        %4877 = vmatpush1.msra.mxu0 %v2401
        %4878 = vmatprep.subr.mxu0 %v2427
        %4879 = vmatpush1.msra.mxu0 %v2426
        %4880 = vmatprep.subr.mxu0 %v2452
        %4881 = vmatpush1.msra.mxu0 %v2451
        %4882 = vmatprep.subr.mxu0 %v2477
        %4883 = vmatpush1.msra.mxu0 %v2476
        %4884 = vmatprep.subr.mxu0 %v2502
        %4885 = vmatpush1.msra.mxu0 %v2501
        %4886 = vmatprep.subr.mxu0 %v2527
        %4887 = vmatpush1.msra.mxu0 %v2526
        %4888 = vmatprep.subr.mxu0 %v2552
        %4889 = vmatpush1.msra.mxu0 %v2551
        %4890 = vmatprep.subr.mxu0 %v2577
        %4891 = vmatpush1.msra.mxu0 %v2576
        %4892 = vmatprep.subr.mxu0 %v2602
        %4893 = vmatpush1.msra.mxu0 %v2601
        %4894 = vmatprep.subr.mxu0 %v2627
        %4895 = vmatpush1.msra.mxu0 %v2626
        %4896 = vmatprep.subr.mxu0 %v2652
        %4897 = vmatpush1.msra.mxu0 %v2651
        %4898 = vmatprep.subr.mxu0 %v2677
        %4899 = vmatpush1.msra.mxu0 %v2676
        %4900 = vmatprep.subr.mxu0 %v2702
        %4901 = vmatpush1.msra.mxu0 %v2701
        %4902 = vmatprep.subr.mxu0 %v2727
        %4903 = vmatpush1.msra.mxu0 %v2726
        %4904 = vmatprep.subr.mxu0 %v2752
        %4905 = vmatpush1.msra.mxu0 %v2751
        %4906 = vmatprep.subr.mxu0 %v2777
        %4907 = vmatpush1.msra.mxu0 %v2776
        %4908 = vmatprep.subr.mxu0 %v2802
        %4909 = vmatpush1.msra.mxu0 %v2801
        %4910 = vmatprep.subr.mxu0 %v2827
        %4911 = vmatpush1.msra.mxu0 %v2826
        %4912 = vmatprep.subr.mxu0 %v2852
        %4913 = vmatpush1.msra.mxu0 %v2851
        %4914 = vmatprep.subr.mxu0 %v2877
        %4915 = vmatpush1.msra.mxu0 %v2876
        %4916 = vmatprep.subr.mxu0 %v2902
        %4917 = vmatpush1.msra.mxu0 %v2901
        %4918 = vmatprep.subr.mxu0 %v2927
        %4919 = vmatpush1.msra.mxu0 %v2926
        %4920 = vmatprep.subr.mxu0 %v2952
        %4921 = vmatpush1.msra.mxu0 %v2951
        %4922 = vmatprep.subr.mxu0 %v2977
        %4923 = vmatpush1.msra.mxu0 %v2976
        %4924 = vmatprep.subr.mxu0 %v3002
        %4925 = vmatpush1.msra.mxu0 %v3001
        %4926 = vmatprep.subr.mxu0 %v3027
        %4927 = vmatpush1.msra.mxu0 %v3026
        %4928 = vmatprep.subr.mxu0 %v3052
        %4929 = vmatpush1.msra.mxu0 %v3051
        %4930 = vmatprep.subr.mxu0 %v3077
        %4931 = vmatpush1.msra.mxu0 %v3076
        %4932 = vmatprep.subr.mxu0 %v3102
        %4933 = vmatpush1.msra.mxu0 %v3101
        %4934 = vmatprep.mubr.f32.mxu0 %v1503
        %4935 = vmatmul.mubr.f32.gmra.mrb[0].mxu0 %v1502
        %v4936 = vpop.f32.mrb[0].mxu0
        %v4937 = vadd.f32 %v4866, %v4936
        %v4938 = vpop.f32.mrb[0].mxu0
        %v4939 = vadd.f32 %v4868, %v4938
        %4940 = vdwg.mxu0
        %4941 = vmatprep.subr.mxu0 0.0
        %4942 = vmatpush1.msra.mxu0 %v1528
        %4943 = vmatprep.subr.mxu0 0.0
        %4944 = vmatpush1.msra.mxu0 %v1553
        %4945 = vmatprep.subr.mxu0 0.0
        %4946 = vmatpush1.msra.mxu0 %v1578
        %4947 = vmatprep.subr.mxu0 0.0
        %4948 = vmatpush1.msra.mxu0 %v1603
        %4949 = vmatprep.subr.mxu0 0.0
        %4950 = vmatpush1.msra.mxu0 %v1628
        %4951 = vmatprep.subr.mxu0 0.0
        %4952 = vmatpush1.msra.mxu0 %v1653
        %4953 = vmatprep.subr.mxu0 0.0
        %4954 = vmatpush1.msra.mxu0 %v1678
        %4955 = vmatprep.subr.mxu0 0.0
        %4956 = vmatpush1.msra.mxu0 %v1703
        %4957 = vmatprep.subr.mxu0 0.0
        %4958 = vmatpush1.msra.mxu0 %v1728
        %4959 = vmatprep.subr.mxu0 0.0
        %4960 = vmatpush1.msra.mxu0 %v1753
        %4961 = vmatprep.subr.mxu0 0.0
        %4962 = vmatpush1.msra.mxu0 %v1778
        %4963 = vmatprep.subr.mxu0 0.0
        %4964 = vmatpush1.msra.mxu0 %v1803
        %4965 = vmatprep.subr.mxu0 0.0
        %4966 = vmatpush1.msra.mxu0 %v1828
        %4967 = vmatprep.subr.mxu0 0.0
        %4968 = vmatpush1.msra.mxu0 %v1853
        %4969 = vmatprep.subr.mxu0 0.0
        %4970 = vmatpush1.msra.mxu0 %v1878
        %4971 = vmatprep.subr.mxu0 0.0
        %4972 = vmatpush1.msra.mxu0 %v1903
        %4973 = vmatprep.subr.mxu0 0.0
        %4974 = vmatpush1.msra.mxu0 %v1928
        %4975 = vmatprep.subr.mxu0 0.0
        %4976 = vmatpush1.msra.mxu0 %v1953
        %4977 = vmatprep.subr.mxu0 0.0
        %4978 = vmatpush1.msra.mxu0 %v1978
        %4979 = vmatprep.subr.mxu0 0.0
        %4980 = vmatpush1.msra.mxu0 %v2003
        %4981 = vmatprep.subr.mxu0 0.0
        %4982 = vmatpush1.msra.mxu0 %v2028
        %4983 = vmatprep.subr.mxu0 0.0
        %4984 = vmatpush1.msra.mxu0 %v2053
        %4985 = vmatprep.subr.mxu0 0.0
        %4986 = vmatpush1.msra.mxu0 %v2078
        %4987 = vmatprep.subr.mxu0 0.0
        %4988 = vmatpush1.msra.mxu0 %v2103
        %4989 = vmatprep.subr.mxu0 0.0
        %4990 = vmatpush1.msra.mxu0 %v2128
        %4991 = vmatprep.subr.mxu0 0.0
        %4992 = vmatpush1.msra.mxu0 %v2153
        %4993 = vmatprep.subr.mxu0 0.0
        %4994 = vmatpush1.msra.mxu0 %v2178
        %4995 = vmatprep.subr.mxu0 0.0
        %4996 = vmatpush1.msra.mxu0 %v2203
        %4997 = vmatprep.subr.mxu0 0.0
        %4998 = vmatpush1.msra.mxu0 %v2228
        %4999 = vmatprep.subr.mxu0 0.0
        %5000 = vmatpush1.msra.mxu0 %v2253
        %5001 = vmatprep.subr.mxu0 0.0
        %5002 = vmatpush1.msra.mxu0 %v2278
        %5003 = vmatprep.subr.mxu0 0.0
        %5004 = vmatpush1.msra.mxu0 %v2303
        %5005 = vmatprep.mubr.f32.mxu0 %v1501
        %5006 = vmatmul.mubr.f32.gmra.mrb[0].mxu0 %v1500
        %v5007 = vpop.f32.mrb[0].mxu0
        %v5008 = vadd.f32 %v3211, %v5007
        %v5009 = vpop.f32.mrb[0].mxu0
        %5010 = vdwg.mxu0
        %5011 = vmatprep.subr.mxu0 0.0
        %5012 = vmatpush1.msra.mxu0 %v2328
        %5013 = vmatprep.subr.mxu0 0.0
        %5014 = vmatpush1.msra.mxu0 %v2353
        %5015 = vmatprep.subr.mxu0 0.0
        %5016 = vmatpush1.msra.mxu0 %v2378
        %5017 = vmatprep.subr.mxu0 0.0
        %5018 = vmatpush1.msra.mxu0 %v2403
        %5019 = vmatprep.subr.mxu0 0.0
        %5020 = vmatpush1.msra.mxu0 %v2428
        %5021 = vmatprep.subr.mxu0 0.0
        %5022 = vmatpush1.msra.mxu0 %v2453
        %5023 = vmatprep.subr.mxu0 0.0
        %5024 = vmatpush1.msra.mxu0 %v2478
        %5025 = vmatprep.subr.mxu0 0.0
        %5026 = vmatpush1.msra.mxu0 %v2503
        %5027 = vmatprep.subr.mxu0 0.0
        %5028 = vmatpush1.msra.mxu0 %v2528
        %5029 = vmatprep.subr.mxu0 0.0
        %5030 = vmatpush1.msra.mxu0 %v2553
        %5031 = vmatprep.subr.mxu0 0.0
        %5032 = vmatpush1.msra.mxu0 %v2578
        %5033 = vmatprep.subr.mxu0 0.0
        %5034 = vmatpush1.msra.mxu0 %v2603
        %5035 = vmatprep.subr.mxu0 0.0
        %5036 = vmatpush1.msra.mxu0 %v2628
        %5037 = vmatprep.subr.mxu0 0.0
        %5038 = vmatpush1.msra.mxu0 %v2653
        %5039 = vmatprep.subr.mxu0 0.0
        %5040 = vmatpush1.msra.mxu0 %v2678
        %5041 = vmatprep.subr.mxu0 0.0
        %5042 = vmatpush1.msra.mxu0 %v2703
        %5043 = vmatprep.subr.mxu0 0.0
        %5044 = vmatpush1.msra.mxu0 %v2728
        %5045 = vmatprep.subr.mxu0 0.0
        %5046 = vmatpush1.msra.mxu0 %v2753
        %5047 = vmatprep.subr.mxu0 0.0
        %5048 = vmatpush1.msra.mxu0 %v2778
        %5049 = vmatprep.subr.mxu0 0.0
        %5050 = vmatpush1.msra.mxu0 %v2803
        %5051 = vmatprep.subr.mxu0 0.0
        %5052 = vmatpush1.msra.mxu0 %v2828
        %5053 = vmatprep.subr.mxu0 0.0
        %5054 = vmatpush1.msra.mxu0 %v2853
        %5055 = vmatprep.subr.mxu0 0.0
        %5056 = vmatpush1.msra.mxu0 %v2878
        %5057 = vmatprep.subr.mxu0 0.0
        %5058 = vmatpush1.msra.mxu0 %v2903
        %5059 = vmatprep.subr.mxu0 0.0
        %5060 = vmatpush1.msra.mxu0 %v2928
        %5061 = vmatprep.subr.mxu0 0.0
        %5062 = vmatpush1.msra.mxu0 %v2953
        %5063 = vmatprep.subr.mxu0 0.0
        %5064 = vmatpush1.msra.mxu0 %v2978
        %5065 = vmatprep.subr.mxu0 0.0
        %5066 = vmatpush1.msra.mxu0 %v3003
        %5067 = vmatprep.subr.mxu0 0.0
        %5068 = vmatpush1.msra.mxu0 %v3028
        %5069 = vmatprep.subr.mxu0 0.0
        %5070 = vmatpush1.msra.mxu0 %v3053
        %5071 = vmatprep.subr.mxu0 0.0
        %5072 = vmatpush1.msra.mxu0 %v3078
        %5073 = vmatprep.subr.mxu0 0.0
        %5074 = vmatpush1.msra.mxu0 %v3103
        %5075 = vmatprep.mubr.f32.mxu0 %v1503
        %5076 = vmatmul.mubr.f32.gmra.mrb[0].mxu0 %v1502
        %v5077 = vpop.f32.mrb[0].mxu0
        %v5078 = vadd.f32 %v5008, %v5077
        %v5079 = vpop.f32.mrb[0].mxu0
        %5080 = vdwg.mxu0
        %5081 = vst [vmem:[%s402] sm:$0xff] %v3375
        %5082 = vst [vmem:[%s402 + $0x8] sm:$0xff] %v3377
        %5083 = vst [vmem:[%s402 + $0x10] sm:$0xff] %v3517
        %5084 = vst [vmem:[%s402 + $0x18] sm:$0xff] %v3519
        %5085 = vst [vmem:[%s402 + $0x20] sm:$0xff] %v3659
        %5086 = vst [vmem:[%s402 + $0x28] sm:$0xff] %v3661
        %5087 = vst [vmem:[%s402 + $0x30] sm:$0xff] %v3801
        %5088 = vst [vmem:[%s402 + $0x38] sm:$0xff] %v3803
        %5089 = vst [vmem:[%s402 + $0x40] sm:$0xff] %v3943
        %5090 = vst [vmem:[%s402 + $0x48] sm:$0xff] %v3945
        %5091 = vst [vmem:[%s402 + $0x50] sm:$0xff] %v4085
        %5092 = vst [vmem:[%s402 + $0x58] sm:$0xff] %v4087
        %5093 = vst [vmem:[%s402 + $0x60] sm:$0xff] %v4227
        %5094 = vst [vmem:[%s402 + $0x68] sm:$0xff] %v4229
        %5095 = vst [vmem:[%s402 + $0x70] sm:$0xff] %v4369
        %5096 = vst [vmem:[%s402 + $0x78] sm:$0xff] %v4371
        %5097 = vst [vmem:[%s402 + $0x80] sm:$0xff] %v4511
        %5098 = vst [vmem:[%s402 + $0x88] sm:$0xff] %v4513
        %5099 = vst [vmem:[%s402 + $0x90] sm:$0xff] %v4653
        %5100 = vst [vmem:[%s402 + $0x98] sm:$0xff] %v4655
        %5101 = vst [vmem:[%s402 + $0xa0] sm:$0xff] %v4795
        %5102 = vst [vmem:[%s402 + $0xa8] sm:$0xff] %v4797
        %5103 = vst [vmem:[%s402 + $0xb0] sm:$0xff] %v4937
        %5104 = vst [vmem:[%s402 + $0xb8] sm:$0xff] %v4939
        %5105 = vst [vmem:[%s402 + $0xc0] sm:$0xff] %v5078
        %s5106 = smul.u32 25, %s24
        %p5107 = scmp.lt.s32.totalorder %s5106, 1249
        %s5108 = scalar_select %p5107, %s5106, 1249
        %s5109 = smul.addr %s5108, 8
        %s5110 = scalar_lea.vmem %s7, %s5109
        // Predicated region
        $region77: #{generator_w2_forward.1} parent=47 // pred_check
          %p5111 = pneg %p199
        $region78: #{generator_w2_forward.1} parent=47 // pred_check_branch
          %5113 = sbr.rel (%p5111) target = $region80
        $region79: #{generator_w2_forward.1} parent=47 // pred_region
          %s5114 = smul.u32 25, %s24
        $region80: #{generator_w2_forward.1} parent=47 // pred_fallthru
          _
      $region48: #{generator_w2_forward.1} parent=5 // pred_fallthru
        _
      %p5115 = scmp.le.s32.totalorder 2, %s19
      // Predicated region
      $region81: #{generator_w2_forward.1} parent=5 // pred_check
        %p5116 = pneg %p5115
      $region82: #{generator_w2_forward.1} parent=5 // pred_check_branch
        %5118 = sbr.rel (%p5116) target = $region84
      $region83: #{generator_w2_forward.1} parent=5 // pred_region
        %s5119 = ssub.s32 %s19, 2
        // Predicated region
        $region85: #{generator_w2_forward.1} parent=83 // pred_check
          %p5120 = pneg %p205
        $region86: #{generator_w2_forward.1} parent=83 // pred_check_branch
          %5122 = sbr.rel (%p5120) target = $region88
        $region87: #{generator_w2_forward.1} parent=83 // pred_region
          %s5123 = smul.u32 25, %s25
          %p5124 = scmp.lt.s32.totalorder %s5123, 1249
          %s5125 = scalar_select %p5124, %s5123, 1249
          %s5126 = smul.addr %s5125, 8
          %s5127 = scalar_lea.vmem %s7, %s5126
        $region88: #{generator_w2_forward.1} parent=83 // pred_fallthru
          _
      $region84: #{generator_w2_forward.1} parent=5 // pred_fallthru
        _
    $region6: #{generator_w2_forward.1} parent=1 // loop_footer
      %s23 = sadd.s32 1, %s19
    $region7: #{generator_w2_forward.1} parent=1 // loop_footer_branch
      %18 = sbr.rel target = $region3
    $region8: #{generator_w2_forward.1} parent=1 // loop_exit
      _
    %5128 = vsyncpa [#allocation3], 1
    %s5129 = scalar_lea.sflag [#allocation3], 1
    %5130 = vsyncpa %s5129, 1
    %5131 = vsyncpa [#allocation5], 1
    %5132 = vsyncpa [#allocation8], 1
    %5133 = vsyncpa [#allocation11], 1
    %s5134 = scalar_lea.sflag [#allocation11], 1
    %5135 = vsyncpa %s5134, 1

</llo_original>
